<compile_context>
chip_gen: v6e
topology: v6e:2x2x1
jax: 0.10.0
libtpu: 0.0.40
codegen_flags: <defaults>
</compile_context>

<pallas_src>
import math
from functools import partial

import jax
import jax.numpy as jnp
from jax import lax
from jax.experimental import pallas as pl
from jax.experimental.pallas import tpu as pltpu

# ------------- small synthetic T5-v1.1 encoder config -------------
VOCAB = 64
SEQ = 8             # stands in for max_length=77 (pad to 128 at real size)
D_MODEL = 128       # hidden size (lane-aligned)
N_HEADS = 4
HEAD_DIM = D_MODEL // N_HEADS
D_FF = 256          # gated-GELU inner size (lane-aligned)
N_LAYERS = 2
BATCH = 32
BATCH_BLOCK = 16    # Bb: Bb*SEQ = 128 rows per matmul; BATCH//Bb = 2 parallel blocks
NUM_BUCKETS = 32    # relative_attention_num_buckets
MAX_DIST = 128      # relative_attention_max_distance
RMS_EPS = 1e-6
NEG_INF = -1e9


# ----------------------- shared math helpers -----------------------
def _rms_norm(x, g):
    # T5LayerNorm: x / sqrt(mean(x^2) + eps) * gamma   (no mean, no beta)
    var = jnp.mean(x * x, axis=-1, keepdims=True)
    return x * lax.rsqrt(var + RMS_EPS) * g


def _gelu_new(x):
    # HF "gelu_new" (tanh approximation) used by T5-v1.1 gated feed-forward.
    return 0.5 * x * (1.0 + jnp.tanh(0.7978845608028654 * (x + 0.044715 * x * x * x)))


# ----------------------- relative position bias (plain-JAX glue) -----------------------
def t5_relative_position_bucket(S, num_buckets=NUM_BUCKETS, max_distance=MAX_DIST):
    context = jnp.arange(S, dtype=jnp.int32)[:, None]
    memory = jnp.arange(S, dtype=jnp.int32)[None, :]
    rel = memory - context                                     # (S, S)
    nb = num_buckets // 2                                      # bidirectional split
    buckets = jnp.where(rel > 0, nb, 0).astype(jnp.int32)
    arel = jnp.abs(rel)
    max_exact = nb // 2
    is_small = arel < max_exact
    large = max_exact + (
        jnp.log(jnp.maximum(arel, 1).astype(jnp.float32) / max_exact)
        / math.log(max_distance / max_exact) * (nb - max_exact)
    ).astype(jnp.int32)
    large = jnp.minimum(large, nb - 1)
    return buckets + jnp.where(is_small, arel, large)           # (S, S) int32


def t5_relative_position_bias(rel_emb, S):
    # rel_emb: (NUM_BUCKETS, H) -> bias (H, S, S); computed once, shared by all layers.
    buckets = t5_relative_position_bucket(S)
    bias = rel_emb[buckets]                                      # (S, S, H)
    return jnp.transpose(bias, (2, 0, 1))                        # (H, S, S)


def build_packed_bias(rel_emb, lengths, batch_block):
    """Block-diagonal additive attention bias for packed batch blocks.

    Returns (nB*H, M, M) f32 with M = batch_block*SEQ:
      rel-pos bias on the within-sequence block diagonal, key padding mask,
      and -1e9 between different sequences of the same packed block.
    """
    B = lengths.shape[0]
    nB = B // batch_block
    S, H = SEQ, N_HEADS
    M = batch_block * S
    pos_bias = t5_relative_position_bias(rel_emb, S)             # (H, S, S)
    pos_tiled = jnp.tile(pos_bias, (1, batch_block, batch_block))  # (H, M, M): [h, q%S, k%S]
    seq_id = jnp.arange(M, dtype=jnp.int32) // S
    same_seq = seq_id[:, None] == seq_id[None, :]                # (M, M)
    valid = jnp.arange(S)[None, :] < lengths[:, None]            # (B, S) key validity
    valid_m = valid.reshape(nB, M)                               # (nB, M)
    keep = same_seq[None, :, :] & valid_m[:, None, :]            # (nB, M, M)
    mask_add = jnp.where(keep, 0.0, NEG_INF).astype(jnp.float32)
    bias = pos_tiled[None] + mask_add[:, None]                   # (nB, H, M, M)
    return bias.reshape(nB * H, M, M)


# ----------------------- fused Pallas kernel -----------------------
def t5_encoder_kernel(x_emb_ref, bias_ref, ln_g_ref, w_qkv_ref, w_o_ref,
                      w_ff_in_ref, w_ff_out_ref, ln_f_ref, o_ref,
                      x_scr, qkv_scr,
                      *, num_heads, head_dim, d_model, d_ff):
    """Grid = (batch_block, layer). One packed (M, D) block, one encoder layer per step.

    Residual stream lives in `x_scr` (VMEM, f32) across the layer axis; all
    per-layer weights are VMEM-resident and indexed by the layer grid axis.
    The final RMSNorm is fused into the last layer step (output block index is
    constant over the layer axis, so writeback only happens after it).
    """
    l = pl.program_id(1)

    @pl.when(l == 0)
    def _():
        x_scr[...] = x_emb_ref[...]                              # (M, D) f32 embeddings

    x = x_scr[...]                                               # (M, D) f32 residual stream
    gammas = ln_g_ref[l]                                         # (2, D) f32: [attn-LN, ff-LN]

    # ---- self-attention sub-block (no scaling, no biases) ----
    h = _rms_norm(x, gammas[0:1, :]).astype(jnp.bfloat16)
    # single cast of the fused QKV result into a VMEM scratch
    qkv_scr[...] = jnp.dot(h, w_qkv_ref[l],
                           preferred_element_type=jnp.float32).astype(jnp.bfloat16)

    ctx_parts = []
    # TODO(synk): for real T5 head counts (16-64) replace this static unroll with
    # lax.fori_loop(..., unroll=True) or a head-batched dot_general to bound live ranges.
    for hh in range(num_heads):
        lo = hh * head_dim
        qh = qkv_scr[:, lo:lo + head_dim]                                    # (M, hd) bf16
        kh = qkv_scr[:, d_model + lo:d_model + lo + head_dim]
        vh = qkv_scr[:, 2 * d_model + lo:2 * d_model + lo + head_dim]
        # contraction over the last dim of both operands -> no XLU transpose of K
        s = lax.dot_general(qh, kh, (((1,), (1,)), ((), ())),
                            preferred_element_type=jnp.float32) + bias_ref[hh]
        s = s - jnp.max(s, axis=-1, keepdims=True)
        p = jnp.exp(s)
        p = p * pl.reciprocal(jnp.sum(p, axis=-1, keepdims=True), approx=True)
        ctx_parts.append(jnp.dot(p.astype(jnp.bfloat16), vh,
                                 preferred_element_type=jnp.float32))        # (M, hd) f32
    # single output-projection matmul with full K = D contraction
    ctx = jnp.concatenate(ctx_parts, axis=-1).astype(jnp.bfloat16)           # (M, D)
    x = x + jnp.dot(ctx, w_o_ref[l], preferred_element_type=jnp.float32)

    # ---- gated-GELU feed-forward sub-block (no biases) ----
    h2 = _rms_norm(x, gammas[1:2, :]).astype(jnp.bfloat16)
    ff = jnp.dot(h2, w_ff_in_ref[l], preferred_element_type=jnp.float32)     # (M, 2F) f32
    f = (_gelu_new(ff[:, :d_ff]) * ff[:, d_ff:]).astype(jnp.bfloat16)
    x = x + jnp.dot(f, w_ff_out_ref[l], preferred_element_type=jnp.float32)

    x_scr[...] = x

    @pl.when(l == pl.num_programs(1) - 1)
    def _():
        # T5Stack final_layer_norm fused into the last layer step.
        o_ref[...] = _rms_norm(x, ln_f_ref[...]).astype(o_ref.dtype)


# ----------------------- wrapper -----------------------
def t5_encoder_stack(x_emb_flat, bias_packed, params, *, batch_block):
    BS, D = x_emb_flat.shape
    M = batch_block * SEQ
    nB = BS // M
    H, F, L = N_HEADS, D_FF, N_LAYERS
    # TODO(synk): at real T5 sizes (D=4096, F=10240) the full (L, ...) resident weight
    # blocks no longer fit VMEM (esp. v7x 64 MiB); switch to per-layer K/N-tiled blocks
    # (extra grid axes or pltpu.emit_pipeline) and per-generation vmem_limit_bytes.
    grid_spec = pltpu.PrefetchScalarGridSpec(
        num_scalar_prefetch=0,
        grid=(nB, L),
        in_specs=[
            pl.BlockSpec((M, D), lambda b, l: (b, 0)),             # packed embeddings
            pl.BlockSpec((H, M, M), lambda b, l: (b, 0, 0)),       # packed block-diag attn bias
            pl.BlockSpec((L, 2, D), lambda b, l: (0, 0, 0)),       # packed LN gammas (resident)
            pl.BlockSpec((L, D, 3 * D), lambda b, l: (0, 0, 0)),   # fused QKV weights (resident)
            pl.BlockSpec((L, D, D), lambda b, l: (0, 0, 0)),       # attn out proj (resident)
            pl.BlockSpec((L, D, 2 * F), lambda b, l: (0, 0, 0)),   # fused wi0|wi1 (resident)
            pl.BlockSpec((L, F, D), lambda b, l: (0, 0, 0)),       # ff out proj (resident)
            pl.BlockSpec((1, D), lambda b, l: (0, 0)),             # final LN gamma
        ],
        out_specs=pl.BlockSpec((M, D), lambda b, l: (b, 0)),       # lane-dense (last dim 128)
        scratch_shapes=[pltpu.VMEM((M, D), jnp.float32),           # resident residual stream
                        pltpu.VMEM((M, 3 * D), jnp.bfloat16)],     # bf16 QKV staging
    )
    return pl.pallas_call(
        partial(t5_encoder_kernel, num_heads=H, head_dim=HEAD_DIM,
                d_model=D, d_ff=F),
        out_shape=jax.ShapeDtypeStruct((BS, D), jnp.float32),
        grid_spec=grid_spec,
        compiler_params=pltpu.CompilerParams(
            dimension_semantics=("parallel", "arbitrary"),
            vmem_limit_bytes=32 * 1024 * 1024),
    )(x_emb_flat, bias_packed,
      params['ln_g'], params['w_qkv'], params['w_o'],
      params['w_ff_in'], params['w_ff_out'], params['ln_f'])


def frozen_t5_embed(tokens, lengths, params, *, batch_block=BATCH_BLOCK):
    # TODO(synk): T5Tokenizer (SentencePiece text -> ids, padding to max_length) has no
    # Pallas equivalent; the kernel consumes token ids + valid lengths directly.
    B, S = tokens.shape
    assert B % batch_block == 0
    x_emb = params['tok_emb'][tokens]                              # embedding gather (glue)
    x_flat = x_emb.reshape(B * S, D_MODEL)                         # packed (B*S, D) rows
    bias_packed = build_packed_bias(params['rel_emb'], lengths, batch_block)
    out = t5_encoder_stack(x_flat, bias_packed, params, batch_block=batch_block)
    return out.reshape(B, S, D_MODEL)


# ----------------------- deterministic synthetic params -----------------------
def init_params(key):
    keys = jax.random.split(key, 7)

    def nrm(k, shape, scale=0.02):
        return scale * jax.random.normal(k, shape, dtype=jnp.float32)

    return {
        'tok_emb': nrm(keys[0], (VOCAB, D_MODEL)),
        'rel_emb': nrm(keys[1], (NUM_BUCKETS, N_HEADS)),
        # [layer, {attn-LN, ff-LN}, D] packed RMSNorm gammas
        'ln_g': 1.0 + nrm(keys[2], (N_LAYERS, 2, D_MODEL), scale=0.05),
        'ln_f': jnp.ones((1, D_MODEL), jnp.float32),
        # bf16 weights (MXU-native; f32 accumulation in the kernel)
        'w_qkv': nrm(keys[3], (N_LAYERS, D_MODEL, 3 * D_MODEL)).astype(jnp.bfloat16),
        'w_o': nrm(keys[4], (N_LAYERS, D_MODEL, D_MODEL)).astype(jnp.bfloat16),
        'w_ff_in': nrm(keys[5], (N_LAYERS, D_MODEL, 2 * D_FF)).astype(jnp.bfloat16),
        'w_ff_out': nrm(keys[6], (N_LAYERS, D_FF, D_MODEL)).astype(jnp.bfloat16),
    }


# ----------------------- pure-JAX reference (same bf16 matmul policy) -----------------------
def reference_forward(tokens, lengths, params):
    x = params['tok_emb'][tokens]                                   # (B, S, D) f32
    B, S, D = x.shape
    pos_bias = t5_relative_position_bias(params['rel_emb'], S)
    key_mask = (jnp.arange(S)[None, :] < lengths[:, None]).astype(jnp.float32)
    bias = pos_bias[None] + (1.0 - key_mask)[:, None, None, :] * jnp.float32(NEG_INF)

    def mm(a, w):   # bf16 operands, f32 accumulation — same precision policy as the kernel
        return jnp.dot(a.astype(jnp.bfloat16), w, preferred_element_type=jnp.float32)

    for li in range(N_LAYERS):
        g = params['ln_g'][li]
        h = _rms_norm(x, g[0])
        qkv = mm(h, params['w_qkv'][li])
        q, k, v = jnp.split(qkv, 3, axis=-1)
        qh = q.reshape(B, S, N_HEADS, HEAD_DIM).astype(jnp.bfloat16)
        kh = k.reshape(B, S, N_HEADS, HEAD_DIM).astype(jnp.bfloat16)
        vh = v.reshape(B, S, N_HEADS, HEAD_DIM).astype(jnp.bfloat16)
        s = jnp.einsum('bqhd,bkhd->bhqk', qh, kh,
                       preferred_element_type=jnp.float32) + bias
        p = jax.nn.softmax(s, axis=-1)
        a = jnp.einsum('bhqk,bkhd->bqhd', p.astype(jnp.bfloat16), vh,
                       preferred_element_type=jnp.float32).reshape(B, S, D)
        x = x + mm(a, params['w_o'][li])
        h2 = _rms_norm(x, g[1])
        ff = mm(h2, params['w_ff_in'][li])
        f = _gelu_new(ff[..., :D_FF]) * ff[..., D_FF:]
        x = x + mm(f, params['w_ff_out'][li])
    return _rms_norm(x, params['ln_f'][0])


if __name__ == "__main__":
    key = jax.random.PRNGKey(0)
    pkey, tkey, lkey = jax.random.split(key, 3)
    params = init_params(pkey)
    tokens = jax.random.randint(tkey, (BATCH, SEQ), 0, VOCAB, dtype=jnp.int32)
    # padding='max_length' => per-sequence valid lengths (attention mask over keys)
    lengths = jax.random.randint(lkey, (BATCH,), 2, SEQ + 1, dtype=jnp.int32)

    z = frozen_t5_embed(tokens, lengths, params)
    z = jax.block_until_ready(z)

    assert z.shape == (BATCH, SEQ, D_MODEL) and z.dtype == jnp.float32
    ref = reference_forward(tokens, lengths, params)
    err = float(jnp.max(jnp.abs(z - ref)))
    # NOTE: pl.reciprocal(approx=True) in the softmax is a deliberate numerical
    # relaxation vs. the exact-softmax reference; bf16 matmul policy is identical.
    if err > 3e-2:
        raise AssertionError(f"Pallas output mismatch vs reference: max abs err {err}")
    print("KERNEL_OK")
</pallas_src>

<mosaic_0001>
module attributes {stable_mosaic.version = 11 : i64} {
  func.func @t5_encoder_kernel(%arg0: i32, %arg1: i32, %arg2: memref<128x128xf32, #tpu.memory_space<vmem>>, %arg3: memref<4x128x128xf32, #tpu.memory_space<vmem>>, %arg4: memref<2x2x128xf32, #tpu.memory_space<vmem>>, %arg5: memref<2x128x384xbf16, #tpu.memory_space<vmem>>, %arg6: memref<2x128x128xbf16, #tpu.memory_space<vmem>>, %arg7: memref<2x128x512xbf16, #tpu.memory_space<vmem>>, %arg8: memref<2x256x128xbf16, #tpu.memory_space<vmem>>, %arg9: memref<1x128xf32, #tpu.memory_space<vmem>>, %arg10: memref<128x128xf32, #tpu.memory_space<vmem>>, %arg11: memref<128x128xf32, #tpu.memory_space<vmem>>, %arg12: memref<128x384xbf16, #tpu.memory_space<vmem>>) attributes {dimension_semantics = [#tpu.dimension_semantics<parallel>, #tpu.dimension_semantics<arbitrary>], iteration_bounds = array<i64: 2, 2>, scalar_prefetch = 0 : i64, scratch_operands = 2 : i64, tpu.core_type = #tpu.core_type<tc>, window_params = [{transform_indices = @transform_0, window_bounds = array<i64: 128, 128>}, {transform_indices = @transform_1, window_bounds = array<i64: 4, 128, 128>}, {pipeline_mode = #tpu.pipeline_mode<synchronous>, transform_indices = @transform_2, window_bounds = array<i64: 2, 2, 128>}, {pipeline_mode = #tpu.pipeline_mode<synchronous>, transform_indices = @transform_3, window_bounds = array<i64: 2, 128, 384>}, {pipeline_mode = #tpu.pipeline_mode<synchronous>, transform_indices = @transform_4, window_bounds = array<i64: 2, 128, 128>}, {pipeline_mode = #tpu.pipeline_mode<synchronous>, transform_indices = @transform_5, window_bounds = array<i64: 2, 128, 512>}, {pipeline_mode = #tpu.pipeline_mode<synchronous>, transform_indices = @transform_6, window_bounds = array<i64: 2, 256, 128>}, {pipeline_mode = #tpu.pipeline_mode<synchronous>, transform_indices = @transform_7, window_bounds = array<i64: 1, 128>}, {transform_indices = @transform_8, window_bounds = array<i64: 128, 128>}]} {
    %c0_i32 = arith.constant 0 : i32
    %0 = arith.cmpi eq, %arg1, %c0_i32 : i32
    %1 = arith.extui %0 : i1 to i32
    %c0_i32_0 = arith.constant 0 : i32
    %2 = arith.cmpi ne, %1, %c0_i32_0 : i32
    scf.if %2 {
      %c0_68 = arith.constant 0 : index
      %c0_69 = arith.constant 0 : index
      %154 = vector.load %arg2[%c0_68, %c0_69] : memref<128x128xf32, #tpu.memory_space<vmem>>, vector<128x128xf32>
      %c0_70 = arith.constant 0 : index
      %c0_71 = arith.constant 0 : index
      %155 = vector.load %arg11[%c0_70, %c0_71] : memref<128x128xf32, #tpu.memory_space<vmem>>, vector<128x128xf32>
      tpu.vector_store %arg11[%c0_70, %c0_71], %154 {strides = array<i32>} : memref<128x128xf32, #tpu.memory_space<vmem>>, vector<128x128xf32>,
    } else {
    }
    %c0 = arith.constant 0 : index
    %c0_1 = arith.constant 0 : index
    %3 = vector.load %arg11[%c0, %c0_1] : memref<128x128xf32, #tpu.memory_space<vmem>>, vector<128x128xf32>
    %4 = arith.index_cast %arg1 : i32 to index
    %c0_2 = arith.constant 0 : index
    %c0_3 = arith.constant 0 : index
    %5 = vector.load %arg4[%4, %c0_2, %c0_3] : memref<2x2x128xf32, #tpu.memory_space<vmem>>, vector<1x2x128xf32>
    %6 = vector.shape_cast %5 : vector<1x2x128xf32> to vector<2x128xf32>
    %7 = vector.extract_strided_slice %6 {offsets = [0, 0], sizes = [1, 128], strides = [1, 1]} : vector<2x128xf32> to vector<1x128xf32>
    %8 = arith.mulf %3, %3 : vector<128x128xf32>
    %cst = arith.constant dense<0.000000e+00> : vector<128xf32>
    %9 = vector.multi_reduction <add>, %8, %cst [1] : vector<128x128xf32> to vector<128xf32>
    %10 = vector.shape_cast %9 : vector<128xf32> to vector<128x1xf32>
    %cst_4 = arith.constant 1.280000e+02 : f32
    %11 = vector.broadcast %cst_4 : f32 to vector<128x1xf32>
    %12 = arith.divf %10, %11 : vector<128x1xf32>
    %cst_5 = arith.constant 9.99999997E-7 : f32
    %13 = vector.broadcast %cst_5 : f32 to vector<128x1xf32>
    %14 = arith.addf %12, %13 : vector<128x1xf32>
    %15 = math.rsqrt %14 : vector<128x1xf32>
    %16 = vector.broadcast %15 : vector<128x1xf32> to vector<128x128xf32>
    %17 = arith.mulf %3, %16 : vector<128x128xf32>
    %18 = vector.broadcast %7 : vector<1x128xf32> to vector<128x128xf32>
    %19 = arith.mulf %17, %18 : vector<128x128xf32>
    %20 = arith.truncf %19 : vector<128x128xf32> to vector<128x128xbf16>
    %21 = arith.index_cast %arg1 : i32 to index
    %c0_6 = arith.constant 0 : index
    %c0_7 = arith.constant 0 : index
    %22 = vector.load %arg5[%21, %c0_6, %c0_7] : memref<2x128x384xbf16, #tpu.memory_space<vmem>>, vector<1x128x384xbf16>
    %23 = vector.shape_cast %22 : vector<1x128x384xbf16> to vector<128x384xbf16>
    %cst_8 = arith.constant dense<0.000000e+00> : vector<128x384xf32>
    %24 = tpu.matmul %20, %23, %cst_8 {dimension_numbers = #tpu.dot_dimension_numbers<[1], [0], [0], [1], [0, 0, 1, 1], [], []>} : vector<128x128xbf16>, vector<128x384xbf16>, vector<128x384xf32> -> vector<128x384xf32>
    %25 = arith.truncf %24 : vector<128x384xf32> to vector<128x384xbf16>
    %c0_9 = arith.constant 0 : index
    %c0_10 = arith.constant 0 : index
    %26 = vector.load %arg12[%c0_9, %c0_10] : memref<128x384xbf16, #tpu.memory_space<vmem>>, vector<128x384xbf16>
    tpu.vector_store %arg12[%c0_9, %c0_10], %25 {strides = array<i32>} : memref<128x384xbf16, #tpu.memory_space<vmem>>, vector<128x384xbf16>,
    %c0_11 = arith.constant 0 : index
    %c0_12 = arith.constant 0 : index
    %27 = vector.load %arg12[%c0_11, %c0_12] : memref<128x384xbf16, #tpu.memory_space<vmem>>, vector<128x32xbf16>
    %c0_13 = arith.constant 0 : index
    %c128 = arith.constant 128 : index
    %28 = vector.load %arg12[%c0_13, %c128] : memref<128x384xbf16, #tpu.memory_space<vmem>>, vector<128x32xbf16>
    %c0_14 = arith.constant 0 : index
    %c256 = arith.constant 256 : index
    %29 = vector.load %arg12[%c0_14, %c256] : memref<128x384xbf16, #tpu.memory_space<vmem>>, vector<128x32xbf16>
    %cst_15 = arith.constant dense<0.000000e+00> : vector<128x128xf32>
    %30 = tpu.matmul %27, %28, %cst_15 {dimension_numbers = #tpu.dot_dimension_numbers<[1], [1], [0], [0], [0, 0, 1, 0], [], []>} : vector<128x32xbf16>, vector<128x32xbf16>, vector<128x128xf32> -> vector<128x128xf32>
    %c0_16 = arith.constant 0 : index
    %c0_17 = arith.constant 0 : index
    %c0_18 = arith.constant 0 : index
    %31 = vector.load %arg3[%c0_16, %c0_17, %c0_18] : memref<4x128x128xf32, #tpu.memory_space<vmem>>, vector<1x128x128xf32>
    %32 = vector.shape_cast %31 : vector<1x128x128xf32> to vector<128x128xf32>
    %33 = arith.addf %30, %32 : vector<128x128xf32>
    %cst_19 = arith.constant dense<0xFF800000> : vector<128xf32>
    %34 = vector.multi_reduction <maximumf>, %33, %cst_19 [1] : vector<128x128xf32> to vector<128xf32>
    %35 = vector.shape_cast %34 : vector<128xf32> to vector<128x1xf32>
    %36 = vector.broadcast %35 : vector<128x1xf32> to vector<128x128xf32>
    %37 = arith.subf %33, %36 : vector<128x128xf32>
    %38 = math.exp %37 : vector<128x128xf32>
    %cst_20 = arith.constant dense<0.000000e+00> : vector<128xf32>
    %39 = vector.multi_reduction <add>, %38, %cst_20 [1] : vector<128x128xf32> to vector<128xf32>
    %40 = vector.shape_cast %39 : vector<128xf32> to vector<128x1xf32>
    %41 = tpu.reciprocal %40 {approx = true} : vector<128x1xf32> -> vector<128x1xf32>
    %42 = vector.broadcast %41 : vector<128x1xf32> to vector<128x128xf32>
    %43 = arith.mulf %38, %42 : vector<128x128xf32>
    %44 = arith.truncf %43 : vector<128x128xf32> to vector<128x128xbf16>
    %cst_21 = arith.constant dense<0.000000e+00> : vector<128x32xf32>
    %45 = tpu.matmul %44, %29, %cst_21 {dimension_numbers = #tpu.dot_dimension_numbers<[1], [0], [0], [1], [0, 0, 1, 1], [], []>} : vector<128x128xbf16>, vector<128x32xbf16>, vector<128x32xf32> -> vector<128x32xf32>
    %c0_22 = arith.constant 0 : index
    %c32 = arith.constant 32 : index
    %46 = vector.load %arg12[%c0_22, %c32] : memref<128x384xbf16, #tpu.memory_space<vmem>>, vector<128x32xbf16>
    %c0_23 = arith.constant 0 : index
    %c160 = arith.constant 160 : index
    %47 = vector.load %arg12[%c0_23, %c160] : memref<128x384xbf16, #tpu.memory_space<vmem>>, vector<128x32xbf16>
    %c0_24 = arith.constant 0 : index
    %c288 = arith.constant 288 : index
    %48 = vector.load %arg12[%c0_24, %c288] : memref<128x384xbf16, #tpu.memory_space<vmem>>, vector<128x32xbf16>
    %cst_25 = arith.constant dense<0.000000e+00> : vector<128x128xf32>
    %49 = tpu.matmul %46, %47, %cst_25 {dimension_numbers = #tpu.dot_dimension_numbers<[1], [1], [0], [0], [0, 0, 1, 0], [], []>} : vector<128x32xbf16>, vector<128x32xbf16>, vector<128x128xf32> -> vector<128x128xf32>
    %c1 = arith.constant 1 : index
    %c0_26 = arith.constant 0 : index
    %c0_27 = arith.constant 0 : index
    %50 = vector.load %arg3[%c1, %c0_26, %c0_27] : memref<4x128x128xf32, #tpu.memory_space<vmem>>, vector<1x128x128xf32>
    %51 = vector.shape_cast %50 : vector<1x128x128xf32> to vector<128x128xf32>
    %52 = arith.addf %49, %51 : vector<128x128xf32>
    %cst_28 = arith.constant dense<0xFF800000> : vector<128xf32>
    %53 = vector.multi_reduction <maximumf>, %52, %cst_28 [1] : vector<128x128xf32> to vector<128xf32>
    %54 = vector.shape_cast %53 : vector<128xf32> to vector<128x1xf32>
    %55 = vector.broadcast %54 : vector<128x1xf32> to vector<128x128xf32>
    %56 = arith.subf %52, %55 : vector<128x128xf32>
    %57 = math.exp %56 : vector<128x128xf32>
    %cst_29 = arith.constant dense<0.000000e+00> : vector<128xf32>
    %58 = vector.multi_reduction <add>, %57, %cst_29 [1] : vector<128x128xf32> to vector<128xf32>
    %59 = vector.shape_cast %58 : vector<128xf32> to vector<128x1xf32>
    %60 = tpu.reciprocal %59 {approx = true} : vector<128x1xf32> -> vector<128x1xf32>
    %61 = vector.broadcast %60 : vector<128x1xf32> to vector<128x128xf32>
    %62 = arith.mulf %57, %61 : vector<128x128xf32>
    %63 = arith.truncf %62 : vector<128x128xf32> to vector<128x128xbf16>
    %cst_30 = arith.constant dense<0.000000e+00> : vector<128x32xf32>
    %64 = tpu.matmul %63, %48, %cst_30 {dimension_numbers = #tpu.dot_dimension_numbers<[1], [0], [0], [1], [0, 0, 1, 1], [], []>} : vector<128x128xbf16>, vector<128x32xbf16>, vector<128x32xf32> -> vector<128x32xf32>
    %c0_31 = arith.constant 0 : index
    %c64 = arith.constant 64 : index
    %65 = vector.load %arg12[%c0_31, %c64] : memref<128x384xbf16, #tpu.memory_space<vmem>>, vector<128x32xbf16>
    %c0_32 = arith.constant 0 : index
    %c192 = arith.constant 192 : index
    %66 = vector.load %arg12[%c0_32, %c192] : memref<128x384xbf16, #tpu.memory_space<vmem>>, vector<128x32xbf16>
    %c0_33 = arith.constant 0 : index
    %c320 = arith.constant 320 : index
    %67 = vector.load %arg12[%c0_33, %c320] : memref<128x384xbf16, #tpu.memory_space<vmem>>, vector<128x32xbf16>
    %cst_34 = arith.constant dense<0.000000e+00> : vector<128x128xf32>
    %68 = tpu.matmul %65, %66, %cst_34 {dimension_numbers = #tpu.dot_dimension_numbers<[1], [1], [0], [0], [0, 0, 1, 0], [], []>} : vector<128x32xbf16>, vector<128x32xbf16>, vector<128x128xf32> -> vector<128x128xf32>
    %c2 = arith.constant 2 : index
    %c0_35 = arith.constant 0 : index
    %c0_36 = arith.constant 0 : index
    %69 = vector.load %arg3[%c2, %c0_35, %c0_36] : memref<4x128x128xf32, #tpu.memory_space<vmem>>, vector<1x128x128xf32>
    %70 = vector.shape_cast %69 : vector<1x128x128xf32> to vector<128x128xf32>
    %71 = arith.addf %68, %70 : vector<128x128xf32>
    %cst_37 = arith.constant dense<0xFF800000> : vector<128xf32>
    %72 = vector.multi_reduction <maximumf>, %71, %cst_37 [1] : vector<128x128xf32> to vector<128xf32>
    %73 = vector.shape_cast %72 : vector<128xf32> to vector<128x1xf32>
    %74 = vector.broadcast %73 : vector<128x1xf32> to vector<128x128xf32>
    %75 = arith.subf %71, %74 : vector<128x128xf32>
    %76 = math.exp %75 : vector<128x128xf32>
    %cst_38 = arith.constant dense<0.000000e+00> : vector<128xf32>
    %77 = vector.multi_reduction <add>, %76, %cst_38 [1] : vector<128x128xf32> to vector<128xf32>
    %78 = vector.shape_cast %77 : vector<128xf32> to vector<128x1xf32>
    %79 = tpu.reciprocal %78 {approx = true} : vector<128x1xf32> -> vector<128x1xf32>
    %80 = vector.broadcast %79 : vector<128x1xf32> to vector<128x128xf32>
    %81 = arith.mulf %76, %80 : vector<128x128xf32>
    %82 = arith.truncf %81 : vector<128x128xf32> to vector<128x128xbf16>
    %cst_39 = arith.constant dense<0.000000e+00> : vector<128x32xf32>
    %83 = tpu.matmul %82, %67, %cst_39 {dimension_numbers = #tpu.dot_dimension_numbers<[1], [0], [0], [1], [0, 0, 1, 1], [], []>} : vector<128x128xbf16>, vector<128x32xbf16>, vector<128x32xf32> -> vector<128x32xf32>
    %c0_40 = arith.constant 0 : index
    %c96 = arith.constant 96 : index
    %84 = vector.load %arg12[%c0_40, %c96] : memref<128x384xbf16, #tpu.memory_space<vmem>>, vector<128x32xbf16>
    %c0_41 = arith.constant 0 : index
    %c224 = arith.constant 224 : index
    %85 = vector.load %arg12[%c0_41, %c224] : memref<128x384xbf16, #tpu.memory_space<vmem>>, vector<128x32xbf16>
    %c0_42 = arith.constant 0 : index
    %c352 = arith.constant 352 : index
    %86 = vector.load %arg12[%c0_42, %c352] : memref<128x384xbf16, #tpu.memory_space<vmem>>, vector<128x32xbf16>
    %cst_43 = arith.constant dense<0.000000e+00> : vector<128x128xf32>
    %87 = tpu.matmul %84, %85, %cst_43 {dimension_numbers = #tpu.dot_dimension_numbers<[1], [1], [0], [0], [0, 0, 1, 0], [], []>} : vector<128x32xbf16>, vector<128x32xbf16>, vector<128x128xf32> -> vector<128x128xf32>
    %c3 = arith.constant 3 : index
    %c0_44 = arith.constant 0 : index
    %c0_45 = arith.constant 0 : index
    %88 = vector.load %arg3[%c3, %c0_44, %c0_45] : memref<4x128x128xf32, #tpu.memory_space<vmem>>, vector<1x128x128xf32>
    %89 = vector.shape_cast %88 : vector<1x128x128xf32> to vector<128x128xf32>
    %90 = arith.addf %87, %89 : vector<128x128xf32>
    %cst_46 = arith.constant dense<0xFF800000> : vector<128xf32>
    %91 = vector.multi_reduction <maximumf>, %90, %cst_46 [1] : vector<128x128xf32> to vector<128xf32>
    %92 = vector.shape_cast %91 : vector<128xf32> to vector<128x1xf32>
    %93 = vector.broadcast %92 : vector<128x1xf32> to vector<128x128xf32>
    %94 = arith.subf %90, %93 : vector<128x128xf32>
    %95 = math.exp %94 : vector<128x128xf32>
    %cst_47 = arith.constant dense<0.000000e+00> : vector<128xf32>
    %96 = vector.multi_reduction <add>, %95, %cst_47 [1] : vector<128x128xf32> to vector<128xf32>
    %97 = vector.shape_cast %96 : vector<128xf32> to vector<128x1xf32>
    %98 = tpu.reciprocal %97 {approx = true} : vector<128x1xf32> -> vector<128x1xf32>
    %99 = vector.broadcast %98 : vector<128x1xf32> to vector<128x128xf32>
    %100 = arith.mulf %95, %99 : vector<128x128xf32>
    %101 = arith.truncf %100 : vector<128x128xf32> to vector<128x128xbf16>
    %cst_48 = arith.constant dense<0.000000e+00> : vector<128x32xf32>
    %102 = tpu.matmul %101, %86, %cst_48 {dimension_numbers = #tpu.dot_dimension_numbers<[1], [0], [0], [1], [0, 0, 1, 1], [], []>} : vector<128x128xbf16>, vector<128x32xbf16>, vector<128x32xf32> -> vector<128x32xf32>
    %103 = tpu.concatenate %45, %64, %83, %102 in 1 : vector<128x32xf32>, vector<128x32xf32>, vector<128x32xf32>, vector<128x32xf32> -> vector<128x128xf32>
    %104 = arith.truncf %103 : vector<128x128xf32> to vector<128x128xbf16>
    %105 = arith.index_cast %arg1 : i32 to index
    %c0_49 = arith.constant 0 : index
    %c0_50 = arith.constant 0 : index
    %106 = vector.load %arg6[%105, %c0_49, %c0_50] : memref<2x128x128xbf16, #tpu.memory_space<vmem>>, vector<1x128x128xbf16>
    %107 = vector.shape_cast %106 : vector<1x128x128xbf16> to vector<128x128xbf16>
    %cst_51 = arith.constant dense<0.000000e+00> : vector<128x128xf32>
    %108 = tpu.matmul %104, %107, %cst_51 {dimension_numbers = #tpu.dot_dimension_numbers<[1], [0], [0], [1], [0, 0, 1, 1], [], []>} : vector<128x128xbf16>, vector<128x128xbf16>, vector<128x128xf32> -> vector<128x128xf32>
    %109 = arith.addf %3, %108 : vector<128x128xf32>
    %110 = vector.extract_strided_slice %6 {offsets = [1, 0], sizes = [1, 128], strides = [1, 1]} : vector<2x128xf32> to vector<1x128xf32>
    %111 = arith.mulf %109, %109 : vector<128x128xf32>
    %cst_52 = arith.constant dense<0.000000e+00> : vector<128xf32>
    %112 = vector.multi_reduction <add>, %111, %cst_52 [1] : vector<128x128xf32> to vector<128xf32>
    %113 = vector.shape_cast %112 : vector<128xf32> to vector<128x1xf32>
    %cst_53 = arith.constant 1.280000e+02 : f32
    %114 = vector.broadcast %cst_53 : f32 to vector<128x1xf32>
    %115 = arith.divf %113, %114 : vector<128x1xf32>
    %cst_54 = arith.constant 9.99999997E-7 : f32
    %116 = vector.broadcast %cst_54 : f32 to vector<128x1xf32>
    %117 = arith.addf %115, %116 : vector<128x1xf32>
    %118 = math.rsqrt %117 : vector<128x1xf32>
    %119 = vector.broadcast %118 : vector<128x1xf32> to vector<128x128xf32>
    %120 = arith.mulf %109, %119 : vector<128x128xf32>
    %121 = vector.broadcast %110 : vector<1x128xf32> to vector<128x128xf32>
    %122 = arith.mulf %120, %121 : vector<128x128xf32>
    %123 = arith.truncf %122 : vector<128x128xf32> to vector<128x128xbf16>
    %124 = arith.index_cast %arg1 : i32 to index
    %c0_55 = arith.constant 0 : index
    %c0_56 = arith.constant 0 : index
    %125 = vector.load %arg7[%124, %c0_55, %c0_56] : memref<2x128x512xbf16, #tpu.memory_space<vmem>>, vector<1x128x512xbf16>
    %126 = vector.shape_cast %125 : vector<1x128x512xbf16> to vector<128x512xbf16>
    %cst_57 = arith.constant dense<0.000000e+00> : vector<128x512xf32>
    %127 = tpu.matmul %123, %126, %cst_57 {dimension_numbers = #tpu.dot_dimension_numbers<[1], [0], [0], [1], [0, 0, 1, 1], [], []>} : vector<128x128xbf16>, vector<128x512xbf16>, vector<128x512xf32> -> vector<128x512xf32>
    %128 = vector.extract_strided_slice %127 {offsets = [0, 0], sizes = [128, 256], strides = [1, 1]} : vector<128x512xf32> to vector<128x256xf32>
    %cst_58 = arith.constant 5.000000e-01 : f32
    %129 = vector.broadcast %cst_58 : f32 to vector<128x256xf32>
    %130 = arith.mulf %129, %128 : vector<128x256xf32>
    %cst_59 = arith.constant 4.471500e-02 : f32
    %131 = vector.broadcast %cst_59 : f32 to vector<128x256xf32>
    %132 = arith.mulf %131, %128 : vector<128x256xf32>
    %133 = arith.mulf %132, %128 : vector<128x256xf32>
    %134 = arith.mulf %133, %128 : vector<128x256xf32>
    %135 = arith.addf %128, %134 : vector<128x256xf32>
    %cst_60 = arith.constant 0.797884583 : f32
    %136 = vector.broadcast %cst_60 : f32 to vector<128x256xf32>
    %137 = arith.mulf %136, %135 : vector<128x256xf32>
    %138 = math.tanh %137 : vector<128x256xf32>
    %cst_61 = arith.constant 1.000000e+00 : f32
    %139 = vector.broadcast %cst_61 : f32 to vector<128x256xf32>
    %140 = arith.addf %139, %138 : vector<128x256xf32>
    %141 = arith.mulf %130, %140 : vector<128x256xf32>
    %142 = vector.extract_strided_slice %127 {offsets = [0, 256], sizes = [128, 256], strides = [1, 1]} : vector<128x512xf32> to vector<128x256xf32>
    %143 = arith.mulf %141, %142 : vector<128x256xf32>
    %144 = arith.truncf %143 : vector<128x256xf32> to vector<128x256xbf16>
    %145 = arith.index_cast %arg1 : i32 to index
    %c0_62 = arith.constant 0 : index
    %c0_63 = arith.constant 0 : index
    %146 = vector.load %arg8[%145, %c0_62, %c0_63] : memref<2x256x128xbf16, #tpu.memory_space<vmem>>, vector<1x256x128xbf16>
    %147 = vector.shape_cast %146 : vector<1x256x128xbf16> to vector<256x128xbf16>
    %cst_64 = arith.constant dense<0.000000e+00> : vector<128x128xf32>
    %148 = tpu.matmul %144, %147, %cst_64 {dimension_numbers = #tpu.dot_dimension_numbers<[1], [0], [0], [1], [0, 0, 1, 1], [], []>} : vector<128x256xbf16>, vector<256x128xbf16>, vector<128x128xf32> -> vector<128x128xf32>
    %149 = arith.addf %109, %148 : vector<128x128xf32>
    %c0_65 = arith.constant 0 : index
    %c0_66 = arith.constant 0 : index
    %150 = vector.load %arg11[%c0_65, %c0_66] : memref<128x128xf32, #tpu.memory_space<vmem>>, vector<128x128xf32>
    tpu.vector_store %arg11[%c0_65, %c0_66], %149 {strides = array<i32>} : memref<128x128xf32, #tpu.memory_space<vmem>>, vector<128x128xf32>,
    %c1_i32 = arith.constant 1 : i32
    %151 = arith.cmpi eq, %arg1, %c1_i32 : i32
    %152 = arith.extui %151 : i1 to i32
    %c0_i32_67 = arith.constant 0 : i32
    %153 = arith.cmpi ne, %152, %c0_i32_67 : i32
    scf.if %153 {
      %c0_68 = arith.constant 0 : index
      %c0_69 = arith.constant 0 : index
      %154 = vector.load %arg9[%c0_68, %c0_69] : memref<1x128xf32, #tpu.memory_space<vmem>>, vector<1x128xf32>
      %155 = arith.mulf %149, %149 : vector<128x128xf32>
      %cst_70 = arith.constant dense<0.000000e+00> : vector<128xf32>
      %156 = vector.multi_reduction <add>, %155, %cst_70 [1] : vector<128x128xf32> to vector<128xf32>
      %157 = vector.shape_cast %156 : vector<128xf32> to vector<128x1xf32>
      %cst_71 = arith.constant 1.280000e+02 : f32
      %158 = vector.broadcast %cst_71 : f32 to vector<128x1xf32>
      %159 = arith.divf %157, %158 : vector<128x1xf32>
      %cst_72 = arith.constant 9.99999997E-7 : f32
      %160 = vector.broadcast %cst_72 : f32 to vector<128x1xf32>
      %161 = arith.addf %159, %160 : vector<128x1xf32>
      %162 = math.rsqrt %161 : vector<128x1xf32>
      %163 = vector.broadcast %162 : vector<128x1xf32> to vector<128x128xf32>
      %164 = arith.mulf %149, %163 : vector<128x128xf32>
      %165 = vector.broadcast %154 : vector<1x128xf32> to vector<128x128xf32>
      %166 = arith.mulf %164, %165 : vector<128x128xf32>
      %c0_73 = arith.constant 0 : index
      %c0_74 = arith.constant 0 : index
      %167 = vector.load %arg10[%c0_73, %c0_74] : memref<128x128xf32, #tpu.memory_space<vmem>>, vector<128x128xf32>
      tpu.vector_store %arg10[%c0_73, %c0_74], %166 {strides = array<i32>} : memref<128x128xf32, #tpu.memory_space<vmem>>, vector<128x128xf32>,
    } else {
    }
    return
  }
  func.func @transform_0(%arg0: i32, %arg1: i32) -> (i32, i32) {
    %c0_i32 = arith.constant 0 : i32
    %c0_i32_0 = arith.constant 0 : i32
    return %arg0, %c0_i32 : i32, i32
  }
  func.func @transform_1(%arg0: i32, %arg1: i32) -> (i32, i32, i32) {
    %c0_i32 = arith.constant 0 : i32
    %c0_i32_0 = arith.constant 0 : i32
    %c0_i32_1 = arith.constant 0 : i32
    return %arg0, %c0_i32, %c0_i32_0 : i32, i32, i32
  }
  func.func @transform_2(%arg0: i32, %arg1: i32) -> (i32, i32, i32) {
    %c0_i32 = arith.constant 0 : i32
    %c0_i32_0 = arith.constant 0 : i32
    %c0_i32_1 = arith.constant 0 : i32
    %c0_i32_2 = arith.constant 0 : i32
    return %c0_i32, %c0_i32_0, %c0_i32_1 : i32, i32, i32
  }
  func.func @transform_3(%arg0: i32, %arg1: i32) -> (i32, i32, i32) {
    %c0_i32 = arith.constant 0 : i32
    %c0_i32_0 = arith.constant 0 : i32
    %c0_i32_1 = arith.constant 0 : i32
    %c0_i32_2 = arith.constant 0 : i32
    return %c0_i32, %c0_i32_0, %c0_i32_1 : i32, i32, i32
  }
  func.func @transform_4(%arg0: i32, %arg1: i32) -> (i32, i32, i32) {
    %c0_i32 = arith.constant 0 : i32
    %c0_i32_0 = arith.constant 0 : i32
    %c0_i32_1 = arith.constant 0 : i32
    %c0_i32_2 = arith.constant 0 : i32
    return %c0_i32, %c0_i32_0, %c0_i32_1 : i32, i32, i32
  }
  func.func @transform_5(%arg0: i32, %arg1: i32) -> (i32, i32, i32) {
    %c0_i32 = arith.constant 0 : i32
    %c0_i32_0 = arith.constant 0 : i32
    %c0_i32_1 = arith.constant 0 : i32
    %c0_i32_2 = arith.constant 0 : i32
    return %c0_i32, %c0_i32_0, %c0_i32_1 : i32, i32, i32
  }
  func.func @transform_6(%arg0: i32, %arg1: i32) -> (i32, i32, i32) {
    %c0_i32 = arith.constant 0 : i32
    %c0_i32_0 = arith.constant 0 : i32
    %c0_i32_1 = arith.constant 0 : i32
    %c0_i32_2 = arith.constant 0 : i32
    return %c0_i32, %c0_i32_0, %c0_i32_1 : i32, i32, i32
  }
  func.func @transform_7(%arg0: i32, %arg1: i32) -> (i32, i32) {
    %c0_i32 = arith.constant 0 : i32
    %c0_i32_0 = arith.constant 0 : i32
    %c0_i32_1 = arith.constant 0 : i32
    return %c0_i32, %c0_i32_0 : i32, i32
  }
  func.func @transform_8(%arg0: i32, %arg1: i32) -> (i32, i32) {
    %c0_i32 = arith.constant 0 : i32
    %c0_i32_0 = arith.constant 0 : i32
    return %arg0, %c0_i32 : i32, i32
  }
}

</mosaic_0001>

<llo_original>
// kernel: tpu_custom_call.1
$region0: #{tpu_custom_call.1}
  #allocation0 [shape = 'u32[]', space=smem, size = 0x4, offset = 0x4, fixed_abs, tag = 'smem constant byte address 0x4 - core index']
  #allocation1 [shape = 'u32[144,128]{1,0:T(1,128)}', space=vmem, size = 0x12000, scoped, tag = 'internal scratch']
  #allocation2 [shape = 'f32[128,128]{1,0:T(8,128)}', space=vmem, size = 0x10000, scoped, tag = 'scratch operand']
  #allocation3 [shape = 'bf16[128,384]{1,0:T(8,128)(2,1)}', space=vmem, size = 0x18000, scoped, tag = 'scratch operand']
  %s0 = inlined_call_operand.hbm [shape: f32[256,128], index: 0, kind: input, shape index: {}]
  %s1 = inlined_call_operand.hbm [shape: f32[8,128,128], index: 1, kind: input, shape index: {}]
  %s2 = inlined_call_operand.hbm [shape: f32[2,2,128], index: 2, kind: input, shape index: {}]
  %s3 = inlined_call_operand.hbm [shape: bf16[2,128,384], index: 3, kind: input, shape index: {}]
  %s4 = inlined_call_operand.hbm [shape: bf16[2,128,128], index: 4, kind: input, shape index: {}]
  %s5 = inlined_call_operand.hbm [shape: bf16[2,128,512], index: 5, kind: input, shape index: {}]
  %s6 = inlined_call_operand.hbm [shape: bf16[2,256,128], index: 6, kind: input, shape index: {}]
  %s7 = inlined_call_operand.vmem [shape: f32[1,128], index: 7, kind: input, shape index: {}]
  %s8 = inlined_call_operand.hbm [shape: f32[256,128], index: 8, kind: output, shape index: {}]
  %s9 = sld [smem:[#allocation0]]
  $region101: #{tpu_custom_call.1} parent=0
    _
  %s11 = ssub.s32 1, %s9
  %s12 = scalar_select 0, %s11, %s9
  $region1: #{tpu_custom_call.1} parent=0
    #allocation4 [shape = 'u8[131072]{0}', space=vmem, size = 0x20000, scoped, tag = 'input window, operand 0']
    #allocation5 [shape = 's32[2]{0}', space=sflag, size = 0x8, scoped, tag = 'scoped memory for tpu_custom_call.1']
    #allocation6 [shape = 's32[2]{0}', space=sflag, size = 0x8, scoped, tag = 'scoped memory for tpu_custom_call.1']
    #allocation7 [shape = 'u8[524288]{0}', space=vmem, size = 0x80000, scoped, tag = 'input window, operand 1']
    #allocation8 [shape = 's32[2]{0}', space=sflag, size = 0x8, scoped, tag = 'scoped memory for tpu_custom_call.1']
    #allocation9 [shape = 'u8[2048]{0}', space=vmem, size = 0x800, scoped, tag = 'input window, operand 2, single buffered']
    #allocation10 [shape = 'u8[196608]{0}', space=vmem, size = 0x30000, scoped, tag = 'input window, operand 3, single buffered']
    #allocation11 [shape = 's32[1]{0}', space=sflag, size = 0x4, scoped, tag = 'scoped memory for tpu_custom_call.1']
    #allocation12 [shape = 'u8[65536]{0}', space=vmem, size = 0x10000, scoped, tag = 'input window, operand 4, single buffered']
    #allocation13 [shape = 'u8[262144]{0}', space=vmem, size = 0x40000, scoped, tag = 'input window, operand 5, single buffered']
    #allocation14 [shape = 's32[1]{0}', space=sflag, size = 0x4, scoped, tag = 'scoped memory for tpu_custom_call.1']
    #allocation15 [shape = 'u8[131072]{0}', space=vmem, size = 0x20000, scoped, tag = 'input window, operand 6, single buffered']
    #allocation16 [shape = 'u8[131072]{0}', space=vmem, size = 0x20000, scoped, tag = 'output window, operand 0']
    %13 = vsyncpa [#allocation5], 0
    %s14 = scalar_lea.sflag [#allocation5], 1
    %15 = vsyncpa %s14, 0
    %16 = vsyncpa [#allocation8], 0
    %s17 = scalar_lea.sflag [#allocation8], 1
    %18 = vsyncpa %s17, 0
    %19 = vsyncpa [#allocation11], 0
    %20 = vsyncpa [#allocation14], 0
    %21 = vsyncpa [#allocation6], 0
    %s22 = scalar_lea.sflag [#allocation6], 1
    %23 = vsyncpa %s22, 0
    loop: start=0, step=1, limit=6
    $region2: #{tpu_custom_call.1} parent=1 // loop_pre_header
      _
    $region3: #{tpu_custom_call.1} parent=1 // loop_header
      %s25 = sphi 0, %s29
      %p26 = scmp.ge.s32.totalorder %s25, 6
      %s32 = sphi 0, %s44
      %s33 = sphi 0, %s40
      %s34 = sphi 0, %s32
      %s35 = sphi 0, %s33
      %s36 = sphi 0, %s34
      %s37 = sphi 0, %s35
      %s47 = sphi 0, %s49
      %s50 = sphi 0, %s47
      %s51 = sphi 0, %s50
      %s67 = sphi 0, %s51
      %s73 = sphi 0, %s75
      %s76 = sphi 0, %s73
      %s77 = sphi 0, %s76
      %s93 = sphi 0, %s77
      %s97 = sphi 0, %s97
      %s99 = sphi 0, %s97
      %s100 = sphi 0, %s99
      %s114 = sphi 0, %s100
      %s118 = sphi 0, %s118
      %s120 = sphi 0, %s118
      %s121 = sphi 0, %s120
      %s135 = sphi 0, %s121
      %s139 = sphi 0, %s139
      %s141 = sphi 0, %s139
      %s142 = sphi 0, %s141
      %s156 = sphi 0, %s142
      %s160 = sphi 0, %s160
      %s162 = sphi 0, %s160
      %s163 = sphi 0, %s162
      %s177 = sphi 0, %s163
      %s181 = sphi 0, %s181
      %s183 = sphi 0, %s181
      %s184 = sphi 0, %s183
      %s198 = sphi 0, %s184
      %s202 = sphi 0, %s202
      %s204 = sphi 0, %s202
      %s205 = sphi 0, %s204
      %s219 = sphi 0, %s205
      %s225 = sphi 0, %s227
      %s228 = sphi 0, %s225
      %s229 = sphi 0, %s228
      %s245 = sphi 0, %s229
    $region4: #{tpu_custom_call.1} parent=1 // loop_header_branch
      %28 = sbr.rel (%p26) target = $region8
    $region5: #{tpu_custom_call.1} parent=1 // loop_body
      %s30 = ssub.s32 %s25, 1
      %s31 = ssub.s32 %s25, 2
      %s38 = sadd.s32 1, %s33
      %p39 = scmp.ge.s32.totalorder %s38, 2
      %s40 = scalar_select %p39, 0, %s38
      %s41 = sadd.s32 1, %s32
      %s42 = scalar_select %p39, %s41, %s32
      %p43 = scmp.ge.s32.totalorder %s42, 2
      %s44 = scalar_select %p43, 0, %s42
      %s45 = ssub.s32 %s32, %s44
      %p46 = scmp.eq.s32.totalorder %s45, 0
      %s48 = sadd.s32 %s47, 1
      %s49 = scalar_select %p46, %s47, %s48
      %p52 = pneg %p46
      %p53 = scmp.eq.s32.totalorder %s25, 3
      %p54 = por %p52, %p53
      %p55 = scmp.ne.s32.totalorder %s47, %s50
      %p56 = scmp.eq.s32.totalorder %s25, 0
      %p57 = por %p55, %p56
      %p58 = scmp.ne.s32.totalorder %s47, %s50
      %p59 = scmp.eq.s32.totalorder %s30, 3
      %p60 = por %p58, %p59
      %p61 = scmp.ne.s32.totalorder %s50, %s51
      %p62 = scmp.eq.s32.totalorder %s30, 0
      %p63 = por %p61, %p62
      %p64 = scmp.ne.s32.totalorder %s50, %s51
      %p65 = scmp.eq.s32.totalorder %s31, 3
      %p66 = por %p64, %p65
      %p68 = scmp.ne.s32.totalorder %s51, %s67
      %p69 = scmp.eq.s32.totalorder %s31, 0
      %p70 = por %p68, %p69
      %s71 = ssub.s32 %s32, %s44
      %p72 = scmp.eq.s32.totalorder %s71, 0
      %s74 = sadd.s32 %s73, 1
      %s75 = scalar_select %p72, %s73, %s74
      %p78 = pneg %p72
      %p79 = scmp.eq.s32.totalorder %s25, 3
      %p80 = por %p78, %p79
      %p81 = scmp.ne.s32.totalorder %s73, %s76
      %p82 = scmp.eq.s32.totalorder %s25, 0
      %p83 = por %p81, %p82
      %p84 = scmp.ne.s32.totalorder %s73, %s76
      %p85 = scmp.eq.s32.totalorder %s30, 3
      %p86 = por %p84, %p85
      %p87 = scmp.ne.s32.totalorder %s76, %s77
      %p88 = scmp.eq.s32.totalorder %s30, 0
      %p89 = por %p87, %p88
      %p90 = scmp.ne.s32.totalorder %s76, %s77
      %p91 = scmp.eq.s32.totalorder %s31, 3
      %p92 = por %p90, %p91
      %p94 = scmp.ne.s32.totalorder %s77, %s93
      %p95 = scmp.eq.s32.totalorder %s31, 0
      %p96 = por %p94, %p95
      %s98 = sadd.s32 %s97, 1
      %p101 = scmp.eq.s32.totalorder %s25, 3
      %p102 = scmp.ne.s32.totalorder %s97, %s99
      %p103 = scmp.eq.s32.totalorder %s25, 0
      %p104 = por %p102, %p103
      %p105 = scmp.ne.s32.totalorder %s97, %s99
      %p106 = scmp.eq.s32.totalorder %s30, 3
      %p107 = por %p105, %p106
      %p108 = scmp.ne.s32.totalorder %s99, %s100
      %p109 = scmp.eq.s32.totalorder %s30, 0
      %p110 = por %p108, %p109
      %p111 = scmp.ne.s32.totalorder %s99, %s100
      %p112 = scmp.eq.s32.totalorder %s31, 3
      %p113 = por %p111, %p112
      %p115 = scmp.ne.s32.totalorder %s100, %s114
      %p116 = scmp.eq.s32.totalorder %s31, 0
      %p117 = por %p115, %p116
      %s119 = sadd.s32 %s118, 1
      %p122 = scmp.eq.s32.totalorder %s25, 3
      %p123 = scmp.ne.s32.totalorder %s118, %s120
      %p124 = scmp.eq.s32.totalorder %s25, 0
      %p125 = por %p123, %p124
      %p126 = scmp.ne.s32.totalorder %s118, %s120
      %p127 = scmp.eq.s32.totalorder %s30, 3
      %p128 = por %p126, %p127
      %p129 = scmp.ne.s32.totalorder %s120, %s121
      %p130 = scmp.eq.s32.totalorder %s30, 0
      %p131 = por %p129, %p130
      %p132 = scmp.ne.s32.totalorder %s120, %s121
      %p133 = scmp.eq.s32.totalorder %s31, 3
      %p134 = por %p132, %p133
      %p136 = scmp.ne.s32.totalorder %s121, %s135
      %p137 = scmp.eq.s32.totalorder %s31, 0
      %p138 = por %p136, %p137
      %s140 = sadd.s32 %s139, 1
      %p143 = scmp.eq.s32.totalorder %s25, 3
      %p144 = scmp.ne.s32.totalorder %s139, %s141
      %p145 = scmp.eq.s32.totalorder %s25, 0
      %p146 = por %p144, %p145
      %p147 = scmp.ne.s32.totalorder %s139, %s141
      %p148 = scmp.eq.s32.totalorder %s30, 3
      %p149 = por %p147, %p148
      %p150 = scmp.ne.s32.totalorder %s141, %s142
      %p151 = scmp.eq.s32.totalorder %s30, 0
      %p152 = por %p150, %p151
      %p153 = scmp.ne.s32.totalorder %s141, %s142
      %p154 = scmp.eq.s32.totalorder %s31, 3
      %p155 = por %p153, %p154
      %p157 = scmp.ne.s32.totalorder %s142, %s156
      %p158 = scmp.eq.s32.totalorder %s31, 0
      %p159 = por %p157, %p158
      %s161 = sadd.s32 %s160, 1
      %p164 = scmp.eq.s32.totalorder %s25, 3
      %p165 = scmp.ne.s32.totalorder %s160, %s162
      %p166 = scmp.eq.s32.totalorder %s25, 0
      %p167 = por %p165, %p166
      %p168 = scmp.ne.s32.totalorder %s160, %s162
      %p169 = scmp.eq.s32.totalorder %s30, 3
      %p170 = por %p168, %p169
      %p171 = scmp.ne.s32.totalorder %s162, %s163
      %p172 = scmp.eq.s32.totalorder %s30, 0
      %p173 = por %p171, %p172
      %p174 = scmp.ne.s32.totalorder %s162, %s163
      %p175 = scmp.eq.s32.totalorder %s31, 3
      %p176 = por %p174, %p175
      %p178 = scmp.ne.s32.totalorder %s163, %s177
      %p179 = scmp.eq.s32.totalorder %s31, 0
      %p180 = por %p178, %p179
      %s182 = sadd.s32 %s181, 1
      %p185 = scmp.eq.s32.totalorder %s25, 3
      %p186 = scmp.ne.s32.totalorder %s181, %s183
      %p187 = scmp.eq.s32.totalorder %s25, 0
      %p188 = por %p186, %p187
      %p189 = scmp.ne.s32.totalorder %s181, %s183
      %p190 = scmp.eq.s32.totalorder %s30, 3
      %p191 = por %p189, %p190
      %p192 = scmp.ne.s32.totalorder %s183, %s184
      %p193 = scmp.eq.s32.totalorder %s30, 0
      %p194 = por %p192, %p193
      %p195 = scmp.ne.s32.totalorder %s183, %s184
      %p196 = scmp.eq.s32.totalorder %s31, 3
      %p197 = por %p195, %p196
      %p199 = scmp.ne.s32.totalorder %s184, %s198
      %p200 = scmp.eq.s32.totalorder %s31, 0
      %p201 = por %p199, %p200
      %s203 = sadd.s32 %s202, 1
      %p206 = scmp.eq.s32.totalorder %s25, 3
      %p207 = scmp.ne.s32.totalorder %s202, %s204
      %p208 = scmp.eq.s32.totalorder %s25, 0
      %p209 = por %p207, %p208
      %p210 = scmp.ne.s32.totalorder %s202, %s204
      %p211 = scmp.eq.s32.totalorder %s30, 3
      %p212 = por %p210, %p211
      %p213 = scmp.ne.s32.totalorder %s204, %s205
      %p214 = scmp.eq.s32.totalorder %s30, 0
      %p215 = por %p213, %p214
      %p216 = scmp.ne.s32.totalorder %s204, %s205
      %p217 = scmp.eq.s32.totalorder %s31, 3
      %p218 = por %p216, %p217
      %p220 = scmp.ne.s32.totalorder %s205, %s219
      %p221 = scmp.eq.s32.totalorder %s31, 0
      %p222 = por %p220, %p221
      %s223 = ssub.s32 %s32, %s44
      %p224 = scmp.eq.s32.totalorder %s223, 0
      %s226 = sadd.s32 %s225, 1
      %s227 = scalar_select %p224, %s225, %s226
      %p230 = pneg %p224
      %p231 = scmp.eq.s32.totalorder %s25, 3
      %p232 = por %p230, %p231
      %p233 = scmp.ne.s32.totalorder %s225, %s228
      %p234 = scmp.eq.s32.totalorder %s25, 0
      %p235 = por %p233, %p234
      %p236 = scmp.ne.s32.totalorder %s225, %s228
      %p237 = scmp.eq.s32.totalorder %s30, 3
      %p238 = por %p236, %p237
      %p239 = scmp.ne.s32.totalorder %s228, %s229
      %p240 = scmp.eq.s32.totalorder %s30, 0
      %p241 = por %p239, %p240
      %p242 = scmp.ne.s32.totalorder %s228, %s229
      %p243 = scmp.eq.s32.totalorder %s31, 3
      %p244 = por %p242, %p243
      %p246 = scmp.ne.s32.totalorder %s229, %s245
      %p247 = scmp.eq.s32.totalorder %s31, 0
      %p248 = por %p246, %p247
      %p249 = scmp.le.s32.totalorder 1, %s25
      %p250 = scmp.lt.s32.totalorder %s25, 5
      %p251 = pnand %p249, %p250
      %p252 = pneg %p251
      // Predicated region
      $region9: #{tpu_custom_call.1} parent=5 // pred_check
        _
      $region10: #{tpu_custom_call.1} parent=5 // pred_check_branch
        %254 = sbr.rel (%p251) target = $region12
      $region11: #{tpu_custom_call.1} parent=5 // pred_region
        %s255 = ssub.s32 %s25, 1
        // Predicated region
        $region13: #{tpu_custom_call.1} parent=11 // pred_check
          %p256 = pneg %p110
        $region14: #{tpu_custom_call.1} parent=11 // pred_check_branch
          %258 = sbr.rel (%p256) target = $region16
        $region15: #{tpu_custom_call.1} parent=11 // pred_region
          %s260 = ssub.s32 64, 64
          %261 = vsyncadd [#allocation8], %s260
          %s262 = sshll.u32 [#allocation9], 4
          %s263 = int_to_ptr.vmem [resolvable:$true] %s262
          %268 = dma.hbm_to_vmem [thread:$0]  %s2, 64, %s263, [#allocation8], 32, 32, 2
        $region16: #{tpu_custom_call.1} parent=11 // pred_fallthru
          _
        // Predicated region
        $region17: #{tpu_custom_call.1} parent=11 // pred_check
          %p269 = pneg %p131
        $region18: #{tpu_custom_call.1} parent=11 // pred_check_branch
          %271 = sbr.rel (%p269) target = $region20
        $region19: #{tpu_custom_call.1} parent=11 // pred_region
          %s273 = ssub.s32 6144, 6144
          %274 = vsyncadd [#allocation11], %s273
          %s275 = sshll.u32 [#allocation10], 4
          %s276 = int_to_ptr.vmem [resolvable:$true] %s275
          %281 = dma.hbm_to_vmem [thread:$0]  %s3, 6144, %s276, [#allocation11], 192, 192, 12
        $region20: #{tpu_custom_call.1} parent=11 // pred_fallthru
          _
        // Predicated region
        $region21: #{tpu_custom_call.1} parent=11 // pred_check
          %p282 = pneg %p152
        $region22: #{tpu_custom_call.1} parent=11 // pred_check_branch
          %284 = sbr.rel (%p282) target = $region24
        $region23: #{tpu_custom_call.1} parent=11 // pred_region
          %s286 = ssub.s32 2048, 2048
          %287 = vsyncadd [#allocation11], %s286
          %s288 = sshll.u32 [#allocation12], 4
          %s289 = int_to_ptr.vmem [resolvable:$true] %s288
          %294 = dma.hbm_to_vmem [thread:$0]  %s4, 2048, %s289, [#allocation11], 64, 64, 4
        $region24: #{tpu_custom_call.1} parent=11 // pred_fallthru
          _
        // Predicated region
        $region25: #{tpu_custom_call.1} parent=11 // pred_check
          %p295 = pneg %p173
        $region26: #{tpu_custom_call.1} parent=11 // pred_check_branch
          %297 = sbr.rel (%p295) target = $region28
        $region27: #{tpu_custom_call.1} parent=11 // pred_region
          %s299 = ssub.s32 8192, 8192
          %300 = vsyncadd [#allocation14], %s299
          %s301 = sshll.u32 [#allocation13], 4
          %s302 = int_to_ptr.vmem [resolvable:$true] %s301
          %307 = dma.hbm_to_vmem [thread:$0]  %s5, 8192, %s302, [#allocation14], 256, 256, 16
        $region28: #{tpu_custom_call.1} parent=11 // pred_fallthru
          _
        // Predicated region
        $region29: #{tpu_custom_call.1} parent=11 // pred_check
          %p308 = pneg %p194
        $region30: #{tpu_custom_call.1} parent=11 // pred_check_branch
          %310 = sbr.rel (%p308) target = $region32
        $region31: #{tpu_custom_call.1} parent=11 // pred_region
          %s312 = ssub.s32 4096, 4096
          %313 = vsyncadd [#allocation14], %s312
          %s314 = sshll.u32 [#allocation15], 4
          %s315 = int_to_ptr.vmem [resolvable:$true] %s314
          %320 = dma.hbm_to_vmem [thread:$0]  %s6, 4096, %s315, [#allocation14], 64, 64, 4
        $region32: #{tpu_custom_call.1} parent=11 // pred_fallthru
          _
        // Predicated region
        $region33: #{tpu_custom_call.1} parent=11 // pred_check
          %p321 = pneg %p215
        $region34: #{tpu_custom_call.1} parent=11 // pred_check_branch
          %323 = sbr.rel (%p321) target = $region36
        $region35: #{tpu_custom_call.1} parent=11 // pred_region
          _
        $region36: #{tpu_custom_call.1} parent=11 // pred_fallthru
          _
      $region12: #{tpu_custom_call.1} parent=5 // pred_fallthru
        _
      %p324 = scmp.lt.s32.totalorder %s25, 4
      // Predicated region
      $region37: #{tpu_custom_call.1} parent=5 // pred_check
        %p325 = pneg %p324
      $region38: #{tpu_custom_call.1} parent=5 // pred_check_branch
        %327 = sbr.rel (%p325) target = $region40
      $region39: #{tpu_custom_call.1} parent=5 // pred_region
        // Predicated region
        $region41: #{tpu_custom_call.1} parent=39 // pred_check
          %p328 = pneg %p57
        $region42: #{tpu_custom_call.1} parent=39 // pred_check_branch
          %330 = sbr.rel (%p328) target = $region44
        $region43: #{tpu_custom_call.1} parent=39 // pred_region
          %s331 = sand.u32 %s47, 1
          %s332 = scalar_lea.sflag [#allocation5], %s331
          %s333 = sand.u32 %s47, 1
          %s334 = smul.addr %s333, 128
          %s335 = scalar_lea.vmem [#allocation4], %s334
          %s336 = smul.u32 16, %s32
          %s338 = ssub.s32 2048, 2048
          %339 = vsyncadd %s332, %s338
          %s340 = smul.addr %s336, 128
          %s341 = scalar_lea.hbm %s0, %s340
          %s342 = sshll.u32 %s335, 4
          %s343 = int_to_ptr.vmem [resolvable:$true] %s342
          %348 = dma.hbm_to_vmem [thread:$0]  %s341, 2048, %s343, %s332, 128, 128, 8
        $region44: #{tpu_custom_call.1} parent=39 // pred_fallthru
          _
        // Predicated region
        $region45: #{tpu_custom_call.1} parent=39 // pred_check
          %p349 = pneg %p83
        $region46: #{tpu_custom_call.1} parent=39 // pred_check_branch
          %351 = sbr.rel (%p349) target = $region48
        $region47: #{tpu_custom_call.1} parent=39 // pred_region
          %s352 = sand.u32 %s25, 1
          %s353 = scalar_lea.sflag [#allocation8], %s352
          %s354 = sand.u32 %s73, 1
          %s355 = smul.addr %s354, 512
          %s356 = scalar_lea.vmem [#allocation7], %s355
          %s357 = smul.u32 4, %s32
          %s359 = ssub.s32 8192, 8192
          %360 = vsyncadd %s353, %s359
          %s361 = smul.addr %s357, 16
          %s362 = smul.addr %s361, 128
          %s363 = scalar_lea.hbm %s1, %s362
          %s364 = sshll.u32 %s356, 4
          %s365 = int_to_ptr.vmem [resolvable:$true] %s364
          %370 = dma.hbm_to_vmem [thread:$0]  %s363, 8192, %s365, %s353, 128, 128, 8
        $region48: #{tpu_custom_call.1} parent=39 // pred_fallthru
          _
      $region40: #{tpu_custom_call.1} parent=5 // pred_fallthru
        _
      %p371 = scmp.le.s32.totalorder 1, %s25
      %p372 = scmp.lt.s32.totalorder %s25, 5
      %p373 = pnand %p371, %p372
      %p374 = pneg %p373
      // Predicated region
      $region49: #{tpu_custom_call.1} parent=5 // pred_check
        _
      $region50: #{tpu_custom_call.1} parent=5 // pred_check_branch
        %376 = sbr.rel (%p373) target = $region52
      $region51: #{tpu_custom_call.1} parent=5 // pred_region
        %s377 = ssub.s32 %s25, 1
        %s378 = sand.u32 %s50, 1
        %s379 = scalar_lea.sflag [#allocation5], %s378
        %s380 = sand.u32 %s50, 1
        %s381 = smul.addr %s380, 128
        %s382 = scalar_lea.vmem [#allocation4], %s381
        // Predicated region
        $region53: #{tpu_custom_call.1} parent=51 // pred_check
          %p383 = pneg %p63
        $region54: #{tpu_custom_call.1} parent=51 // pred_check_branch
          %385 = sbr.rel (%p383) target = $region56
        $region55: #{tpu_custom_call.1} parent=51 // pred_region
          %386 = dma.done %s379, 2048
        $region56: #{tpu_custom_call.1} parent=51 // pred_fallthru
          _
        %s387 = sand.u32 %s30, 1
        %s388 = scalar_lea.sflag [#allocation8], %s387
        %s389 = sand.u32 %s76, 1
        %s390 = smul.addr %s389, 512
        %s391 = scalar_lea.vmem [#allocation7], %s390
        // Predicated region
        $region57: #{tpu_custom_call.1} parent=51 // pred_check
          %p392 = pneg %p89
        $region58: #{tpu_custom_call.1} parent=51 // pred_check_branch
          %394 = sbr.rel (%p392) target = $region60
        $region59: #{tpu_custom_call.1} parent=51 // pred_region
          %395 = dma.done %s388, 8192
        $region60: #{tpu_custom_call.1} parent=51 // pred_fallthru
          _
        // Predicated region
        $region61: #{tpu_custom_call.1} parent=51 // pred_check
          %p396 = pneg %p110
        $region62: #{tpu_custom_call.1} parent=51 // pred_check_branch
          %398 = sbr.rel (%p396) target = $region64
        $region63: #{tpu_custom_call.1} parent=51 // pred_region
          %399 = dma.done [#allocation8], 64
        $region64: #{tpu_custom_call.1} parent=51 // pred_fallthru
          _
        // Predicated region
        $region65: #{tpu_custom_call.1} parent=51 // pred_check
          %p400 = pneg %p131
        $region66: #{tpu_custom_call.1} parent=51 // pred_check_branch
          %402 = sbr.rel (%p400) target = $region68
        $region67: #{tpu_custom_call.1} parent=51 // pred_region
          %403 = dma.done [#allocation11], 6144
        $region68: #{tpu_custom_call.1} parent=51 // pred_fallthru
          _
        // Predicated region
        $region69: #{tpu_custom_call.1} parent=51 // pred_check
          %p404 = pneg %p152
        $region70: #{tpu_custom_call.1} parent=51 // pred_check_branch
          %406 = sbr.rel (%p404) target = $region72
        $region71: #{tpu_custom_call.1} parent=51 // pred_region
          %407 = dma.done [#allocation11], 2048
        $region72: #{tpu_custom_call.1} parent=51 // pred_fallthru
          _
        // Predicated region
        $region73: #{tpu_custom_call.1} parent=51 // pred_check
          %p408 = pneg %p173
        $region74: #{tpu_custom_call.1} parent=51 // pred_check_branch
          %410 = sbr.rel (%p408) target = $region76
        $region75: #{tpu_custom_call.1} parent=51 // pred_region
          %411 = dma.done [#allocation14], 8192
        $region76: #{tpu_custom_call.1} parent=51 // pred_fallthru
          _
        // Predicated region
        $region77: #{tpu_custom_call.1} parent=51 // pred_check
          %p412 = pneg %p194
        $region78: #{tpu_custom_call.1} parent=51 // pred_check_branch
          %414 = sbr.rel (%p412) target = $region80
        $region79: #{tpu_custom_call.1} parent=51 // pred_region
          %415 = dma.done [#allocation14], 4096
        $region80: #{tpu_custom_call.1} parent=51 // pred_fallthru
          _
        %s416 = sand.u32 %s50, 1
        %s417 = scalar_lea.sflag [#allocation5], %s416
        %s418 = sand.u32 %s50, 1
        %s419 = smul.addr %s418, 128
        %s420 = scalar_lea.vmem [#allocation4], %s419
        %p421 = pneg %p63
        %p422 = pneg %p60
        %s423 = sand.u32 %s30, 1
        %s424 = scalar_lea.sflag [#allocation8], %s423
        %s425 = sand.u32 %s76, 1
        %s426 = smul.addr %s425, 512
        %s427 = scalar_lea.vmem [#allocation7], %s426
        %p428 = pneg %p89
        %p429 = pneg %p86
        %p430 = pneg %p110
        %p431 = pneg %p107
        %p432 = pneg %p131
        %p433 = pneg %p128
        %p434 = pneg %p152
        %p435 = pneg %p149
        %p436 = pneg %p173
        %p437 = pneg %p170
        %p438 = pneg %p194
        %p439 = pneg %p191
        %p440 = pneg %p215
        %p441 = pneg %p212
        %p442 = pneg %p241
        %p443 = pneg %p238
        %s444 = sand.u32 %s228, 1
        %s445 = scalar_lea.sflag [#allocation6], %s444
        %s446 = sand.u32 %s228, 1
        %s447 = smul.addr %s446, 128
        %s448 = scalar_lea.vmem [#allocation16], %s447
        %s449 = smul.u32 16, %s34
        %s450 = smul.u32 4, %s34
        %s451 = smul.u32 16, %s34
        %p453 = scmp.eq.s32.totalorder %s35, 0
        // Predicated region
        $region81: #{tpu_custom_call.1} parent=51 // pred_check
          %p454 = pneg %p453
        $region82: #{tpu_custom_call.1} parent=51 // pred_check_branch
          %456 = sbr.rel (%p454) target = $region84
        $region83: #{tpu_custom_call.1} parent=51 // pred_region
          %v457 = vld [vmem:[%s382] sm:$0xff]
          %v458 = vld [vmem:[%s382 + $0x8] sm:$0xff]
          %v459 = vld [vmem:[%s382 + $0x10] sm:$0xff]
          %v460 = vld [vmem:[%s382 + $0x18] sm:$0xff]
          %v461 = vld [vmem:[%s382 + $0x20] sm:$0xff]
          %v462 = vld [vmem:[%s382 + $0x28] sm:$0xff]
          %v463 = vld [vmem:[%s382 + $0x30] sm:$0xff]
          %v464 = vld [vmem:[%s382 + $0x38] sm:$0xff]
          %v465 = vld [vmem:[%s382 + $0x40] sm:$0xff]
          %v466 = vld [vmem:[%s382 + $0x48] sm:$0xff]
          %v467 = vld [vmem:[%s382 + $0x50] sm:$0xff]
          %v468 = vld [vmem:[%s382 + $0x58] sm:$0xff]
          %v469 = vld [vmem:[%s382 + $0x60] sm:$0xff]
          %v470 = vld [vmem:[%s382 + $0x68] sm:$0xff]
          %v471 = vld [vmem:[%s382 + $0x70] sm:$0xff]
          %v472 = vld [vmem:[%s382 + $0x78] sm:$0xff]
          %473 = vst [vmem:[#allocation2] sm:$0xff] %v457
          %474 = vst [vmem:[#allocation2 + $0x8] sm:$0xff] %v458
          %475 = vst [vmem:[#allocation2 + $0x10] sm:$0xff] %v459
          %476 = vst [vmem:[#allocation2 + $0x18] sm:$0xff] %v460
          %477 = vst [vmem:[#allocation2 + $0x20] sm:$0xff] %v461
          %478 = vst [vmem:[#allocation2 + $0x28] sm:$0xff] %v462
          %479 = vst [vmem:[#allocation2 + $0x30] sm:$0xff] %v463
          %480 = vst [vmem:[#allocation2 + $0x38] sm:$0xff] %v464
          %481 = vst [vmem:[#allocation2 + $0x40] sm:$0xff] %v465
          %482 = vst [vmem:[#allocation2 + $0x48] sm:$0xff] %v466
          %483 = vst [vmem:[#allocation2 + $0x50] sm:$0xff] %v467
          %484 = vst [vmem:[#allocation2 + $0x58] sm:$0xff] %v468
          %485 = vst [vmem:[#allocation2 + $0x60] sm:$0xff] %v469
          %486 = vst [vmem:[#allocation2 + $0x68] sm:$0xff] %v470
          %487 = vst [vmem:[#allocation2 + $0x70] sm:$0xff] %v471
          %488 = vst [vmem:[#allocation2 + $0x78] sm:$0xff] %v472
        $region84: #{tpu_custom_call.1} parent=51 // pred_fallthru
          _
        %v489 = vld [vmem:[#allocation2] sm:$0xff]
        %v490 = vld [vmem:[#allocation2 + $0x8] sm:$0xff]
        %v491 = vld [vmem:[#allocation2 + $0x10] sm:$0xff]
        %v492 = vld [vmem:[#allocation2 + $0x18] sm:$0xff]
        %v493 = vld [vmem:[#allocation2 + $0x20] sm:$0xff]
        %v494 = vld [vmem:[#allocation2 + $0x28] sm:$0xff]
        %v495 = vld [vmem:[#allocation2 + $0x30] sm:$0xff]
        %v496 = vld [vmem:[#allocation2 + $0x38] sm:$0xff]
        %v497 = vld [vmem:[#allocation2 + $0x40] sm:$0xff]
        %v498 = vld [vmem:[#allocation2 + $0x48] sm:$0xff]
        %v499 = vld [vmem:[#allocation2 + $0x50] sm:$0xff]
        %v500 = vld [vmem:[#allocation2 + $0x58] sm:$0xff]
        %v501 = vld [vmem:[#allocation2 + $0x60] sm:$0xff]
        %v502 = vld [vmem:[#allocation2 + $0x68] sm:$0xff]
        %v503 = vld [vmem:[#allocation2 + $0x70] sm:$0xff]
        %v504 = vld [vmem:[#allocation2 + $0x78] sm:$0xff]
        %s505 = smul.u32 %s35, 2
        %s506 = scalar_lea.vmem [#allocation9], %s505
        %v507 = vld [vmem:[%s506] sm:$0x3]
        %v508 = vmul.f32 %v489, %v489
        %v509 = vmul.f32 %v490, %v490
        %v510 = vmul.f32 %v491, %v491
        %v511 = vmul.f32 %v492, %v492
        %v512 = vmul.f32 %v493, %v493
        %v513 = vmul.f32 %v494, %v494
        %v514 = vmul.f32 %v495, %v495
        %v515 = vmul.f32 %v496, %v496
        %v516 = vmul.f32 %v497, %v497
        %v517 = vmul.f32 %v498, %v498
        %v518 = vmul.f32 %v499, %v499
        %v519 = vmul.f32 %v500, %v500
        %v520 = vmul.f32 %v501, %v501
        %v521 = vmul.f32 %v502, %v502
        %v522 = vmul.f32 %v503, %v503
        %v523 = vmul.f32 %v504, %v504
        %524 = vadd.xlane.f32.xlu0 %v508
        %v525 = vpop.xlane.xlu0 %524
        %526 = vadd.xlane.f32.xlu0 %v509
        %v527 = vpop.xlane.xlu0 %526
        %528 = vadd.xlane.f32.xlu0 %v510
        %v529 = vpop.xlane.xlu0 %528
        %530 = vadd.xlane.f32.xlu0 %v511
        %v531 = vpop.xlane.xlu0 %530
        %532 = vadd.xlane.f32.xlu0 %v512
        %v533 = vpop.xlane.xlu0 %532
        %534 = vadd.xlane.f32.xlu0 %v513
        %v535 = vpop.xlane.xlu0 %534
        %536 = vadd.xlane.f32.xlu0 %v514
        %v537 = vpop.xlane.xlu0 %536
        %538 = vadd.xlane.f32.xlu0 %v515
        %v539 = vpop.xlane.xlu0 %538
        %540 = vadd.xlane.f32.xlu0 %v516
        %v541 = vpop.xlane.xlu0 %540
        %542 = vadd.xlane.f32.xlu0 %v517
        %v543 = vpop.xlane.xlu0 %542
        %544 = vadd.xlane.f32.xlu0 %v518
        %v545 = vpop.xlane.xlu0 %544
        %546 = vadd.xlane.f32.xlu0 %v519
        %v547 = vpop.xlane.xlu0 %546
        %548 = vadd.xlane.f32.xlu0 %v520
        %v549 = vpop.xlane.xlu0 %548
        %550 = vadd.xlane.f32.xlu0 %v521
        %v551 = vpop.xlane.xlu0 %550
        %552 = vadd.xlane.f32.xlu0 %v522
        %v553 = vpop.xlane.xlu0 %552
        %554 = vadd.xlane.f32.xlu0 %v523
        %v555 = vpop.xlane.xlu0 %554
        %v556 = vrcp.pop 128.0
        %v557 = vmul.f32 %v525, %v556
        %v558 = vmul.f32 %v527, %v556
        %v559 = vmul.f32 %v529, %v556
        %v560 = vmul.f32 %v531, %v556
        %v561 = vmul.f32 %v533, %v556
        %v562 = vmul.f32 %v535, %v556
        %v563 = vmul.f32 %v537, %v556
        %v564 = vmul.f32 %v539, %v556
        %v565 = vmul.f32 %v541, %v556
        %v566 = vmul.f32 %v543, %v556
        %v567 = vmul.f32 %v545, %v556
        %v568 = vmul.f32 %v547, %v556
        %v569 = vmul.f32 %v549, %v556
        %v570 = vmul.f32 %v551, %v556
        %v571 = vmul.f32 %v553, %v556
        %v572 = vmul.f32 %v555, %v556
        %v573 = vadd.f32 %v557, 1e-06
        %v574 = vadd.f32 %v558, 1e-06
        %v575 = vadd.f32 %v559, 1e-06
        %v576 = vadd.f32 %v560, 1e-06
        %v577 = vadd.f32 %v561, 1e-06
        %v578 = vadd.f32 %v562, 1e-06
        %v579 = vadd.f32 %v563, 1e-06
        %v580 = vadd.f32 %v564, 1e-06
        %v581 = vadd.f32 %v565, 1e-06
        %v582 = vadd.f32 %v566, 1e-06
        %v583 = vadd.f32 %v567, 1e-06
        %v584 = vadd.f32 %v568, 1e-06
        %v585 = vadd.f32 %v569, 1e-06
        %v586 = vadd.f32 %v570, 1e-06
        %v587 = vadd.f32 %v571, 1e-06
        %v588 = vadd.f32 %v572, 1e-06
        %v589 = vrsqrt.pop %v573
        %v590 = vrsqrt.pop %v574
        %v591 = vrsqrt.pop %v575
        %v592 = vrsqrt.pop %v576
        %v593 = vrsqrt.pop %v577
        %v594 = vrsqrt.pop %v578
        %v595 = vrsqrt.pop %v579
        %v596 = vrsqrt.pop %v580
        %v597 = vrsqrt.pop %v581
        %v598 = vrsqrt.pop %v582
        %v599 = vrsqrt.pop %v583
        %v600 = vrsqrt.pop %v584
        %v601 = vrsqrt.pop %v585
        %v602 = vrsqrt.pop %v586
        %v603 = vrsqrt.pop %v587
        %v604 = vrsqrt.pop %v588
        %v605 = vmul.f32 %v489, %v589
        %v606 = vmul.f32 %v490, %v590
        %v607 = vmul.f32 %v491, %v591
        %v608 = vmul.f32 %v492, %v592
        %v609 = vmul.f32 %v493, %v593
        %v610 = vmul.f32 %v494, %v594
        %v611 = vmul.f32 %v495, %v595
        %v612 = vmul.f32 %v496, %v596
        %v613 = vmul.f32 %v497, %v597
        %v614 = vmul.f32 %v498, %v598
        %v615 = vmul.f32 %v499, %v599
        %v616 = vmul.f32 %v500, %v600
        %v617 = vmul.f32 %v501, %v601
        %v618 = vmul.f32 %v502, %v602
        %v619 = vmul.f32 %v503, %v603
        %v620 = vmul.f32 %v504, %v604
        %v621 = vlaneseq
        %v622 = vshrl.u32 %v621, 7
        %v623 = vsub.s32 0, %v622
        %v624 = vrot.slane %v507, %v623
        %v625 = vmul.f32 %v605, %v624
        %v626 = vmul.f32 %v606, %v624
        %v627 = vmul.f32 %v607, %v624
        %v628 = vmul.f32 %v608, %v624
        %v629 = vmul.f32 %v609, %v624
        %v630 = vmul.f32 %v610, %v624
        %v631 = vmul.f32 %v611, %v624
        %v632 = vmul.f32 %v612, %v624
        %v633 = vmul.f32 %v613, %v624
        %v634 = vmul.f32 %v614, %v624
        %v635 = vmul.f32 %v615, %v624
        %v636 = vmul.f32 %v616, %v624
        %v637 = vmul.f32 %v617, %v624
        %v638 = vmul.f32 %v618, %v624
        %v639 = vmul.f32 %v619, %v624
        %v640 = vmul.f32 %v620, %v624
        %v641 = vpack.c.bf16 %v626, %v625
        %v642 = vpack.c.bf16 %v628, %v627
        %v643 = vpack.c.bf16 %v630, %v629
        %v644 = vpack.c.bf16 %v632, %v631
        %v645 = vpack.c.bf16 %v634, %v633
        %v646 = vpack.c.bf16 %v636, %v635
        %v647 = vpack.c.bf16 %v638, %v637
        %v648 = vpack.c.bf16 %v640, %v639
        %s649 = smul.u32 %s35, 48
        %s650 = smul.addr %s649, 4
        %s651 = scalar_lea.vmem [#allocation10], %s650
        %v652 = vld [vmem:[%s651] sm:$0xff]
        %v653 = vld [vmem:[%s651 + $0x8] sm:$0xf]
        %v654 = vld [vmem:[%s651 + $0xc] sm:$0xff]
        %v655 = vld [vmem:[%s651 + $0x14] sm:$0xf]
        %v656 = vld [vmem:[%s651 + $0x18] sm:$0xff]
        %v657 = vld [vmem:[%s651 + $0x20] sm:$0xf]
        %v658 = vld [vmem:[%s651 + $0x24] sm:$0xff]
        %v659 = vld [vmem:[%s651 + $0x2c] sm:$0xf]
        %v660 = vld [vmem:[%s651 + $0x30] sm:$0xff]
        %v661 = vld [vmem:[%s651 + $0x38] sm:$0xf]
        %v662 = vld [vmem:[%s651 + $0x3c] sm:$0xff]
        %v663 = vld [vmem:[%s651 + $0x44] sm:$0xf]
        %v664 = vld [vmem:[%s651 + $0x48] sm:$0xff]
        %v665 = vld [vmem:[%s651 + $0x50] sm:$0xf]
        %v666 = vld [vmem:[%s651 + $0x54] sm:$0xff]
        %v667 = vld [vmem:[%s651 + $0x5c] sm:$0xf]
        %v668 = vld [vmem:[%s651 + $0x60] sm:$0xff]
        %v669 = vld [vmem:[%s651 + $0x68] sm:$0xf]
        %v670 = vld [vmem:[%s651 + $0x6c] sm:$0xff]
        %v671 = vld [vmem:[%s651 + $0x74] sm:$0xf]
        %v672 = vld [vmem:[%s651 + $0x78] sm:$0xff]
        %v673 = vld [vmem:[%s651 + $0x80] sm:$0xf]
        %v674 = vld [vmem:[%s651 + $0x84] sm:$0xff]
        %v675 = vld [vmem:[%s651 + $0x8c] sm:$0xf]
        %v676 = vld [vmem:[%s651 + $0x90] sm:$0xff]
        %v677 = vld [vmem:[%s651 + $0x98] sm:$0xf]
        %v678 = vld [vmem:[%s651 + $0x9c] sm:$0xff]
        %v679 = vld [vmem:[%s651 + $0xa4] sm:$0xf]
        %v680 = vld [vmem:[%s651 + $0xa8] sm:$0xff]
        %v681 = vld [vmem:[%s651 + $0xb0] sm:$0xf]
        %v682 = vld [vmem:[%s651 + $0xb4] sm:$0xff]
        %v683 = vld [vmem:[%s651 + $0xbc] sm:$0xf]
        %v716 = vunpack.c.l.b16 %v652
        %v717 = vunpack.c.h.b16 %v652
        %v718 = vunpack.c.l.b16 %v653
        %v719 = vunpack.c.l.b16 %v654
        %v720 = vunpack.c.h.b16 %v654
        %v721 = vunpack.c.l.b16 %v655
        %v722 = vunpack.c.l.b16 %v656
        %v723 = vunpack.c.h.b16 %v656
        %v724 = vunpack.c.l.b16 %v657
        %v725 = vunpack.c.l.b16 %v658
        %v726 = vunpack.c.h.b16 %v658
        %v727 = vunpack.c.l.b16 %v659
        %v728 = vunpack.c.l.b16 %v660
        %v729 = vunpack.c.h.b16 %v660
        %v730 = vunpack.c.l.b16 %v661
        %v731 = vunpack.c.l.b16 %v662
        %v732 = vunpack.c.h.b16 %v662
        %v733 = vunpack.c.l.b16 %v663
        %v734 = vunpack.c.l.b16 %v664
        %v735 = vunpack.c.h.b16 %v664
        %v736 = vunpack.c.l.b16 %v665
        %v737 = vunpack.c.l.b16 %v666
        %v738 = vunpack.c.h.b16 %v666
        %v739 = vunpack.c.l.b16 %v667
        %v740 = vunpack.c.l.b16 %v668
        %v741 = vunpack.c.h.b16 %v668
        %v742 = vunpack.c.l.b16 %v669
        %v743 = vunpack.c.l.b16 %v670
        %v744 = vunpack.c.h.b16 %v670
        %v745 = vunpack.c.l.b16 %v671
        %v746 = vunpack.c.l.b16 %v672
        %v747 = vunpack.c.h.b16 %v672
        %v748 = vunpack.c.l.b16 %v673
        %v749 = vunpack.c.l.b16 %v674
        %v750 = vunpack.c.h.b16 %v674
        %v751 = vunpack.c.l.b16 %v675
        %v752 = vunpack.c.l.b16 %v676
        %v753 = vunpack.c.h.b16 %v676
        %v754 = vunpack.c.l.b16 %v677
        %v755 = vunpack.c.l.b16 %v678
        %v756 = vunpack.c.h.b16 %v678
        %v757 = vunpack.c.l.b16 %v679
        %v758 = vunpack.c.l.b16 %v680
        %v759 = vunpack.c.h.b16 %v680
        %v760 = vunpack.c.l.b16 %v681
        %v761 = vunpack.c.l.b16 %v682
        %v762 = vunpack.c.h.b16 %v682
        %v763 = vunpack.c.l.b16 %v683
        %v764 = vpack.c.b16 %v719, %v716
        %v765 = vpack.c.b16 %v720, %v717
        %v766 = vpack.c.b16 %v721, %v718
        %v767 = vpack.c.b16 %v725, %v722
        %v768 = vpack.c.b16 %v726, %v723
        %v769 = vpack.c.b16 %v727, %v724
        %v770 = vpack.c.b16 %v731, %v728
        %v771 = vpack.c.b16 %v732, %v729
        %v772 = vpack.c.b16 %v733, %v730
        %v773 = vpack.c.b16 %v737, %v734
        %v774 = vpack.c.b16 %v738, %v735
        %v775 = vpack.c.b16 %v739, %v736
        %v776 = vpack.c.b16 %v743, %v740
        %v777 = vpack.c.b16 %v744, %v741
        %v778 = vpack.c.b16 %v745, %v742
        %v779 = vpack.c.b16 %v749, %v746
        %v780 = vpack.c.b16 %v750, %v747
        %v781 = vpack.c.b16 %v751, %v748
        %v782 = vpack.c.b16 %v755, %v752
        %v783 = vpack.c.b16 %v756, %v753
        %v784 = vpack.c.b16 %v757, %v754
        %v785 = vpack.c.b16 %v761, %v758
        %v786 = vpack.c.b16 %v762, %v759
        %v787 = vpack.c.b16 %v763, %v760
        %812 = vmatprep.subr.bf16.mxu0 %v786
        %813 = vmatpush1.bf16.msra.mxu0 %v785
        %814 = vmatprep.subr.bf16.mxu0 %v783
        %815 = vmatpush1.bf16.msra.mxu0 %v782
        %816 = vmatprep.subr.bf16.mxu0 %v780
        %817 = vmatpush1.bf16.msra.mxu0 %v779
        %818 = vmatprep.subr.bf16.mxu0 %v777
        %819 = vmatpush1.bf16.msra.mxu0 %v776
        %820 = vmatprep.subr.bf16.mxu0 %v774
        %821 = vmatpush1.bf16.msra.mxu0 %v773
        %822 = vmatprep.subr.bf16.mxu0 %v771
        %823 = vmatpush1.bf16.msra.mxu0 %v770
        %824 = vmatprep.subr.bf16.mxu0 %v768
        %825 = vmatpush1.bf16.msra.mxu0 %v767
        %826 = vmatprep.subr.bf16.mxu0 %v765
        %827 = vmatpush1.bf16.msra.mxu0 %v764
        %828 = vmatprep.subr.bf16.mxu0 0
        %829 = vmatpush2.bf16.msra.mxu0 0
        %830 = vmatprep.subr.bf16.mxu0 0
        %831 = vmatpush2.bf16.msra.mxu0 0
        %832 = vmatprep.subr.bf16.mxu0 0
        %833 = vmatpush2.bf16.msra.mxu0 0
        %834 = vmatprep.subr.bf16.mxu0 0
        %835 = vmatpush2.bf16.msra.mxu0 0
        %836 = vmatprep.subr.bf16.mxu0 0
        %837 = vmatpush2.bf16.msra.mxu0 0
        %838 = vmatprep.subr.bf16.mxu0 0
        %839 = vmatpush2.bf16.msra.mxu0 0
        %840 = vmatprep.subr.bf16.mxu0 0
        %841 = vmatpush2.bf16.msra.mxu0 0
        %842 = vmatprep.subr.bf16.mxu0 0
        %843 = vmatpush2.bf16.msra.mxu0 0
        %844 = vmatprep.mubr.bf16.mxu0 0
        %845 = vmatmul.mubr.bf16.gmra.mxu0 %v641
        %v846 = vpop.f32.mrf.mxu0
        %v847 = vadd.f32 0.0, %v846
        %v848 = vpop.f32.mrf.mxu0
        %v849 = vadd.f32 0.0, %v848
        %v850 = vpop.f32.mrf.mxu0
        %v851 = vadd.f32 0.0, %v850
        %v852 = vpop.f32.mrf.mxu0
        %v853 = vadd.f32 0.0, %v852
        %854 = vmatprep.mubr.bf16.mxu0 0
        %855 = vmatmul.mubr.bf16.gmra.mxu0 %v642
        %v856 = vpop.f32.mrf.mxu0
        %v857 = vadd.f32 0.0, %v856
        %v858 = vpop.f32.mrf.mxu0
        %v859 = vadd.f32 0.0, %v858
        %v860 = vpop.f32.mrf.mxu0
        %v861 = vadd.f32 0.0, %v860
        %v862 = vpop.f32.mrf.mxu0
        %v863 = vadd.f32 0.0, %v862
        %864 = vmatprep.mubr.bf16.mxu0 0
        %865 = vmatmul.mubr.bf16.gmra.mxu0 %v643
        %v866 = vpop.f32.mrf.mxu0
        %v867 = vadd.f32 0.0, %v866
        %v868 = vpop.f32.mrf.mxu0
        %v869 = vadd.f32 0.0, %v868
        %v870 = vpop.f32.mrf.mxu0
        %v871 = vadd.f32 0.0, %v870
        %v872 = vpop.f32.mrf.mxu0
        %v873 = vadd.f32 0.0, %v872
        %874 = vmatprep.mubr.bf16.mxu0 0
        %875 = vmatmul.mubr.bf16.gmra.mxu0 %v644
        %v876 = vpop.f32.mrf.mxu0
        %v877 = vadd.f32 0.0, %v876
        %v878 = vpop.f32.mrf.mxu0
        %v879 = vadd.f32 0.0, %v878
        %v880 = vpop.f32.mrf.mxu0
        %v881 = vadd.f32 0.0, %v880
        %v882 = vpop.f32.mrf.mxu0
        %v883 = vadd.f32 0.0, %v882
        %884 = vmatprep.mubr.bf16.mxu0 0
        %885 = vmatmul.mubr.bf16.gmra.mxu0 %v645
        %v886 = vpop.f32.mrf.mxu0
        %v887 = vadd.f32 0.0, %v886
        %v888 = vpop.f32.mrf.mxu0
        %v889 = vadd.f32 0.0, %v888
        %v890 = vpop.f32.mrf.mxu0
        %v891 = vadd.f32 0.0, %v890
        %v892 = vpop.f32.mrf.mxu0
        %v893 = vadd.f32 0.0, %v892
        %894 = vmatprep.mubr.bf16.mxu0 0
        %895 = vmatmul.mubr.bf16.gmra.mxu0 %v646
        %v896 = vpop.f32.mrf.mxu0
        %v897 = vadd.f32 0.0, %v896
        %v898 = vpop.f32.mrf.mxu0
        %v899 = vadd.f32 0.0, %v898
        %v900 = vpop.f32.mrf.mxu0
        %v901 = vadd.f32 0.0, %v900
        %v902 = vpop.f32.mrf.mxu0
        %v903 = vadd.f32 0.0, %v902
        %904 = vmatprep.mubr.bf16.mxu0 0
        %905 = vmatmul.mubr.bf16.gmra.mxu0 %v647
        %v906 = vpop.f32.mrf.mxu0
        %v907 = vadd.f32 0.0, %v906
        %v908 = vpop.f32.mrf.mxu0
        %v909 = vadd.f32 0.0, %v908
        %v910 = vpop.f32.mrf.mxu0
        %v911 = vadd.f32 0.0, %v910
        %v912 = vpop.f32.mrf.mxu0
        %v913 = vadd.f32 0.0, %v912
        %914 = vmatprep.mubr.bf16.mxu0 0
        %915 = vmatmul.mubr.bf16.gmra.mxu0 %v648
        %v916 = vpop.f32.mrf.mxu0
        %v917 = vadd.f32 0.0, %v916
        %v918 = vpop.f32.mrf.mxu0
        %v919 = vadd.f32 0.0, %v918
        %v920 = vpop.f32.mrf.mxu0
        %v921 = vadd.f32 0.0, %v920
        %v922 = vpop.f32.mrf.mxu0
        %v923 = vadd.f32 0.0, %v922
        %924 = vdwg.mxu0
        %925 = vmatprep.subr.bf16.mxu0 0
        %926 = vmatpush1.bf16.msra.mxu0 %v787
        %927 = vmatprep.subr.bf16.mxu0 0
        %928 = vmatpush1.bf16.msra.mxu0 %v784
        %929 = vmatprep.subr.bf16.mxu0 0
        %930 = vmatpush1.bf16.msra.mxu0 %v781
        %931 = vmatprep.subr.bf16.mxu0 0
        %932 = vmatpush1.bf16.msra.mxu0 %v778
        %933 = vmatprep.subr.bf16.mxu0 0
        %934 = vmatpush1.bf16.msra.mxu0 %v775
        %935 = vmatprep.subr.bf16.mxu0 0
        %936 = vmatpush1.bf16.msra.mxu0 %v772
        %937 = vmatprep.subr.bf16.mxu0 0
        %938 = vmatpush1.bf16.msra.mxu0 %v769
        %939 = vmatprep.subr.bf16.mxu0 0
        %940 = vmatpush1.bf16.msra.mxu0 %v766
        %941 = vmatprep.subr.bf16.mxu0 0
        %942 = vmatpush2.bf16.msra.mxu0 0
        %943 = vmatprep.subr.bf16.mxu0 0
        %944 = vmatpush2.bf16.msra.mxu0 0
        %945 = vmatprep.subr.bf16.mxu0 0
        %946 = vmatpush2.bf16.msra.mxu0 0
        %947 = vmatprep.subr.bf16.mxu0 0
        %948 = vmatpush2.bf16.msra.mxu0 0
        %949 = vmatprep.subr.bf16.mxu0 0
        %950 = vmatpush2.bf16.msra.mxu0 0
        %951 = vmatprep.subr.bf16.mxu0 0
        %952 = vmatpush2.bf16.msra.mxu0 0
        %953 = vmatprep.subr.bf16.mxu0 0
        %954 = vmatpush2.bf16.msra.mxu0 0
        %955 = vmatprep.subr.bf16.mxu0 0
        %956 = vmatpush2.bf16.msra.mxu0 0
        %957 = vmatprep.mubr.bf16.mxu0 0
        %958 = vmatmul.mubr.bf16.gmra.mxu0 %v641
        %v959 = vpop.f32.mrf.mxu0
        %v960 = vadd.f32 0.0, %v959
        %v961 = vpop.f32.mrf.mxu0
        %v962 = vpop.f32.mrf.mxu0
        %v963 = vadd.f32 0.0, %v962
        %v964 = vpop.f32.mrf.mxu0
        %965 = vmatprep.mubr.bf16.mxu0 0
        %966 = vmatmul.mubr.bf16.gmra.mxu0 %v642
        %v967 = vpop.f32.mrf.mxu0
        %v968 = vadd.f32 0.0, %v967
        %v969 = vpop.f32.mrf.mxu0
        %v970 = vpop.f32.mrf.mxu0
        %v971 = vadd.f32 0.0, %v970
        %v972 = vpop.f32.mrf.mxu0
        %973 = vmatprep.mubr.bf16.mxu0 0
        %974 = vmatmul.mubr.bf16.gmra.mxu0 %v643
        %v975 = vpop.f32.mrf.mxu0
        %v976 = vadd.f32 0.0, %v975
        %v977 = vpop.f32.mrf.mxu0
        %v978 = vpop.f32.mrf.mxu0
        %v979 = vadd.f32 0.0, %v978
        %v980 = vpop.f32.mrf.mxu0
        %981 = vmatprep.mubr.bf16.mxu0 0
        %982 = vmatmul.mubr.bf16.gmra.mxu0 %v644
        %v983 = vpop.f32.mrf.mxu0
        %v984 = vadd.f32 0.0, %v983
        %v985 = vpop.f32.mrf.mxu0
        %v986 = vpop.f32.mrf.mxu0
        %v987 = vadd.f32 0.0, %v986
        %v988 = vpop.f32.mrf.mxu0
        %989 = vmatprep.mubr.bf16.mxu0 0
        %990 = vmatmul.mubr.bf16.gmra.mxu0 %v645
        %v991 = vpop.f32.mrf.mxu0
        %v992 = vadd.f32 0.0, %v991
        %v993 = vpop.f32.mrf.mxu0
        %v994 = vpop.f32.mrf.mxu0
        %v995 = vadd.f32 0.0, %v994
        %v996 = vpop.f32.mrf.mxu0
        %997 = vmatprep.mubr.bf16.mxu0 0
        %998 = vmatmul.mubr.bf16.gmra.mxu0 %v646
        %v999 = vpop.f32.mrf.mxu0
        %v1000 = vadd.f32 0.0, %v999
        %v1001 = vpop.f32.mrf.mxu0
        %v1002 = vpop.f32.mrf.mxu0
        %v1003 = vadd.f32 0.0, %v1002
        %v1004 = vpop.f32.mrf.mxu0
        %1005 = vmatprep.mubr.bf16.mxu0 0
        %1006 = vmatmul.mubr.bf16.gmra.mxu0 %v647
        %v1007 = vpop.f32.mrf.mxu0
        %v1008 = vadd.f32 0.0, %v1007
        %v1009 = vpop.f32.mrf.mxu0
        %v1010 = vpop.f32.mrf.mxu0
        %v1011 = vadd.f32 0.0, %v1010
        %v1012 = vpop.f32.mrf.mxu0
        %1013 = vmatprep.mubr.bf16.mxu0 0
        %1014 = vmatmul.mubr.bf16.gmra.mxu0 %v648
        %v1015 = vpop.f32.mrf.mxu0
        %v1016 = vadd.f32 0.0, %v1015
        %v1017 = vpop.f32.mrf.mxu0
        %v1018 = vpop.f32.mrf.mxu0
        %v1019 = vadd.f32 0.0, %v1018
        %v1020 = vpop.f32.mrf.mxu0
        %1021 = vdwg.mxu0
        %v1022 = vpack.c.bf16 %v851, %v847
        %v1023 = vpack.c.bf16 %v853, %v849
        %v1024 = vpack.c.bf16 %v963, %v960
        %v1025 = vpack.c.bf16 %v861, %v857
        %v1026 = vpack.c.bf16 %v863, %v859
        %v1027 = vpack.c.bf16 %v971, %v968
        %v1028 = vpack.c.bf16 %v871, %v867
        %v1029 = vpack.c.bf16 %v873, %v869
        %v1030 = vpack.c.bf16 %v979, %v976
        %v1031 = vpack.c.bf16 %v881, %v877
        %v1032 = vpack.c.bf16 %v883, %v879
        %v1033 = vpack.c.bf16 %v987, %v984
        %v1034 = vpack.c.bf16 %v891, %v887
        %v1035 = vpack.c.bf16 %v893, %v889
        %v1036 = vpack.c.bf16 %v995, %v992
        %v1037 = vpack.c.bf16 %v901, %v897
        %v1038 = vpack.c.bf16 %v903, %v899
        %v1039 = vpack.c.bf16 %v1003, %v1000
        %v1040 = vpack.c.bf16 %v911, %v907
        %v1041 = vpack.c.bf16 %v913, %v909
        %v1042 = vpack.c.bf16 %v1011, %v1008
        %v1043 = vpack.c.bf16 %v921, %v917
        %v1044 = vpack.c.bf16 %v923, %v919
        %v1045 = vpack.c.bf16 %v1019, %v1016
        %v1070 = vunpack.c.l.b16 %v1022
        %v1071 = vunpack.c.l.b16 %v1023
        %v1072 = vunpack.c.l.b16 %v1024
        %v1073 = vunpack.c.h.b16 %v1022
        %v1074 = vunpack.c.h.b16 %v1023
        %v1075 = vunpack.c.h.b16 %v1024
        %v1076 = vunpack.c.l.b16 %v1025
        %v1077 = vunpack.c.l.b16 %v1026
        %v1078 = vunpack.c.l.b16 %v1027
        %v1079 = vunpack.c.h.b16 %v1025
        %v1080 = vunpack.c.h.b16 %v1026
        %v1081 = vunpack.c.h.b16 %v1027
        %v1082 = vunpack.c.l.b16 %v1028
        %v1083 = vunpack.c.l.b16 %v1029
        %v1084 = vunpack.c.l.b16 %v1030
        %v1085 = vunpack.c.h.b16 %v1028
        %v1086 = vunpack.c.h.b16 %v1029
        %v1087 = vunpack.c.h.b16 %v1030
        %v1088 = vunpack.c.l.b16 %v1031
        %v1089 = vunpack.c.l.b16 %v1032
        %v1090 = vunpack.c.l.b16 %v1033
        %v1091 = vunpack.c.h.b16 %v1031
        %v1092 = vunpack.c.h.b16 %v1032
        %v1093 = vunpack.c.h.b16 %v1033
        %v1094 = vunpack.c.l.b16 %v1034
        %v1095 = vunpack.c.l.b16 %v1035
        %v1096 = vunpack.c.l.b16 %v1036
        %v1097 = vunpack.c.h.b16 %v1034
        %v1098 = vunpack.c.h.b16 %v1035
        %v1099 = vunpack.c.h.b16 %v1036
        %v1100 = vunpack.c.l.b16 %v1037
        %v1101 = vunpack.c.l.b16 %v1038
        %v1102 = vunpack.c.l.b16 %v1039
        %v1103 = vunpack.c.h.b16 %v1037
        %v1104 = vunpack.c.h.b16 %v1038
        %v1105 = vunpack.c.h.b16 %v1039
        %v1106 = vunpack.c.l.b16 %v1040
        %v1107 = vunpack.c.l.b16 %v1041
        %v1108 = vunpack.c.l.b16 %v1042
        %v1109 = vunpack.c.h.b16 %v1040
        %v1110 = vunpack.c.h.b16 %v1041
        %v1111 = vunpack.c.h.b16 %v1042
        %v1112 = vunpack.c.l.b16 %v1043
        %v1113 = vunpack.c.l.b16 %v1044
        %v1114 = vunpack.c.l.b16 %v1045
        %v1115 = vunpack.c.h.b16 %v1043
        %v1116 = vunpack.c.h.b16 %v1044
        %v1117 = vunpack.c.h.b16 %v1045
        %v1118 = vpack.c.b16 %v1071, %v1070
        %v1119 = vpack.c.b16 %v1072, %v1072
        %v1120 = vpack.c.b16 %v1074, %v1073
        %v1121 = vpack.c.b16 %v1075, %v1075
        %v1122 = vpack.c.b16 %v1077, %v1076
        %v1123 = vpack.c.b16 %v1078, %v1078
        %v1124 = vpack.c.b16 %v1080, %v1079
        %v1125 = vpack.c.b16 %v1081, %v1081
        %v1126 = vpack.c.b16 %v1083, %v1082
        %v1127 = vpack.c.b16 %v1084, %v1084
        %v1128 = vpack.c.b16 %v1086, %v1085
        %v1129 = vpack.c.b16 %v1087, %v1087
        %v1130 = vpack.c.b16 %v1089, %v1088
        %v1131 = vpack.c.b16 %v1090, %v1090
        %v1132 = vpack.c.b16 %v1092, %v1091
        %v1133 = vpack.c.b16 %v1093, %v1093
        %v1134 = vpack.c.b16 %v1095, %v1094
        %v1135 = vpack.c.b16 %v1096, %v1096
        %v1136 = vpack.c.b16 %v1098, %v1097
        %v1137 = vpack.c.b16 %v1099, %v1099
        %v1138 = vpack.c.b16 %v1101, %v1100
        %v1139 = vpack.c.b16 %v1102, %v1102
        %v1140 = vpack.c.b16 %v1104, %v1103
        %v1141 = vpack.c.b16 %v1105, %v1105
        %v1142 = vpack.c.b16 %v1107, %v1106
        %v1143 = vpack.c.b16 %v1108, %v1108
        %v1144 = vpack.c.b16 %v1110, %v1109
        %v1145 = vpack.c.b16 %v1111, %v1111
        %v1146 = vpack.c.b16 %v1113, %v1112
        %v1147 = vpack.c.b16 %v1114, %v1114
        %v1148 = vpack.c.b16 %v1116, %v1115
        %v1149 = vpack.c.b16 %v1117, %v1117
        %1182 = vst [vmem:[#allocation3] sm:$0xff] %v1118
        %1183 = vst [vmem:[#allocation3 + $0x8] sm:$0xf] %v1119
        %1184 = vst [vmem:[#allocation3 + $0xc] sm:$0xff] %v1120
        %1185 = vst [vmem:[#allocation3 + $0x14] sm:$0xf] %v1121
        %1186 = vst [vmem:[#allocation3 + $0x18] sm:$0xff] %v1122
        %1187 = vst [vmem:[#allocation3 + $0x20] sm:$0xf] %v1123
        %1188 = vst [vmem:[#allocation3 + $0x24] sm:$0xff] %v1124
        %1189 = vst [vmem:[#allocation3 + $0x2c] sm:$0xf] %v1125
        %1190 = vst [vmem:[#allocation3 + $0x30] sm:$0xff] %v1126
        %1191 = vst [vmem:[#allocation3 + $0x38] sm:$0xf] %v1127
        %1192 = vst [vmem:[#allocation3 + $0x3c] sm:$0xff] %v1128
        %1193 = vst [vmem:[#allocation3 + $0x44] sm:$0xf] %v1129
        %1194 = vst [vmem:[#allocation3 + $0x48] sm:$0xff] %v1130
        %1195 = vst [vmem:[#allocation3 + $0x50] sm:$0xf] %v1131
        %1196 = vst [vmem:[#allocation3 + $0x54] sm:$0xff] %v1132
        %1197 = vst [vmem:[#allocation3 + $0x5c] sm:$0xf] %v1133
        %1198 = vst [vmem:[#allocation3 + $0x60] sm:$0xff] %v1134
        %1199 = vst [vmem:[#allocation3 + $0x68] sm:$0xf] %v1135
        %1200 = vst [vmem:[#allocation3 + $0x6c] sm:$0xff] %v1136
        %1201 = vst [vmem:[#allocation3 + $0x74] sm:$0xf] %v1137
        %1202 = vst [vmem:[#allocation3 + $0x78] sm:$0xff] %v1138
        %1203 = vst [vmem:[#allocation3 + $0x80] sm:$0xf] %v1139
        %1204 = vst [vmem:[#allocation3 + $0x84] sm:$0xff] %v1140
        %1205 = vst [vmem:[#allocation3 + $0x8c] sm:$0xf] %v1141
        %1206 = vst [vmem:[#allocation3 + $0x90] sm:$0xff] %v1142
        %1207 = vst [vmem:[#allocation3 + $0x98] sm:$0xf] %v1143
        %1208 = vst [vmem:[#allocation3 + $0x9c] sm:$0xff] %v1144
        %1209 = vst [vmem:[#allocation3 + $0xa4] sm:$0xf] %v1145
        %1210 = vst [vmem:[#allocation3 + $0xa8] sm:$0xff] %v1146
        %1211 = vst [vmem:[#allocation3 + $0xb0] sm:$0xf] %v1147
        %1212 = vst [vmem:[#allocation3 + $0xb4] sm:$0xff] %v1148
        %1213 = vst [vmem:[#allocation3 + $0xbc] sm:$0xf] %v1149
        %v1214 = vld [vmem:[#allocation3] sm:$0xf]
        %v1215 = vld [vmem:[#allocation3 + $0xc] sm:$0xf]
        %v1216 = vld [vmem:[#allocation3 + $0x18] sm:$0xf]
        %v1217 = vld [vmem:[#allocation3 + $0x24] sm:$0xf]
        %v1218 = vld [vmem:[#allocation3 + $0x30] sm:$0xf]
        %v1219 = vld [vmem:[#allocation3 + $0x3c] sm:$0xf]
        %v1220 = vld [vmem:[#allocation3 + $0x48] sm:$0xf]
        %v1221 = vld [vmem:[#allocation3 + $0x54] sm:$0xf]
        %v1222 = vld [vmem:[#allocation3 + $0x60] sm:$0xf]
        %v1223 = vld [vmem:[#allocation3 + $0x6c] sm:$0xf]
        %v1224 = vld [vmem:[#allocation3 + $0x78] sm:$0xf]
        %v1225 = vld [vmem:[#allocation3 + $0x84] sm:$0xf]
        %v1226 = vld [vmem:[#allocation3 + $0x90] sm:$0xf]
        %v1227 = vld [vmem:[#allocation3 + $0x9c] sm:$0xf]
        %v1228 = vld [vmem:[#allocation3 + $0xa8] sm:$0xf]
        %v1229 = vld [vmem:[#allocation3 + $0xb4] sm:$0xf]
        %v1230 = vld [vmem:[#allocation3 + $0x4] sm:$0xf]
        %v1231 = vld [vmem:[#allocation3 + $0x10] sm:$0xf]
        %v1232 = vld [vmem:[#allocation3 + $0x1c] sm:$0xf]
        %v1233 = vld [vmem:[#allocation3 + $0x28] sm:$0xf]
        %v1234 = vld [vmem:[#allocation3 + $0x34] sm:$0xf]
        %v1235 = vld [vmem:[#allocation3 + $0x40] sm:$0xf]
        %v1236 = vld [vmem:[#allocation3 + $0x4c] sm:$0xf]
        %v1237 = vld [vmem:[#allocation3 + $0x58] sm:$0xf]
        %v1238 = vld [vmem:[#allocation3 + $0x64] sm:$0xf]
        %v1239 = vld [vmem:[#allocation3 + $0x70] sm:$0xf]
        %v1240 = vld [vmem:[#allocation3 + $0x7c] sm:$0xf]
        %v1241 = vld [vmem:[#allocation3 + $0x88] sm:$0xf]
        %v1242 = vld [vmem:[#allocation3 + $0x94] sm:$0xf]
        %v1243 = vld [vmem:[#allocation3 + $0xa0] sm:$0xf]
        %v1244 = vld [vmem:[#allocation3 + $0xac] sm:$0xf]
        %v1245 = vld [vmem:[#allocation3 + $0xb8] sm:$0xf]
        %v1246 = vld [vmem:[#allocation3 + $0x8] sm:$0xf]
        %v1247 = vld [vmem:[#allocation3 + $0x14] sm:$0xf]
        %v1248 = vld [vmem:[#allocation3 + $0x20] sm:$0xf]
        %v1249 = vld [vmem:[#allocation3 + $0x2c] sm:$0xf]
        %v1250 = vld [vmem:[#allocation3 + $0x38] sm:$0xf]
        %v1251 = vld [vmem:[#allocation3 + $0x44] sm:$0xf]
        %v1252 = vld [vmem:[#allocation3 + $0x50] sm:$0xf]
        %v1253 = vld [vmem:[#allocation3 + $0x5c] sm:$0xf]
        %v1254 = vld [vmem:[#allocation3 + $0x68] sm:$0xf]
        %v1255 = vld [vmem:[#allocation3 + $0x74] sm:$0xf]
        %v1256 = vld [vmem:[#allocation3 + $0x80] sm:$0xf]
        %v1257 = vld [vmem:[#allocation3 + $0x8c] sm:$0xf]
        %v1258 = vld [vmem:[#allocation3 + $0x98] sm:$0xf]
        %v1259 = vld [vmem:[#allocation3 + $0xa4] sm:$0xf]
        %v1260 = vld [vmem:[#allocation3 + $0xb0] sm:$0xf]
        %v1261 = vld [vmem:[#allocation3 + $0xbc] sm:$0xf]
        %v1262 = vld [vmem:[%s391] sm:$0xff]
        %v1263 = vld [vmem:[%s391 + $0x8] sm:$0xff]
        %v1264 = vld [vmem:[%s391 + $0x10] sm:$0xff]
        %v1265 = vld [vmem:[%s391 + $0x18] sm:$0xff]
        %v1266 = vld [vmem:[%s391 + $0x20] sm:$0xff]
        %v1267 = vld [vmem:[%s391 + $0x28] sm:$0xff]
        %v1268 = vld [vmem:[%s391 + $0x30] sm:$0xff]
        %v1269 = vld [vmem:[%s391 + $0x38] sm:$0xff]
        %v1270 = vld [vmem:[%s391 + $0x40] sm:$0xff]
        %v1271 = vld [vmem:[%s391 + $0x48] sm:$0xff]
        %v1272 = vld [vmem:[%s391 + $0x50] sm:$0xff]
        %v1273 = vld [vmem:[%s391 + $0x58] sm:$0xff]
        %v1274 = vld [vmem:[%s391 + $0x60] sm:$0xff]
        %v1275 = vld [vmem:[%s391 + $0x68] sm:$0xff]
        %v1276 = vld [vmem:[%s391 + $0x70] sm:$0xff]
        %v1277 = vld [vmem:[%s391 + $0x78] sm:$0xff]
        %v1294 = vunpack.c.l.b16 %v1214
        %v1295 = vunpack.c.l.b16 %v1215
        %v1296 = vunpack.c.l.b16 %v1216
        %v1297 = vunpack.c.l.b16 %v1217
        %v1298 = vunpack.c.l.b16 %v1218
        %v1299 = vunpack.c.l.b16 %v1219
        %v1300 = vunpack.c.l.b16 %v1220
        %v1301 = vunpack.c.l.b16 %v1221
        %v1302 = vunpack.c.l.b16 %v1222
        %v1303 = vunpack.c.l.b16 %v1223
        %v1304 = vunpack.c.l.b16 %v1224
        %v1305 = vunpack.c.l.b16 %v1225
        %v1306 = vunpack.c.l.b16 %v1226
        %v1307 = vunpack.c.l.b16 %v1227
        %v1308 = vunpack.c.l.b16 %v1228
        %v1309 = vunpack.c.l.b16 %v1229
        %v1310 = vpack.c.b16 %v1295, %v1294
        %v1311 = vpack.c.b16 %v1297, %v1296
        %v1312 = vpack.c.b16 %v1299, %v1298
        %v1313 = vpack.c.b16 %v1301, %v1300
        %v1314 = vpack.c.b16 %v1303, %v1302
        %v1315 = vpack.c.b16 %v1305, %v1304
        %v1316 = vpack.c.b16 %v1307, %v1306
        %v1317 = vpack.c.b16 %v1309, %v1308
        %v1334 = vunpack.c.l.b16 %v1230
        %v1335 = vunpack.c.l.b16 %v1231
        %v1336 = vunpack.c.l.b16 %v1232
        %v1337 = vunpack.c.l.b16 %v1233
        %v1338 = vunpack.c.l.b16 %v1234
        %v1339 = vunpack.c.l.b16 %v1235
        %v1340 = vunpack.c.l.b16 %v1236
        %v1341 = vunpack.c.l.b16 %v1237
        %v1342 = vunpack.c.l.b16 %v1238
        %v1343 = vunpack.c.l.b16 %v1239
        %v1344 = vunpack.c.l.b16 %v1240
        %v1345 = vunpack.c.l.b16 %v1241
        %v1346 = vunpack.c.l.b16 %v1242
        %v1347 = vunpack.c.l.b16 %v1243
        %v1348 = vunpack.c.l.b16 %v1244
        %v1349 = vunpack.c.l.b16 %v1245
        %v1350 = vpack.c.b16 %v1335, %v1334
        %v1351 = vpack.c.b16 %v1337, %v1336
        %v1352 = vpack.c.b16 %v1339, %v1338
        %v1353 = vpack.c.b16 %v1341, %v1340
        %v1354 = vpack.c.b16 %v1343, %v1342
        %v1355 = vpack.c.b16 %v1345, %v1344
        %v1356 = vpack.c.b16 %v1347, %v1346
        %v1357 = vpack.c.b16 %v1349, %v1348
        %vm1358 = vcmask 261120
        %v1360 = vsel %vm1358, %v1310, 0
        %v1363 = vsel %vm1358, %v1311, 0
        %v1366 = vsel %vm1358, %v1312, 0
        %v1369 = vsel %vm1358, %v1313, 0
        %v1372 = vsel %vm1358, %v1314, 0
        %v1375 = vsel %vm1358, %v1315, 0
        %v1378 = vsel %vm1358, %v1316, 0
        %v1381 = vsel %vm1358, %v1317, 0
        %v1384 = vsel %vm1358, %v1350, 0
        %v1387 = vsel %vm1358, %v1351, 0
        %v1390 = vsel %vm1358, %v1352, 0
        %v1393 = vsel %vm1358, %v1353, 0
        %v1396 = vsel %vm1358, %v1354, 0
        %v1399 = vsel %vm1358, %v1355, 0
        %v1402 = vsel %vm1358, %v1356, 0
        %v1405 = vsel %vm1358, %v1357, 0
        %1407 = vmatprep.subr.bf16.mxu0 0
        %1408 = vmatpush1.bf16.xpose.msra.mxu0 %v1405
        %1409 = vmatprep.subr.bf16.mxu0 0
        %1410 = vmatpush1.bf16.xpose.msra.mxu0 %v1402
        %1411 = vmatprep.subr.bf16.mxu0 0
        %1412 = vmatpush1.bf16.xpose.msra.mxu0 %v1399
        %1413 = vmatprep.subr.bf16.mxu0 0
        %1414 = vmatpush1.bf16.xpose.msra.mxu0 %v1396
        %1415 = vmatprep.subr.bf16.mxu0 0
        %1416 = vmatpush1.bf16.xpose.msra.mxu0 %v1393
        %1417 = vmatprep.subr.bf16.mxu0 0
        %1418 = vmatpush1.bf16.xpose.msra.mxu0 %v1390
        %1419 = vmatprep.subr.bf16.mxu0 0
        %1420 = vmatpush1.bf16.xpose.msra.mxu0 %v1387
        %1421 = vmatprep.subr.bf16.mxu0 0
        %1422 = vmatpush1.bf16.xpose.msra.mxu0 %v1384
        %1423 = vmatprep.subr.bf16.mxu0 0
        %1424 = vmatpush2.bf16.xpose.msra.mxu0 0
        %1425 = vmatprep.subr.bf16.mxu0 0
        %1426 = vmatpush2.bf16.xpose.msra.mxu0 0
        %1427 = vmatprep.subr.bf16.mxu0 0
        %1428 = vmatpush2.bf16.xpose.msra.mxu0 0
        %1429 = vmatprep.subr.bf16.mxu0 0
        %1430 = vmatpush2.bf16.xpose.msra.mxu0 0
        %1431 = vmatprep.subr.bf16.mxu0 0
        %1432 = vmatpush2.bf16.xpose.msra.mxu0 0
        %1433 = vmatprep.subr.bf16.mxu0 0
        %1434 = vmatpush2.bf16.xpose.msra.mxu0 0
        %1435 = vmatprep.subr.bf16.mxu0 0
        %1436 = vmatpush2.bf16.xpose.msra.mxu0 0
        %1437 = vmatprep.subr.bf16.mxu0 0
        %1438 = vmatpush2.bf16.xpose.msra.mxu0 0
        %1439 = vmatprep.mubr.bf16.mxu0 0
        %1440 = vmatmul.mubr.bf16.gmra.mxu0 %v1360
        %v1441 = vpop.f32.mrf.mxu0
        %v1442 = vadd.f32 %v1262, %v1441
        %v1443 = vpop.f32.mrf.mxu0
        %v1444 = vpop.f32.mrf.mxu0
        %v1445 = vadd.f32 %v1263, %v1444
        %v1446 = vpop.f32.mrf.mxu0
        %1447 = vmatprep.mubr.bf16.mxu0 0
        %1448 = vmatmul.mubr.bf16.gmra.mxu0 %v1363
        %v1449 = vpop.f32.mrf.mxu0
        %v1450 = vadd.f32 %v1264, %v1449
        %v1451 = vpop.f32.mrf.mxu0
        %v1452 = vpop.f32.mrf.mxu0
        %v1453 = vadd.f32 %v1265, %v1452
        %v1454 = vpop.f32.mrf.mxu0
        %1455 = vmatprep.mubr.bf16.mxu0 0
        %1456 = vmatmul.mubr.bf16.gmra.mxu0 %v1366
        %v1457 = vpop.f32.mrf.mxu0
        %v1458 = vadd.f32 %v1266, %v1457
        %v1459 = vpop.f32.mrf.mxu0
        %v1460 = vpop.f32.mrf.mxu0
        %v1461 = vadd.f32 %v1267, %v1460
        %v1462 = vpop.f32.mrf.mxu0
        %1463 = vmatprep.mubr.bf16.mxu0 0
        %1464 = vmatmul.mubr.bf16.gmra.mxu0 %v1369
        %v1465 = vpop.f32.mrf.mxu0
        %v1466 = vadd.f32 %v1268, %v1465
        %v1467 = vpop.f32.mrf.mxu0
        %v1468 = vpop.f32.mrf.mxu0
        %v1469 = vadd.f32 %v1269, %v1468
        %v1470 = vpop.f32.mrf.mxu0
        %1471 = vmatprep.mubr.bf16.mxu0 0
        %1472 = vmatmul.mubr.bf16.gmra.mxu0 %v1372
        %v1473 = vpop.f32.mrf.mxu0
        %v1474 = vadd.f32 %v1270, %v1473
        %v1475 = vpop.f32.mrf.mxu0
        %v1476 = vpop.f32.mrf.mxu0
        %v1477 = vadd.f32 %v1271, %v1476
        %v1478 = vpop.f32.mrf.mxu0
        %1479 = vmatprep.mubr.bf16.mxu0 0
        %1480 = vmatmul.mubr.bf16.gmra.mxu0 %v1375
        %v1481 = vpop.f32.mrf.mxu0
        %v1482 = vadd.f32 %v1272, %v1481
        %v1483 = vpop.f32.mrf.mxu0
        %v1484 = vpop.f32.mrf.mxu0
        %v1485 = vadd.f32 %v1273, %v1484
        %v1486 = vpop.f32.mrf.mxu0
        %1487 = vmatprep.mubr.bf16.mxu0 0
        %1488 = vmatmul.mubr.bf16.gmra.mxu0 %v1378
        %v1489 = vpop.f32.mrf.mxu0
        %v1490 = vadd.f32 %v1274, %v1489
        %v1491 = vpop.f32.mrf.mxu0
        %v1492 = vpop.f32.mrf.mxu0
        %v1493 = vadd.f32 %v1275, %v1492
        %v1494 = vpop.f32.mrf.mxu0
        %1495 = vmatprep.mubr.bf16.mxu0 0
        %1496 = vmatmul.mubr.bf16.gmra.mxu0 %v1381
        %v1497 = vpop.f32.mrf.mxu0
        %v1498 = vadd.f32 %v1276, %v1497
        %v1499 = vpop.f32.mrf.mxu0
        %v1500 = vpop.f32.mrf.mxu0
        %v1501 = vadd.f32 %v1277, %v1500
        %v1502 = vpop.f32.mrf.mxu0
        %1503 = vdwg.mxu0
        %1504 = vmax.xlane.f32.xlu0 %v1442
        %v1505 = vpop.xlane.xlu0 %1504
        %1506 = vmax.xlane.f32.xlu0 %v1445
        %v1507 = vpop.xlane.xlu0 %1506
        %1508 = vmax.xlane.f32.xlu0 %v1450
        %v1509 = vpop.xlane.xlu0 %1508
        %1510 = vmax.xlane.f32.xlu0 %v1453
        %v1511 = vpop.xlane.xlu0 %1510
        %1512 = vmax.xlane.f32.xlu0 %v1458
        %v1513 = vpop.xlane.xlu0 %1512
        %1514 = vmax.xlane.f32.xlu0 %v1461
        %v1515 = vpop.xlane.xlu0 %1514
        %1516 = vmax.xlane.f32.xlu0 %v1466
        %v1517 = vpop.xlane.xlu0 %1516
        %1518 = vmax.xlane.f32.xlu0 %v1469
        %v1519 = vpop.xlane.xlu0 %1518
        %1520 = vmax.xlane.f32.xlu0 %v1474
        %v1521 = vpop.xlane.xlu0 %1520
        %1522 = vmax.xlane.f32.xlu0 %v1477
        %v1523 = vpop.xlane.xlu0 %1522
        %1524 = vmax.xlane.f32.xlu0 %v1482
        %v1525 = vpop.xlane.xlu0 %1524
        %1526 = vmax.xlane.f32.xlu0 %v1485
        %v1527 = vpop.xlane.xlu0 %1526
        %1528 = vmax.xlane.f32.xlu0 %v1490
        %v1529 = vpop.xlane.xlu0 %1528
        %1530 = vmax.xlane.f32.xlu0 %v1493
        %v1531 = vpop.xlane.xlu0 %1530
        %1532 = vmax.xlane.f32.xlu0 %v1498
        %v1533 = vpop.xlane.xlu0 %1532
        %1534 = vmax.xlane.f32.xlu0 %v1501
        %v1535 = vpop.xlane.xlu0 %1534
        %v1536 = vsub.f32 %v1442, %v1505
        %v1537 = vsub.f32 %v1445, %v1507
        %v1538 = vsub.f32 %v1450, %v1509
        %v1539 = vsub.f32 %v1453, %v1511
        %v1540 = vsub.f32 %v1458, %v1513
        %v1541 = vsub.f32 %v1461, %v1515
        %v1542 = vsub.f32 %v1466, %v1517
        %v1543 = vsub.f32 %v1469, %v1519
        %v1544 = vsub.f32 %v1474, %v1521
        %v1545 = vsub.f32 %v1477, %v1523
        %v1546 = vsub.f32 %v1482, %v1525
        %v1547 = vsub.f32 %v1485, %v1527
        %v1548 = vsub.f32 %v1490, %v1529
        %v1549 = vsub.f32 %v1493, %v1531
        %v1550 = vsub.f32 %v1498, %v1533
        %v1551 = vsub.f32 %v1501, %v1535
        %v1552 = vmul.f32 %v1536, 1.442695
        %v1553 = vpow.pop %v1552
        %v1554 = vmul.f32 %v1537, 1.442695
        %v1555 = vpow.pop %v1554
        %v1556 = vmul.f32 %v1538, 1.442695
        %v1557 = vpow.pop %v1556
        %v1558 = vmul.f32 %v1539, 1.442695
        %v1559 = vpow.pop %v1558
        %v1560 = vmul.f32 %v1540, 1.442695
        %v1561 = vpow.pop %v1560
        %v1562 = vmul.f32 %v1541, 1.442695
        %v1563 = vpow.pop %v1562
        %v1564 = vmul.f32 %v1542, 1.442695
        %v1565 = vpow.pop %v1564
        %v1566 = vmul.f32 %v1543, 1.442695
        %v1567 = vpow.pop %v1566
        %v1568 = vmul.f32 %v1544, 1.442695
        %v1569 = vpow.pop %v1568
        %v1570 = vmul.f32 %v1545, 1.442695
        %v1571 = vpow.pop %v1570
        %v1572 = vmul.f32 %v1546, 1.442695
        %v1573 = vpow.pop %v1572
        %v1574 = vmul.f32 %v1547, 1.442695
        %v1575 = vpow.pop %v1574
        %v1576 = vmul.f32 %v1548, 1.442695
        %v1577 = vpow.pop %v1576
        %v1578 = vmul.f32 %v1549, 1.442695
        %v1579 = vpow.pop %v1578
        %v1580 = vmul.f32 %v1550, 1.442695
        %v1581 = vpow.pop %v1580
        %v1582 = vmul.f32 %v1551, 1.442695
        %v1583 = vpow.pop %v1582
        %1584 = vadd.xlane.f32.xlu0 %v1553
        %v1585 = vpop.xlane.xlu0 %1584
        %1586 = vadd.xlane.f32.xlu0 %v1555
        %v1587 = vpop.xlane.xlu0 %1586
        %1588 = vadd.xlane.f32.xlu0 %v1557
        %v1589 = vpop.xlane.xlu0 %1588
        %1590 = vadd.xlane.f32.xlu0 %v1559
        %v1591 = vpop.xlane.xlu0 %1590
        %1592 = vadd.xlane.f32.xlu0 %v1561
        %v1593 = vpop.xlane.xlu0 %1592
        %1594 = vadd.xlane.f32.xlu0 %v1563
        %v1595 = vpop.xlane.xlu0 %1594
        %1596 = vadd.xlane.f32.xlu0 %v1565
        %v1597 = vpop.xlane.xlu0 %1596
        %1598 = vadd.xlane.f32.xlu0 %v1567
        %v1599 = vpop.xlane.xlu0 %1598
        %1600 = vadd.xlane.f32.xlu0 %v1569
        %v1601 = vpop.xlane.xlu0 %1600
        %1602 = vadd.xlane.f32.xlu0 %v1571
        %v1603 = vpop.xlane.xlu0 %1602
        %1604 = vadd.xlane.f32.xlu0 %v1573
        %v1605 = vpop.xlane.xlu0 %1604
        %1606 = vadd.xlane.f32.xlu0 %v1575
        %v1607 = vpop.xlane.xlu0 %1606
        %1608 = vadd.xlane.f32.xlu0 %v1577
        %v1609 = vpop.xlane.xlu0 %1608
        %1610 = vadd.xlane.f32.xlu0 %v1579
        %v1611 = vpop.xlane.xlu0 %1610
        %1612 = vadd.xlane.f32.xlu0 %v1581
        %v1613 = vpop.xlane.xlu0 %1612
        %1614 = vadd.xlane.f32.xlu0 %v1583
        %v1615 = vpop.xlane.xlu0 %1614
        %v1616 = vrcp.pop %v1585
        %v1617 = vrcp.pop %v1587
        %v1618 = vrcp.pop %v1589
        %v1619 = vrcp.pop %v1591
        %v1620 = vrcp.pop %v1593
        %v1621 = vrcp.pop %v1595
        %v1622 = vrcp.pop %v1597
        %v1623 = vrcp.pop %v1599
        %v1624 = vrcp.pop %v1601
        %v1625 = vrcp.pop %v1603
        %v1626 = vrcp.pop %v1605
        %v1627 = vrcp.pop %v1607
        %v1628 = vrcp.pop %v1609
        %v1629 = vrcp.pop %v1611
        %v1630 = vrcp.pop %v1613
        %v1631 = vrcp.pop %v1615
        %v1632 = vmul.f32 %v1553, %v1616
        %v1633 = vmul.f32 %v1555, %v1617
        %v1634 = vmul.f32 %v1557, %v1618
        %v1635 = vmul.f32 %v1559, %v1619
        %v1636 = vmul.f32 %v1561, %v1620
        %v1637 = vmul.f32 %v1563, %v1621
        %v1638 = vmul.f32 %v1565, %v1622
        %v1639 = vmul.f32 %v1567, %v1623
        %v1640 = vmul.f32 %v1569, %v1624
        %v1641 = vmul.f32 %v1571, %v1625
        %v1642 = vmul.f32 %v1573, %v1626
        %v1643 = vmul.f32 %v1575, %v1627
        %v1644 = vmul.f32 %v1577, %v1628
        %v1645 = vmul.f32 %v1579, %v1629
        %v1646 = vmul.f32 %v1581, %v1630
        %v1647 = vmul.f32 %v1583, %v1631
        %v1648 = vpack.c.bf16 %v1633, %v1632
        %v1649 = vpack.c.bf16 %v1635, %v1634
        %v1650 = vpack.c.bf16 %v1637, %v1636
        %v1651 = vpack.c.bf16 %v1639, %v1638
        %v1652 = vpack.c.bf16 %v1641, %v1640
        %v1653 = vpack.c.bf16 %v1643, %v1642
        %v1654 = vpack.c.bf16 %v1645, %v1644
        %v1655 = vpack.c.bf16 %v1647, %v1646
        %v1672 = vunpack.c.l.b16 %v1246
        %v1673 = vunpack.c.l.b16 %v1247
        %v1674 = vunpack.c.l.b16 %v1248
        %v1675 = vunpack.c.l.b16 %v1249
        %v1676 = vunpack.c.l.b16 %v1250
        %v1677 = vunpack.c.l.b16 %v1251
        %v1678 = vunpack.c.l.b16 %v1252
        %v1679 = vunpack.c.l.b16 %v1253
        %v1680 = vunpack.c.l.b16 %v1254
        %v1681 = vunpack.c.l.b16 %v1255
        %v1682 = vunpack.c.l.b16 %v1256
        %v1683 = vunpack.c.l.b16 %v1257
        %v1684 = vunpack.c.l.b16 %v1258
        %v1685 = vunpack.c.l.b16 %v1259
        %v1686 = vunpack.c.l.b16 %v1260
        %v1687 = vunpack.c.l.b16 %v1261
        %v1688 = vpack.c.b16 %v1673, %v1672
        %v1689 = vpack.c.b16 %v1675, %v1674
        %v1690 = vpack.c.b16 %v1677, %v1676
        %v1691 = vpack.c.b16 %v1679, %v1678
        %v1692 = vpack.c.b16 %v1681, %v1680
        %v1693 = vpack.c.b16 %v1683, %v1682
        %v1694 = vpack.c.b16 %v1685, %v1684
        %v1695 = vpack.c.b16 %v1687, %v1686
        %1704 = vmatprep.subr.bf16.mxu0 0
        %1705 = vmatpush1.bf16.msra.mxu0 %v1695
        %1706 = vmatprep.subr.bf16.mxu0 0
        %1707 = vmatpush1.bf16.msra.mxu0 %v1694
        %1708 = vmatprep.subr.bf16.mxu0 0
        %1709 = vmatpush1.bf16.msra.mxu0 %v1693
        %1710 = vmatprep.subr.bf16.mxu0 0
        %1711 = vmatpush1.bf16.msra.mxu0 %v1692
        %1712 = vmatprep.subr.bf16.mxu0 0
        %1713 = vmatpush1.bf16.msra.mxu0 %v1691
        %1714 = vmatprep.subr.bf16.mxu0 0
        %1715 = vmatpush1.bf16.msra.mxu0 %v1690
        %1716 = vmatprep.subr.bf16.mxu0 0
        %1717 = vmatpush1.bf16.msra.mxu0 %v1689
        %1718 = vmatprep.subr.bf16.mxu0 0
        %1719 = vmatpush1.bf16.msra.mxu0 %v1688
        %1720 = vmatprep.subr.bf16.mxu0 0
        %1721 = vmatpush2.bf16.msra.mxu0 0
        %1722 = vmatprep.subr.bf16.mxu0 0
        %1723 = vmatpush2.bf16.msra.mxu0 0
        %1724 = vmatprep.subr.bf16.mxu0 0
        %1725 = vmatpush2.bf16.msra.mxu0 0
        %1726 = vmatprep.subr.bf16.mxu0 0
        %1727 = vmatpush2.bf16.msra.mxu0 0
        %1728 = vmatprep.subr.bf16.mxu0 0
        %1729 = vmatpush2.bf16.msra.mxu0 0
        %1730 = vmatprep.subr.bf16.mxu0 0
        %1731 = vmatpush2.bf16.msra.mxu0 0
        %1732 = vmatprep.subr.bf16.mxu0 0
        %1733 = vmatpush2.bf16.msra.mxu0 0
        %1734 = vmatprep.subr.bf16.mxu0 0
        %1735 = vmatpush2.bf16.msra.mxu0 0
        %1736 = vmatprep.mubr.bf16.mxu0 0
        %1737 = vmatmul.mubr.bf16.gmra.mxu0 %v1648
        %v1738 = vpop.f32.mrf.mxu0
        %v1739 = vadd.f32 0.0, %v1738
        %v1740 = vpop.f32.mrf.mxu0
        %v1741 = vpop.f32.mrf.mxu0
        %v1742 = vadd.f32 0.0, %v1741
        %v1743 = vpop.f32.mrf.mxu0
        %1744 = vmatprep.mubr.bf16.mxu0 0
        %1745 = vmatmul.mubr.bf16.gmra.mxu0 %v1649
        %v1746 = vpop.f32.mrf.mxu0
        %v1747 = vadd.f32 0.0, %v1746
        %v1748 = vpop.f32.mrf.mxu0
        %v1749 = vpop.f32.mrf.mxu0
        %v1750 = vadd.f32 0.0, %v1749
        %v1751 = vpop.f32.mrf.mxu0
        %1752 = vmatprep.mubr.bf16.mxu0 0
        %1753 = vmatmul.mubr.bf16.gmra.mxu0 %v1650
        %v1754 = vpop.f32.mrf.mxu0
        %v1755 = vadd.f32 0.0, %v1754
        %v1756 = vpop.f32.mrf.mxu0
        %v1757 = vpop.f32.mrf.mxu0
        %v1758 = vadd.f32 0.0, %v1757
        %v1759 = vpop.f32.mrf.mxu0
        %1760 = vmatprep.mubr.bf16.mxu0 0
        %1761 = vmatmul.mubr.bf16.gmra.mxu0 %v1651
        %v1762 = vpop.f32.mrf.mxu0
        %v1763 = vadd.f32 0.0, %v1762
        %v1764 = vpop.f32.mrf.mxu0
        %v1765 = vpop.f32.mrf.mxu0
        %v1766 = vadd.f32 0.0, %v1765
        %v1767 = vpop.f32.mrf.mxu0
        %1768 = vmatprep.mubr.bf16.mxu0 0
        %1769 = vmatmul.mubr.bf16.gmra.mxu0 %v1652
        %v1770 = vpop.f32.mrf.mxu0
        %v1771 = vadd.f32 0.0, %v1770
        %v1772 = vpop.f32.mrf.mxu0
        %v1773 = vpop.f32.mrf.mxu0
        %v1774 = vadd.f32 0.0, %v1773
        %v1775 = vpop.f32.mrf.mxu0
        %1776 = vmatprep.mubr.bf16.mxu0 0
        %1777 = vmatmul.mubr.bf16.gmra.mxu0 %v1653
        %v1778 = vpop.f32.mrf.mxu0
        %v1779 = vadd.f32 0.0, %v1778
        %v1780 = vpop.f32.mrf.mxu0
        %v1781 = vpop.f32.mrf.mxu0
        %v1782 = vadd.f32 0.0, %v1781
        %v1783 = vpop.f32.mrf.mxu0
        %1784 = vmatprep.mubr.bf16.mxu0 0
        %1785 = vmatmul.mubr.bf16.gmra.mxu0 %v1654
        %v1786 = vpop.f32.mrf.mxu0
        %v1787 = vadd.f32 0.0, %v1786
        %v1788 = vpop.f32.mrf.mxu0
        %v1789 = vpop.f32.mrf.mxu0
        %v1790 = vadd.f32 0.0, %v1789
        %v1791 = vpop.f32.mrf.mxu0
        %1792 = vmatprep.mubr.bf16.mxu0 0
        %1793 = vmatmul.mubr.bf16.gmra.mxu0 %v1655
        %v1794 = vpop.f32.mrf.mxu0
        %v1795 = vadd.f32 0.0, %v1794
        %v1796 = vpop.f32.mrf.mxu0
        %v1797 = vpop.f32.mrf.mxu0
        %v1798 = vadd.f32 0.0, %v1797
        %v1799 = vpop.f32.mrf.mxu0
        %1800 = vdwg.mxu0
        %s1801 = scalar_lea.vmem %s391, 128 [#allocation7]
        %v1802 = vld [vmem:[%s1801] sm:$0xff]
        %v1803 = vld [vmem:[%s1801 + $0x8] sm:$0xff]
        %v1804 = vld [vmem:[%s1801 + $0x10] sm:$0xff]
        %v1805 = vld [vmem:[%s1801 + $0x18] sm:$0xff]
        %v1806 = vld [vmem:[%s1801 + $0x20] sm:$0xff]
        %v1807 = vld [vmem:[%s1801 + $0x28] sm:$0xff]
        %v1808 = vld [vmem:[%s1801 + $0x30] sm:$0xff]
        %v1809 = vld [vmem:[%s1801 + $0x38] sm:$0xff]
        %v1810 = vld [vmem:[%s1801 + $0x40] sm:$0xff]
        %v1811 = vld [vmem:[%s1801 + $0x48] sm:$0xff]
        %v1812 = vld [vmem:[%s1801 + $0x50] sm:$0xff]
        %v1813 = vld [vmem:[%s1801 + $0x58] sm:$0xff]
        %v1814 = vld [vmem:[%s1801 + $0x60] sm:$0xff]
        %v1815 = vld [vmem:[%s1801 + $0x68] sm:$0xff]
        %v1816 = vld [vmem:[%s1801 + $0x70] sm:$0xff]
        %v1817 = vld [vmem:[%s1801 + $0x78] sm:$0xff]
        %1818 = vrot.lane.b32.xlu0 %v1310, 96
        %v1819 = vpop.permute.xlu0 %1818
        %1820 = vrot.lane.b32.xlu0 %v1311, 96
        %v1821 = vpop.permute.xlu0 %1820
        %1822 = vrot.lane.b32.xlu0 %v1312, 96
        %v1823 = vpop.permute.xlu0 %1822
        %1824 = vrot.lane.b32.xlu0 %v1313, 96
        %v1825 = vpop.permute.xlu0 %1824
        %1826 = vrot.lane.b32.xlu0 %v1314, 96
        %v1827 = vpop.permute.xlu0 %1826
        %1828 = vrot.lane.b32.xlu0 %v1315, 96
        %v1829 = vpop.permute.xlu0 %1828
        %1830 = vrot.lane.b32.xlu0 %v1316, 96
        %v1831 = vpop.permute.xlu0 %1830
        %1832 = vrot.lane.b32.xlu0 %v1317, 96
        %v1833 = vpop.permute.xlu0 %1832
        %1834 = vrot.lane.b32.xlu0 %v1350, 96
        %v1835 = vpop.permute.xlu0 %1834
        %1836 = vrot.lane.b32.xlu0 %v1351, 96
        %v1837 = vpop.permute.xlu0 %1836
        %1838 = vrot.lane.b32.xlu0 %v1352, 96
        %v1839 = vpop.permute.xlu0 %1838
        %1840 = vrot.lane.b32.xlu0 %v1353, 96
        %v1841 = vpop.permute.xlu0 %1840
        %1842 = vrot.lane.b32.xlu0 %v1354, 96
        %v1843 = vpop.permute.xlu0 %1842
        %1844 = vrot.lane.b32.xlu0 %v1355, 96
        %v1845 = vpop.permute.xlu0 %1844
        %1846 = vrot.lane.b32.xlu0 %v1356, 96
        %v1847 = vpop.permute.xlu0 %1846
        %1848 = vrot.lane.b32.xlu0 %v1357, 96
        %v1849 = vpop.permute.xlu0 %1848
        %v1851 = vsel %vm1358, %v1819, 0
        %v1854 = vsel %vm1358, %v1821, 0
        %v1857 = vsel %vm1358, %v1823, 0
        %v1860 = vsel %vm1358, %v1825, 0
        %v1863 = vsel %vm1358, %v1827, 0
        %v1866 = vsel %vm1358, %v1829, 0
        %v1869 = vsel %vm1358, %v1831, 0
        %v1872 = vsel %vm1358, %v1833, 0
        %v1875 = vsel %vm1358, %v1835, 0
        %v1878 = vsel %vm1358, %v1837, 0
        %v1881 = vsel %vm1358, %v1839, 0
        %v1884 = vsel %vm1358, %v1841, 0
        %v1887 = vsel %vm1358, %v1843, 0
        %v1890 = vsel %vm1358, %v1845, 0
        %v1893 = vsel %vm1358, %v1847, 0
        %v1896 = vsel %vm1358, %v1849, 0
        %1898 = vmatprep.subr.bf16.mxu0 0
        %1899 = vmatpush1.bf16.xpose.msra.mxu0 %v1896
        %1900 = vmatprep.subr.bf16.mxu0 0
        %1901 = vmatpush1.bf16.xpose.msra.mxu0 %v1893
        %1902 = vmatprep.subr.bf16.mxu0 0
        %1903 = vmatpush1.bf16.xpose.msra.mxu0 %v1890
        %1904 = vmatprep.subr.bf16.mxu0 0
        %1905 = vmatpush1.bf16.xpose.msra.mxu0 %v1887
        %1906 = vmatprep.subr.bf16.mxu0 0
        %1907 = vmatpush1.bf16.xpose.msra.mxu0 %v1884
        %1908 = vmatprep.subr.bf16.mxu0 0
        %1909 = vmatpush1.bf16.xpose.msra.mxu0 %v1881
        %1910 = vmatprep.subr.bf16.mxu0 0
        %1911 = vmatpush1.bf16.xpose.msra.mxu0 %v1878
        %1912 = vmatprep.subr.bf16.mxu0 0
        %1913 = vmatpush1.bf16.xpose.msra.mxu0 %v1875
        %1914 = vmatprep.subr.bf16.mxu0 0
        %1915 = vmatpush2.bf16.xpose.msra.mxu0 0
        %1916 = vmatprep.subr.bf16.mxu0 0
        %1917 = vmatpush2.bf16.xpose.msra.mxu0 0
        %1918 = vmatprep.subr.bf16.mxu0 0
        %1919 = vmatpush2.bf16.xpose.msra.mxu0 0
        %1920 = vmatprep.subr.bf16.mxu0 0
        %1921 = vmatpush2.bf16.xpose.msra.mxu0 0
        %1922 = vmatprep.subr.bf16.mxu0 0
        %1923 = vmatpush2.bf16.xpose.msra.mxu0 0
        %1924 = vmatprep.subr.bf16.mxu0 0
        %1925 = vmatpush2.bf16.xpose.msra.mxu0 0
        %1926 = vmatprep.subr.bf16.mxu0 0
        %1927 = vmatpush2.bf16.xpose.msra.mxu0 0
        %1928 = vmatprep.subr.bf16.mxu0 0
        %1929 = vmatpush2.bf16.xpose.msra.mxu0 0
        %1930 = vmatprep.mubr.bf16.mxu0 0
        %1931 = vmatmul.mubr.bf16.gmra.mxu0 %v1851
        %v1932 = vpop.f32.mrf.mxu0
        %v1933 = vadd.f32 %v1802, %v1932
        %v1934 = vpop.f32.mrf.mxu0
        %v1935 = vpop.f32.mrf.mxu0
        %v1936 = vadd.f32 %v1803, %v1935
        %v1937 = vpop.f32.mrf.mxu0
        %1938 = vmatprep.mubr.bf16.mxu0 0
        %1939 = vmatmul.mubr.bf16.gmra.mxu0 %v1854
        %v1940 = vpop.f32.mrf.mxu0
        %v1941 = vadd.f32 %v1804, %v1940
        %v1942 = vpop.f32.mrf.mxu0
        %v1943 = vpop.f32.mrf.mxu0
        %v1944 = vadd.f32 %v1805, %v1943
        %v1945 = vpop.f32.mrf.mxu0
        %1946 = vmatprep.mubr.bf16.mxu0 0
        %1947 = vmatmul.mubr.bf16.gmra.mxu0 %v1857
        %v1948 = vpop.f32.mrf.mxu0
        %v1949 = vadd.f32 %v1806, %v1948
        %v1950 = vpop.f32.mrf.mxu0
        %v1951 = vpop.f32.mrf.mxu0
        %v1952 = vadd.f32 %v1807, %v1951
        %v1953 = vpop.f32.mrf.mxu0
        %1954 = vmatprep.mubr.bf16.mxu0 0
        %1955 = vmatmul.mubr.bf16.gmra.mxu0 %v1860
        %v1956 = vpop.f32.mrf.mxu0
        %v1957 = vadd.f32 %v1808, %v1956
        %v1958 = vpop.f32.mrf.mxu0
        %v1959 = vpop.f32.mrf.mxu0
        %v1960 = vadd.f32 %v1809, %v1959
        %v1961 = vpop.f32.mrf.mxu0
        %1962 = vmatprep.mubr.bf16.mxu0 0
        %1963 = vmatmul.mubr.bf16.gmra.mxu0 %v1863
        %v1964 = vpop.f32.mrf.mxu0
        %v1965 = vadd.f32 %v1810, %v1964
        %v1966 = vpop.f32.mrf.mxu0
        %v1967 = vpop.f32.mrf.mxu0
        %v1968 = vadd.f32 %v1811, %v1967
        %v1969 = vpop.f32.mrf.mxu0
        %1970 = vmatprep.mubr.bf16.mxu0 0
        %1971 = vmatmul.mubr.bf16.gmra.mxu0 %v1866
        %v1972 = vpop.f32.mrf.mxu0
        %v1973 = vadd.f32 %v1812, %v1972
        %v1974 = vpop.f32.mrf.mxu0
        %v1975 = vpop.f32.mrf.mxu0
        %v1976 = vadd.f32 %v1813, %v1975
        %v1977 = vpop.f32.mrf.mxu0
        %1978 = vmatprep.mubr.bf16.mxu0 0
        %1979 = vmatmul.mubr.bf16.gmra.mxu0 %v1869
        %v1980 = vpop.f32.mrf.mxu0
        %v1981 = vadd.f32 %v1814, %v1980
        %v1982 = vpop.f32.mrf.mxu0
        %v1983 = vpop.f32.mrf.mxu0
        %v1984 = vadd.f32 %v1815, %v1983
        %v1985 = vpop.f32.mrf.mxu0
        %1986 = vmatprep.mubr.bf16.mxu0 0
        %1987 = vmatmul.mubr.bf16.gmra.mxu0 %v1872
        %v1988 = vpop.f32.mrf.mxu0
        %v1989 = vadd.f32 %v1816, %v1988
        %v1990 = vpop.f32.mrf.mxu0
        %v1991 = vpop.f32.mrf.mxu0
        %v1992 = vadd.f32 %v1817, %v1991
        %v1993 = vpop.f32.mrf.mxu0
        %1994 = vdwg.mxu0
        %1995 = vmax.xlane.f32.xlu0 %v1933
        %v1996 = vpop.xlane.xlu0 %1995
        %1997 = vmax.xlane.f32.xlu0 %v1936
        %v1998 = vpop.xlane.xlu0 %1997
        %1999 = vmax.xlane.f32.xlu0 %v1941
        %v2000 = vpop.xlane.xlu0 %1999
        %2001 = vmax.xlane.f32.xlu0 %v1944
        %v2002 = vpop.xlane.xlu0 %2001
        %2003 = vmax.xlane.f32.xlu0 %v1949
        %v2004 = vpop.xlane.xlu0 %2003
        %2005 = vmax.xlane.f32.xlu0 %v1952
        %v2006 = vpop.xlane.xlu0 %2005
        %2007 = vmax.xlane.f32.xlu0 %v1957
        %v2008 = vpop.xlane.xlu0 %2007
        %2009 = vmax.xlane.f32.xlu0 %v1960
        %v2010 = vpop.xlane.xlu0 %2009
        %2011 = vmax.xlane.f32.xlu0 %v1965
        %v2012 = vpop.xlane.xlu0 %2011
        %2013 = vmax.xlane.f32.xlu0 %v1968
        %v2014 = vpop.xlane.xlu0 %2013
        %2015 = vmax.xlane.f32.xlu0 %v1973
        %v2016 = vpop.xlane.xlu0 %2015
        %2017 = vmax.xlane.f32.xlu0 %v1976
        %v2018 = vpop.xlane.xlu0 %2017
        %2019 = vmax.xlane.f32.xlu0 %v1981
        %v2020 = vpop.xlane.xlu0 %2019
        %2021 = vmax.xlane.f32.xlu0 %v1984
        %v2022 = vpop.xlane.xlu0 %2021
        %2023 = vmax.xlane.f32.xlu0 %v1989
        %v2024 = vpop.xlane.xlu0 %2023
        %2025 = vmax.xlane.f32.xlu0 %v1992
        %v2026 = vpop.xlane.xlu0 %2025
        %v2027 = vsub.f32 %v1933, %v1996
        %v2028 = vsub.f32 %v1936, %v1998
        %v2029 = vsub.f32 %v1941, %v2000
        %v2030 = vsub.f32 %v1944, %v2002
        %v2031 = vsub.f32 %v1949, %v2004
        %v2032 = vsub.f32 %v1952, %v2006
        %v2033 = vsub.f32 %v1957, %v2008
        %v2034 = vsub.f32 %v1960, %v2010
        %v2035 = vsub.f32 %v1965, %v2012
        %v2036 = vsub.f32 %v1968, %v2014
        %v2037 = vsub.f32 %v1973, %v2016
        %v2038 = vsub.f32 %v1976, %v2018
        %v2039 = vsub.f32 %v1981, %v2020
        %v2040 = vsub.f32 %v1984, %v2022
        %v2041 = vsub.f32 %v1989, %v2024
        %v2042 = vsub.f32 %v1992, %v2026
        %v2043 = vmul.f32 %v2027, 1.442695
        %v2044 = vpow.pop %v2043
        %v2045 = vmul.f32 %v2028, 1.442695
        %v2046 = vpow.pop %v2045
        %v2047 = vmul.f32 %v2029, 1.442695
        %v2048 = vpow.pop %v2047
        %v2049 = vmul.f32 %v2030, 1.442695
        %v2050 = vpow.pop %v2049
        %v2051 = vmul.f32 %v2031, 1.442695
        %v2052 = vpow.pop %v2051
        %v2053 = vmul.f32 %v2032, 1.442695
        %v2054 = vpow.pop %v2053
        %v2055 = vmul.f32 %v2033, 1.442695
        %v2056 = vpow.pop %v2055
        %v2057 = vmul.f32 %v2034, 1.442695
        %v2058 = vpow.pop %v2057
        %v2059 = vmul.f32 %v2035, 1.442695
        %v2060 = vpow.pop %v2059
        %v2061 = vmul.f32 %v2036, 1.442695
        %v2062 = vpow.pop %v2061
        %v2063 = vmul.f32 %v2037, 1.442695
        %v2064 = vpow.pop %v2063
        %v2065 = vmul.f32 %v2038, 1.442695
        %v2066 = vpow.pop %v2065
        %v2067 = vmul.f32 %v2039, 1.442695
        %v2068 = vpow.pop %v2067
        %v2069 = vmul.f32 %v2040, 1.442695
        %v2070 = vpow.pop %v2069
        %v2071 = vmul.f32 %v2041, 1.442695
        %v2072 = vpow.pop %v2071
        %v2073 = vmul.f32 %v2042, 1.442695
        %v2074 = vpow.pop %v2073
        %2075 = vadd.xlane.f32.xlu0 %v2044
        %v2076 = vpop.xlane.xlu0 %2075
        %2077 = vadd.xlane.f32.xlu0 %v2046
        %v2078 = vpop.xlane.xlu0 %2077
        %2079 = vadd.xlane.f32.xlu0 %v2048
        %v2080 = vpop.xlane.xlu0 %2079
        %2081 = vadd.xlane.f32.xlu0 %v2050
        %v2082 = vpop.xlane.xlu0 %2081
        %2083 = vadd.xlane.f32.xlu0 %v2052
        %v2084 = vpop.xlane.xlu0 %2083
        %2085 = vadd.xlane.f32.xlu0 %v2054
        %v2086 = vpop.xlane.xlu0 %2085
        %2087 = vadd.xlane.f32.xlu0 %v2056
        %v2088 = vpop.xlane.xlu0 %2087
        %2089 = vadd.xlane.f32.xlu0 %v2058
        %v2090 = vpop.xlane.xlu0 %2089
        %2091 = vadd.xlane.f32.xlu0 %v2060
        %v2092 = vpop.xlane.xlu0 %2091
        %2093 = vadd.xlane.f32.xlu0 %v2062
        %v2094 = vpop.xlane.xlu0 %2093
        %2095 = vadd.xlane.f32.xlu0 %v2064
        %v2096 = vpop.xlane.xlu0 %2095
        %2097 = vadd.xlane.f32.xlu0 %v2066
        %v2098 = vpop.xlane.xlu0 %2097
        %2099 = vadd.xlane.f32.xlu0 %v2068
        %v2100 = vpop.xlane.xlu0 %2099
        %2101 = vadd.xlane.f32.xlu0 %v2070
        %v2102 = vpop.xlane.xlu0 %2101
        %2103 = vadd.xlane.f32.xlu0 %v2072
        %v2104 = vpop.xlane.xlu0 %2103
        %2105 = vadd.xlane.f32.xlu0 %v2074
        %v2106 = vpop.xlane.xlu0 %2105
        %v2107 = vrcp.pop %v2076
        %v2108 = vrcp.pop %v2078
        %v2109 = vrcp.pop %v2080
        %v2110 = vrcp.pop %v2082
        %v2111 = vrcp.pop %v2084
        %v2112 = vrcp.pop %v2086
        %v2113 = vrcp.pop %v2088
        %v2114 = vrcp.pop %v2090
        %v2115 = vrcp.pop %v2092
        %v2116 = vrcp.pop %v2094
        %v2117 = vrcp.pop %v2096
        %v2118 = vrcp.pop %v2098
        %v2119 = vrcp.pop %v2100
        %v2120 = vrcp.pop %v2102
        %v2121 = vrcp.pop %v2104
        %v2122 = vrcp.pop %v2106
        %v2123 = vmul.f32 %v2044, %v2107
        %v2124 = vmul.f32 %v2046, %v2108
        %v2125 = vmul.f32 %v2048, %v2109
        %v2126 = vmul.f32 %v2050, %v2110
        %v2127 = vmul.f32 %v2052, %v2111
        %v2128 = vmul.f32 %v2054, %v2112
        %v2129 = vmul.f32 %v2056, %v2113
        %v2130 = vmul.f32 %v2058, %v2114
        %v2131 = vmul.f32 %v2060, %v2115
        %v2132 = vmul.f32 %v2062, %v2116
        %v2133 = vmul.f32 %v2064, %v2117
        %v2134 = vmul.f32 %v2066, %v2118
        %v2135 = vmul.f32 %v2068, %v2119
        %v2136 = vmul.f32 %v2070, %v2120
        %v2137 = vmul.f32 %v2072, %v2121
        %v2138 = vmul.f32 %v2074, %v2122
        %v2139 = vpack.c.bf16 %v2124, %v2123
        %v2140 = vpack.c.bf16 %v2126, %v2125
        %v2141 = vpack.c.bf16 %v2128, %v2127
        %v2142 = vpack.c.bf16 %v2130, %v2129
        %v2143 = vpack.c.bf16 %v2132, %v2131
        %v2144 = vpack.c.bf16 %v2134, %v2133
        %v2145 = vpack.c.bf16 %v2136, %v2135
        %v2146 = vpack.c.bf16 %v2138, %v2137
        %2147 = vrot.lane.b32.xlu0 %v1688, 96
        %v2148 = vpop.permute.xlu0 %2147
        %2149 = vrot.lane.b32.xlu0 %v1689, 96
        %v2150 = vpop.permute.xlu0 %2149
        %2151 = vrot.lane.b32.xlu0 %v1690, 96
        %v2152 = vpop.permute.xlu0 %2151
        %2153 = vrot.lane.b32.xlu0 %v1691, 96
        %v2154 = vpop.permute.xlu0 %2153
        %2155 = vrot.lane.b32.xlu0 %v1692, 96
        %v2156 = vpop.permute.xlu0 %2155
        %2157 = vrot.lane.b32.xlu0 %v1693, 96
        %v2158 = vpop.permute.xlu0 %2157
        %2159 = vrot.lane.b32.xlu0 %v1694, 96
        %v2160 = vpop.permute.xlu0 %2159
        %2161 = vrot.lane.b32.xlu0 %v1695, 96
        %v2162 = vpop.permute.xlu0 %2161
        %2171 = vmatprep.subr.bf16.mxu0 0
        %2172 = vmatpush1.bf16.msra.mxu0 %v2162
        %2173 = vmatprep.subr.bf16.mxu0 0
        %2174 = vmatpush1.bf16.msra.mxu0 %v2160
        %2175 = vmatprep.subr.bf16.mxu0 0
        %2176 = vmatpush1.bf16.msra.mxu0 %v2158
        %2177 = vmatprep.subr.bf16.mxu0 0
        %2178 = vmatpush1.bf16.msra.mxu0 %v2156
        %2179 = vmatprep.subr.bf16.mxu0 0
        %2180 = vmatpush1.bf16.msra.mxu0 %v2154
        %2181 = vmatprep.subr.bf16.mxu0 0
        %2182 = vmatpush1.bf16.msra.mxu0 %v2152
        %2183 = vmatprep.subr.bf16.mxu0 0
        %2184 = vmatpush1.bf16.msra.mxu0 %v2150
        %2185 = vmatprep.subr.bf16.mxu0 0
        %2186 = vmatpush1.bf16.msra.mxu0 %v2148
        %2187 = vmatprep.subr.bf16.mxu0 0
        %2188 = vmatpush2.bf16.msra.mxu0 0
        %2189 = vmatprep.subr.bf16.mxu0 0
        %2190 = vmatpush2.bf16.msra.mxu0 0
        %2191 = vmatprep.subr.bf16.mxu0 0
        %2192 = vmatpush2.bf16.msra.mxu0 0
        %2193 = vmatprep.subr.bf16.mxu0 0
        %2194 = vmatpush2.bf16.msra.mxu0 0
        %2195 = vmatprep.subr.bf16.mxu0 0
        %2196 = vmatpush2.bf16.msra.mxu0 0
        %2197 = vmatprep.subr.bf16.mxu0 0
        %2198 = vmatpush2.bf16.msra.mxu0 0
        %2199 = vmatprep.subr.bf16.mxu0 0
        %2200 = vmatpush2.bf16.msra.mxu0 0
        %2201 = vmatprep.subr.bf16.mxu0 0
        %2202 = vmatpush2.bf16.msra.mxu0 0
        %2203 = vmatprep.mubr.bf16.mxu0 0
        %2204 = vmatmul.mubr.bf16.gmra.mxu0 %v2139
        %v2205 = vpop.f32.mrf.mxu0
        %v2206 = vadd.f32 0.0, %v2205
        %v2207 = vpop.f32.mrf.mxu0
        %v2208 = vpop.f32.mrf.mxu0
        %v2209 = vadd.f32 0.0, %v2208
        %v2210 = vpop.f32.mrf.mxu0
        %2211 = vmatprep.mubr.bf16.mxu0 0
        %2212 = vmatmul.mubr.bf16.gmra.mxu0 %v2140
        %v2213 = vpop.f32.mrf.mxu0
        %v2214 = vadd.f32 0.0, %v2213
        %v2215 = vpop.f32.mrf.mxu0
        %v2216 = vpop.f32.mrf.mxu0
        %v2217 = vadd.f32 0.0, %v2216
        %v2218 = vpop.f32.mrf.mxu0
        %2219 = vmatprep.mubr.bf16.mxu0 0
        %2220 = vmatmul.mubr.bf16.gmra.mxu0 %v2141
        %v2221 = vpop.f32.mrf.mxu0
        %v2222 = vadd.f32 0.0, %v2221
        %v2223 = vpop.f32.mrf.mxu0
        %v2224 = vpop.f32.mrf.mxu0
        %v2225 = vadd.f32 0.0, %v2224
        %v2226 = vpop.f32.mrf.mxu0
        %2227 = vmatprep.mubr.bf16.mxu0 0
        %2228 = vmatmul.mubr.bf16.gmra.mxu0 %v2142
        %v2229 = vpop.f32.mrf.mxu0
        %v2230 = vadd.f32 0.0, %v2229
        %v2231 = vpop.f32.mrf.mxu0
        %v2232 = vpop.f32.mrf.mxu0
        %v2233 = vadd.f32 0.0, %v2232
        %v2234 = vpop.f32.mrf.mxu0
        %2235 = vmatprep.mubr.bf16.mxu0 0
        %2236 = vmatmul.mubr.bf16.gmra.mxu0 %v2143
        %v2237 = vpop.f32.mrf.mxu0
        %v2238 = vadd.f32 0.0, %v2237
        %v2239 = vpop.f32.mrf.mxu0
        %v2240 = vpop.f32.mrf.mxu0
        %v2241 = vadd.f32 0.0, %v2240
        %v2242 = vpop.f32.mrf.mxu0
        %2243 = vmatprep.mubr.bf16.mxu0 0
        %2244 = vmatmul.mubr.bf16.gmra.mxu0 %v2144
        %v2245 = vpop.f32.mrf.mxu0
        %v2246 = vadd.f32 0.0, %v2245
        %v2247 = vpop.f32.mrf.mxu0
        %v2248 = vpop.f32.mrf.mxu0
        %v2249 = vadd.f32 0.0, %v2248
        %v2250 = vpop.f32.mrf.mxu0
        %2251 = vmatprep.mubr.bf16.mxu0 0
        %2252 = vmatmul.mubr.bf16.gmra.mxu0 %v2145
        %v2253 = vpop.f32.mrf.mxu0
        %v2254 = vadd.f32 0.0, %v2253
        %v2255 = vpop.f32.mrf.mxu0
        %v2256 = vpop.f32.mrf.mxu0
        %v2257 = vadd.f32 0.0, %v2256
        %v2258 = vpop.f32.mrf.mxu0
        %2259 = vmatprep.mubr.bf16.mxu0 0
        %2260 = vmatmul.mubr.bf16.gmra.mxu0 %v2146
        %v2261 = vpop.f32.mrf.mxu0
        %v2262 = vadd.f32 0.0, %v2261
        %v2263 = vpop.f32.mrf.mxu0
        %v2264 = vpop.f32.mrf.mxu0
        %v2265 = vadd.f32 0.0, %v2264
        %v2266 = vpop.f32.mrf.mxu0
        %2267 = vdwg.mxu0
        %s2268 = scalar_lea.vmem %s391, 256 [#allocation7]
        %v2269 = vld [vmem:[%s2268] sm:$0xff]
        %v2270 = vld [vmem:[%s2268 + $0x8] sm:$0xff]
        %v2271 = vld [vmem:[%s2268 + $0x10] sm:$0xff]
        %v2272 = vld [vmem:[%s2268 + $0x18] sm:$0xff]
        %v2273 = vld [vmem:[%s2268 + $0x20] sm:$0xff]
        %v2274 = vld [vmem:[%s2268 + $0x28] sm:$0xff]
        %v2275 = vld [vmem:[%s2268 + $0x30] sm:$0xff]
        %v2276 = vld [vmem:[%s2268 + $0x38] sm:$0xff]
        %v2277 = vld [vmem:[%s2268 + $0x40] sm:$0xff]
        %v2278 = vld [vmem:[%s2268 + $0x48] sm:$0xff]
        %v2279 = vld [vmem:[%s2268 + $0x50] sm:$0xff]
        %v2280 = vld [vmem:[%s2268 + $0x58] sm:$0xff]
        %v2281 = vld [vmem:[%s2268 + $0x60] sm:$0xff]
        %v2282 = vld [vmem:[%s2268 + $0x68] sm:$0xff]
        %v2283 = vld [vmem:[%s2268 + $0x70] sm:$0xff]
        %v2284 = vld [vmem:[%s2268 + $0x78] sm:$0xff]
        %2285 = vrot.lane.b32.xlu0 %v1310, 64
        %v2286 = vpop.permute.xlu0 %2285
        %2287 = vrot.lane.b32.xlu0 %v1311, 64
        %v2288 = vpop.permute.xlu0 %2287
        %2289 = vrot.lane.b32.xlu0 %v1312, 64
        %v2290 = vpop.permute.xlu0 %2289
        %2291 = vrot.lane.b32.xlu0 %v1313, 64
        %v2292 = vpop.permute.xlu0 %2291
        %2293 = vrot.lane.b32.xlu0 %v1314, 64
        %v2294 = vpop.permute.xlu0 %2293
        %2295 = vrot.lane.b32.xlu0 %v1315, 64
        %v2296 = vpop.permute.xlu0 %2295
        %2297 = vrot.lane.b32.xlu0 %v1316, 64
        %v2298 = vpop.permute.xlu0 %2297
        %2299 = vrot.lane.b32.xlu0 %v1317, 64
        %v2300 = vpop.permute.xlu0 %2299
        %2301 = vrot.lane.b32.xlu0 %v1350, 64
        %v2302 = vpop.permute.xlu0 %2301
        %2303 = vrot.lane.b32.xlu0 %v1351, 64
        %v2304 = vpop.permute.xlu0 %2303
        %2305 = vrot.lane.b32.xlu0 %v1352, 64
        %v2306 = vpop.permute.xlu0 %2305
        %2307 = vrot.lane.b32.xlu0 %v1353, 64
        %v2308 = vpop.permute.xlu0 %2307
        %2309 = vrot.lane.b32.xlu0 %v1354, 64
        %v2310 = vpop.permute.xlu0 %2309
        %2311 = vrot.lane.b32.xlu0 %v1355, 64
        %v2312 = vpop.permute.xlu0 %2311
        %2313 = vrot.lane.b32.xlu0 %v1356, 64
        %v2314 = vpop.permute.xlu0 %2313
        %2315 = vrot.lane.b32.xlu0 %v1357, 64
        %v2316 = vpop.permute.xlu0 %2315
        %v2318 = vsel %vm1358, %v2286, 0
        %v2321 = vsel %vm1358, %v2288, 0
        %v2324 = vsel %vm1358, %v2290, 0
        %v2327 = vsel %vm1358, %v2292, 0
        %v2330 = vsel %vm1358, %v2294, 0
        %v2333 = vsel %vm1358, %v2296, 0
        %v2336 = vsel %vm1358, %v2298, 0
        %v2339 = vsel %vm1358, %v2300, 0
        %v2342 = vsel %vm1358, %v2302, 0
        %v2345 = vsel %vm1358, %v2304, 0
        %v2348 = vsel %vm1358, %v2306, 0
        %v2351 = vsel %vm1358, %v2308, 0
        %v2354 = vsel %vm1358, %v2310, 0
        %v2357 = vsel %vm1358, %v2312, 0
        %v2360 = vsel %vm1358, %v2314, 0
        %v2363 = vsel %vm1358, %v2316, 0
        %2365 = vmatprep.subr.bf16.mxu0 0
        %2366 = vmatpush1.bf16.xpose.msra.mxu0 %v2363
        %2367 = vmatprep.subr.bf16.mxu0 0
        %2368 = vmatpush1.bf16.xpose.msra.mxu0 %v2360
        %2369 = vmatprep.subr.bf16.mxu0 0
        %2370 = vmatpush1.bf16.xpose.msra.mxu0 %v2357
        %2371 = vmatprep.subr.bf16.mxu0 0
        %2372 = vmatpush1.bf16.xpose.msra.mxu0 %v2354
        %2373 = vmatprep.subr.bf16.mxu0 0
        %2374 = vmatpush1.bf16.xpose.msra.mxu0 %v2351
        %2375 = vmatprep.subr.bf16.mxu0 0
        %2376 = vmatpush1.bf16.xpose.msra.mxu0 %v2348
        %2377 = vmatprep.subr.bf16.mxu0 0
        %2378 = vmatpush1.bf16.xpose.msra.mxu0 %v2345
        %2379 = vmatprep.subr.bf16.mxu0 0
        %2380 = vmatpush1.bf16.xpose.msra.mxu0 %v2342
        %2381 = vmatprep.subr.bf16.mxu0 0
        %2382 = vmatpush2.bf16.xpose.msra.mxu0 0
        %2383 = vmatprep.subr.bf16.mxu0 0
        %2384 = vmatpush2.bf16.xpose.msra.mxu0 0
        %2385 = vmatprep.subr.bf16.mxu0 0
        %2386 = vmatpush2.bf16.xpose.msra.mxu0 0
        %2387 = vmatprep.subr.bf16.mxu0 0
        %2388 = vmatpush2.bf16.xpose.msra.mxu0 0
        %2389 = vmatprep.subr.bf16.mxu0 0
        %2390 = vmatpush2.bf16.xpose.msra.mxu0 0
        %2391 = vmatprep.subr.bf16.mxu0 0
        %2392 = vmatpush2.bf16.xpose.msra.mxu0 0
        %2393 = vmatprep.subr.bf16.mxu0 0
        %2394 = vmatpush2.bf16.xpose.msra.mxu0 0
        %2395 = vmatprep.subr.bf16.mxu0 0
        %2396 = vmatpush2.bf16.xpose.msra.mxu0 0
        %2397 = vmatprep.mubr.bf16.mxu0 0
        %2398 = vmatmul.mubr.bf16.gmra.mxu0 %v2318
        %v2399 = vpop.f32.mrf.mxu0
        %v2400 = vadd.f32 %v2269, %v2399
        %v2401 = vpop.f32.mrf.mxu0
        %v2402 = vpop.f32.mrf.mxu0
        %v2403 = vadd.f32 %v2270, %v2402
        %v2404 = vpop.f32.mrf.mxu0
        %2405 = vmatprep.mubr.bf16.mxu0 0
        %2406 = vmatmul.mubr.bf16.gmra.mxu0 %v2321
        %v2407 = vpop.f32.mrf.mxu0
        %v2408 = vadd.f32 %v2271, %v2407
        %v2409 = vpop.f32.mrf.mxu0
        %v2410 = vpop.f32.mrf.mxu0
        %v2411 = vadd.f32 %v2272, %v2410
        %v2412 = vpop.f32.mrf.mxu0
        %2413 = vmatprep.mubr.bf16.mxu0 0
        %2414 = vmatmul.mubr.bf16.gmra.mxu0 %v2324
        %v2415 = vpop.f32.mrf.mxu0
        %v2416 = vadd.f32 %v2273, %v2415
        %v2417 = vpop.f32.mrf.mxu0
        %v2418 = vpop.f32.mrf.mxu0
        %v2419 = vadd.f32 %v2274, %v2418
        %v2420 = vpop.f32.mrf.mxu0
        %2421 = vmatprep.mubr.bf16.mxu0 0
        %2422 = vmatmul.mubr.bf16.gmra.mxu0 %v2327
        %v2423 = vpop.f32.mrf.mxu0
        %v2424 = vadd.f32 %v2275, %v2423
        %v2425 = vpop.f32.mrf.mxu0
        %v2426 = vpop.f32.mrf.mxu0
        %v2427 = vadd.f32 %v2276, %v2426
        %v2428 = vpop.f32.mrf.mxu0
        %2429 = vmatprep.mubr.bf16.mxu0 0
        %2430 = vmatmul.mubr.bf16.gmra.mxu0 %v2330
        %v2431 = vpop.f32.mrf.mxu0
        %v2432 = vadd.f32 %v2277, %v2431
        %v2433 = vpop.f32.mrf.mxu0
        %v2434 = vpop.f32.mrf.mxu0
        %v2435 = vadd.f32 %v2278, %v2434
        %v2436 = vpop.f32.mrf.mxu0
        %2437 = vmatprep.mubr.bf16.mxu0 0
        %2438 = vmatmul.mubr.bf16.gmra.mxu0 %v2333
        %v2439 = vpop.f32.mrf.mxu0
        %v2440 = vadd.f32 %v2279, %v2439
        %v2441 = vpop.f32.mrf.mxu0
        %v2442 = vpop.f32.mrf.mxu0
        %v2443 = vadd.f32 %v2280, %v2442
        %v2444 = vpop.f32.mrf.mxu0
        %2445 = vmatprep.mubr.bf16.mxu0 0
        %2446 = vmatmul.mubr.bf16.gmra.mxu0 %v2336
        %v2447 = vpop.f32.mrf.mxu0
        %v2448 = vadd.f32 %v2281, %v2447
        %v2449 = vpop.f32.mrf.mxu0
        %v2450 = vpop.f32.mrf.mxu0
        %v2451 = vadd.f32 %v2282, %v2450
        %v2452 = vpop.f32.mrf.mxu0
        %2453 = vmatprep.mubr.bf16.mxu0 0
        %2454 = vmatmul.mubr.bf16.gmra.mxu0 %v2339
        %v2455 = vpop.f32.mrf.mxu0
        %v2456 = vadd.f32 %v2283, %v2455
        %v2457 = vpop.f32.mrf.mxu0
        %v2458 = vpop.f32.mrf.mxu0
        %v2459 = vadd.f32 %v2284, %v2458
        %v2460 = vpop.f32.mrf.mxu0
        %2461 = vdwg.mxu0
        %2462 = vmax.xlane.f32.xlu0 %v2400
        %v2463 = vpop.xlane.xlu0 %2462
        %2464 = vmax.xlane.f32.xlu0 %v2403
        %v2465 = vpop.xlane.xlu0 %2464
        %2466 = vmax.xlane.f32.xlu0 %v2408
        %v2467 = vpop.xlane.xlu0 %2466
        %2468 = vmax.xlane.f32.xlu0 %v2411
        %v2469 = vpop.xlane.xlu0 %2468
        %2470 = vmax.xlane.f32.xlu0 %v2416
        %v2471 = vpop.xlane.xlu0 %2470
        %2472 = vmax.xlane.f32.xlu0 %v2419
        %v2473 = vpop.xlane.xlu0 %2472
        %2474 = vmax.xlane.f32.xlu0 %v2424
        %v2475 = vpop.xlane.xlu0 %2474
        %2476 = vmax.xlane.f32.xlu0 %v2427
        %v2477 = vpop.xlane.xlu0 %2476
        %2478 = vmax.xlane.f32.xlu0 %v2432
        %v2479 = vpop.xlane.xlu0 %2478
        %2480 = vmax.xlane.f32.xlu0 %v2435
        %v2481 = vpop.xlane.xlu0 %2480
        %2482 = vmax.xlane.f32.xlu0 %v2440
        %v2483 = vpop.xlane.xlu0 %2482
        %2484 = vmax.xlane.f32.xlu0 %v2443
        %v2485 = vpop.xlane.xlu0 %2484
        %2486 = vmax.xlane.f32.xlu0 %v2448
        %v2487 = vpop.xlane.xlu0 %2486
        %2488 = vmax.xlane.f32.xlu0 %v2451
        %v2489 = vpop.xlane.xlu0 %2488
        %2490 = vmax.xlane.f32.xlu0 %v2456
        %v2491 = vpop.xlane.xlu0 %2490
        %2492 = vmax.xlane.f32.xlu0 %v2459
        %v2493 = vpop.xlane.xlu0 %2492
        %v2494 = vsub.f32 %v2400, %v2463
        %v2495 = vsub.f32 %v2403, %v2465
        %v2496 = vsub.f32 %v2408, %v2467
        %v2497 = vsub.f32 %v2411, %v2469
        %v2498 = vsub.f32 %v2416, %v2471
        %v2499 = vsub.f32 %v2419, %v2473
        %v2500 = vsub.f32 %v2424, %v2475
        %v2501 = vsub.f32 %v2427, %v2477
        %v2502 = vsub.f32 %v2432, %v2479
        %v2503 = vsub.f32 %v2435, %v2481
        %v2504 = vsub.f32 %v2440, %v2483
        %v2505 = vsub.f32 %v2443, %v2485
        %v2506 = vsub.f32 %v2448, %v2487
        %v2507 = vsub.f32 %v2451, %v2489
        %v2508 = vsub.f32 %v2456, %v2491
        %v2509 = vsub.f32 %v2459, %v2493
        %v2510 = vmul.f32 %v2494, 1.442695
        %v2511 = vpow.pop %v2510
        %v2512 = vmul.f32 %v2495, 1.442695
        %v2513 = vpow.pop %v2512
        %v2514 = vmul.f32 %v2496, 1.442695
        %v2515 = vpow.pop %v2514
        %v2516 = vmul.f32 %v2497, 1.442695
        %v2517 = vpow.pop %v2516
        %v2518 = vmul.f32 %v2498, 1.442695
        %v2519 = vpow.pop %v2518
        %v2520 = vmul.f32 %v2499, 1.442695
        %v2521 = vpow.pop %v2520
        %v2522 = vmul.f32 %v2500, 1.442695
        %v2523 = vpow.pop %v2522
        %v2524 = vmul.f32 %v2501, 1.442695
        %v2525 = vpow.pop %v2524
        %v2526 = vmul.f32 %v2502, 1.442695
        %v2527 = vpow.pop %v2526
        %v2528 = vmul.f32 %v2503, 1.442695
        %v2529 = vpow.pop %v2528
        %v2530 = vmul.f32 %v2504, 1.442695
        %v2531 = vpow.pop %v2530
        %v2532 = vmul.f32 %v2505, 1.442695
        %v2533 = vpow.pop %v2532
        %v2534 = vmul.f32 %v2506, 1.442695
        %v2535 = vpow.pop %v2534
        %v2536 = vmul.f32 %v2507, 1.442695
        %v2537 = vpow.pop %v2536
        %v2538 = vmul.f32 %v2508, 1.442695
        %v2539 = vpow.pop %v2538
        %v2540 = vmul.f32 %v2509, 1.442695
        %v2541 = vpow.pop %v2540
        %2542 = vadd.xlane.f32.xlu0 %v2511
        %v2543 = vpop.xlane.xlu0 %2542
        %2544 = vadd.xlane.f32.xlu0 %v2513
        %v2545 = vpop.xlane.xlu0 %2544
        %2546 = vadd.xlane.f32.xlu0 %v2515
        %v2547 = vpop.xlane.xlu0 %2546
        %2548 = vadd.xlane.f32.xlu0 %v2517
        %v2549 = vpop.xlane.xlu0 %2548
        %2550 = vadd.xlane.f32.xlu0 %v2519
        %v2551 = vpop.xlane.xlu0 %2550
        %2552 = vadd.xlane.f32.xlu0 %v2521
        %v2553 = vpop.xlane.xlu0 %2552
        %2554 = vadd.xlane.f32.xlu0 %v2523
        %v2555 = vpop.xlane.xlu0 %2554
        %2556 = vadd.xlane.f32.xlu0 %v2525
        %v2557 = vpop.xlane.xlu0 %2556
        %2558 = vadd.xlane.f32.xlu0 %v2527
        %v2559 = vpop.xlane.xlu0 %2558
        %2560 = vadd.xlane.f32.xlu0 %v2529
        %v2561 = vpop.xlane.xlu0 %2560
        %2562 = vadd.xlane.f32.xlu0 %v2531
        %v2563 = vpop.xlane.xlu0 %2562
        %2564 = vadd.xlane.f32.xlu0 %v2533
        %v2565 = vpop.xlane.xlu0 %2564
        %2566 = vadd.xlane.f32.xlu0 %v2535
        %v2567 = vpop.xlane.xlu0 %2566
        %2568 = vadd.xlane.f32.xlu0 %v2537
        %v2569 = vpop.xlane.xlu0 %2568
        %2570 = vadd.xlane.f32.xlu0 %v2539
        %v2571 = vpop.xlane.xlu0 %2570
        %2572 = vadd.xlane.f32.xlu0 %v2541
        %v2573 = vpop.xlane.xlu0 %2572
        %v2574 = vrcp.pop %v2543
        %v2575 = vrcp.pop %v2545
        %v2576 = vrcp.pop %v2547
        %v2577 = vrcp.pop %v2549
        %v2578 = vrcp.pop %v2551
        %v2579 = vrcp.pop %v2553
        %v2580 = vrcp.pop %v2555
        %v2581 = vrcp.pop %v2557
        %v2582 = vrcp.pop %v2559
        %v2583 = vrcp.pop %v2561
        %v2584 = vrcp.pop %v2563
        %v2585 = vrcp.pop %v2565
        %v2586 = vrcp.pop %v2567
        %v2587 = vrcp.pop %v2569
        %v2588 = vrcp.pop %v2571
        %v2589 = vrcp.pop %v2573
        %v2590 = vmul.f32 %v2511, %v2574
        %v2591 = vmul.f32 %v2513, %v2575
        %v2592 = vmul.f32 %v2515, %v2576
        %v2593 = vmul.f32 %v2517, %v2577
        %v2594 = vmul.f32 %v2519, %v2578
        %v2595 = vmul.f32 %v2521, %v2579
        %v2596 = vmul.f32 %v2523, %v2580
        %v2597 = vmul.f32 %v2525, %v2581
        %v2598 = vmul.f32 %v2527, %v2582
        %v2599 = vmul.f32 %v2529, %v2583
        %v2600 = vmul.f32 %v2531, %v2584
        %v2601 = vmul.f32 %v2533, %v2585
        %v2602 = vmul.f32 %v2535, %v2586
        %v2603 = vmul.f32 %v2537, %v2587
        %v2604 = vmul.f32 %v2539, %v2588
        %v2605 = vmul.f32 %v2541, %v2589
        %v2606 = vpack.c.bf16 %v2591, %v2590
        %v2607 = vpack.c.bf16 %v2593, %v2592
        %v2608 = vpack.c.bf16 %v2595, %v2594
        %v2609 = vpack.c.bf16 %v2597, %v2596
        %v2610 = vpack.c.bf16 %v2599, %v2598
        %v2611 = vpack.c.bf16 %v2601, %v2600
        %v2612 = vpack.c.bf16 %v2603, %v2602
        %v2613 = vpack.c.bf16 %v2605, %v2604
        %2614 = vrot.lane.b32.xlu0 %v1688, 64
        %v2615 = vpop.permute.xlu0 %2614
        %2616 = vrot.lane.b32.xlu0 %v1689, 64
        %v2617 = vpop.permute.xlu0 %2616
        %2618 = vrot.lane.b32.xlu0 %v1690, 64
        %v2619 = vpop.permute.xlu0 %2618
        %2620 = vrot.lane.b32.xlu0 %v1691, 64
        %v2621 = vpop.permute.xlu0 %2620
        %2622 = vrot.lane.b32.xlu0 %v1692, 64
        %v2623 = vpop.permute.xlu0 %2622
        %2624 = vrot.lane.b32.xlu0 %v1693, 64
        %v2625 = vpop.permute.xlu0 %2624
        %2626 = vrot.lane.b32.xlu0 %v1694, 64
        %v2627 = vpop.permute.xlu0 %2626
        %2628 = vrot.lane.b32.xlu0 %v1695, 64
        %v2629 = vpop.permute.xlu0 %2628
        %2638 = vmatprep.subr.bf16.mxu0 0
        %2639 = vmatpush1.bf16.msra.mxu0 %v2629
        %2640 = vmatprep.subr.bf16.mxu0 0
        %2641 = vmatpush1.bf16.msra.mxu0 %v2627
        %2642 = vmatprep.subr.bf16.mxu0 0
        %2643 = vmatpush1.bf16.msra.mxu0 %v2625
        %2644 = vmatprep.subr.bf16.mxu0 0
        %2645 = vmatpush1.bf16.msra.mxu0 %v2623
        %2646 = vmatprep.subr.bf16.mxu0 0
        %2647 = vmatpush1.bf16.msra.mxu0 %v2621
        %2648 = vmatprep.subr.bf16.mxu0 0
        %2649 = vmatpush1.bf16.msra.mxu0 %v2619
        %2650 = vmatprep.subr.bf16.mxu0 0
        %2651 = vmatpush1.bf16.msra.mxu0 %v2617
        %2652 = vmatprep.subr.bf16.mxu0 0
        %2653 = vmatpush1.bf16.msra.mxu0 %v2615
        %2654 = vmatprep.subr.bf16.mxu0 0
        %2655 = vmatpush2.bf16.msra.mxu0 0
        %2656 = vmatprep.subr.bf16.mxu0 0
        %2657 = vmatpush2.bf16.msra.mxu0 0
        %2658 = vmatprep.subr.bf16.mxu0 0
        %2659 = vmatpush2.bf16.msra.mxu0 0
        %2660 = vmatprep.subr.bf16.mxu0 0
        %2661 = vmatpush2.bf16.msra.mxu0 0
        %2662 = vmatprep.subr.bf16.mxu0 0
        %2663 = vmatpush2.bf16.msra.mxu0 0
        %2664 = vmatprep.subr.bf16.mxu0 0
        %2665 = vmatpush2.bf16.msra.mxu0 0
        %2666 = vmatprep.subr.bf16.mxu0 0
        %2667 = vmatpush2.bf16.msra.mxu0 0
        %2668 = vmatprep.subr.bf16.mxu0 0
        %2669 = vmatpush2.bf16.msra.mxu0 0
        %2670 = vmatprep.mubr.bf16.mxu0 0
        %2671 = vmatmul.mubr.bf16.gmra.mxu0 %v2606
        %v2672 = vpop.f32.mrf.mxu0
        %v2673 = vadd.f32 0.0, %v2672
        %v2674 = vpop.f32.mrf.mxu0
        %v2675 = vpop.f32.mrf.mxu0
        %v2676 = vadd.f32 0.0, %v2675
        %v2677 = vpop.f32.mrf.mxu0
        %2678 = vmatprep.mubr.bf16.mxu0 0
        %2679 = vmatmul.mubr.bf16.gmra.mxu0 %v2607
        %v2680 = vpop.f32.mrf.mxu0
        %v2681 = vadd.f32 0.0, %v2680
        %v2682 = vpop.f32.mrf.mxu0
        %v2683 = vpop.f32.mrf.mxu0
        %v2684 = vadd.f32 0.0, %v2683
        %v2685 = vpop.f32.mrf.mxu0
        %2686 = vmatprep.mubr.bf16.mxu0 0
        %2687 = vmatmul.mubr.bf16.gmra.mxu0 %v2608
        %v2688 = vpop.f32.mrf.mxu0
        %v2689 = vadd.f32 0.0, %v2688
        %v2690 = vpop.f32.mrf.mxu0
        %v2691 = vpop.f32.mrf.mxu0
        %v2692 = vadd.f32 0.0, %v2691
        %v2693 = vpop.f32.mrf.mxu0
        %2694 = vmatprep.mubr.bf16.mxu0 0
        %2695 = vmatmul.mubr.bf16.gmra.mxu0 %v2609
        %v2696 = vpop.f32.mrf.mxu0
        %v2697 = vadd.f32 0.0, %v2696
        %v2698 = vpop.f32.mrf.mxu0
        %v2699 = vpop.f32.mrf.mxu0
        %v2700 = vadd.f32 0.0, %v2699
        %v2701 = vpop.f32.mrf.mxu0
        %2702 = vmatprep.mubr.bf16.mxu0 0
        %2703 = vmatmul.mubr.bf16.gmra.mxu0 %v2610
        %v2704 = vpop.f32.mrf.mxu0
        %v2705 = vadd.f32 0.0, %v2704
        %v2706 = vpop.f32.mrf.mxu0
        %v2707 = vpop.f32.mrf.mxu0
        %v2708 = vadd.f32 0.0, %v2707
        %v2709 = vpop.f32.mrf.mxu0
        %2710 = vmatprep.mubr.bf16.mxu0 0
        %2711 = vmatmul.mubr.bf16.gmra.mxu0 %v2611
        %v2712 = vpop.f32.mrf.mxu0
        %v2713 = vadd.f32 0.0, %v2712
        %v2714 = vpop.f32.mrf.mxu0
        %v2715 = vpop.f32.mrf.mxu0
        %v2716 = vadd.f32 0.0, %v2715
        %v2717 = vpop.f32.mrf.mxu0
        %2718 = vmatprep.mubr.bf16.mxu0 0
        %2719 = vmatmul.mubr.bf16.gmra.mxu0 %v2612
        %v2720 = vpop.f32.mrf.mxu0
        %v2721 = vadd.f32 0.0, %v2720
        %v2722 = vpop.f32.mrf.mxu0
        %v2723 = vpop.f32.mrf.mxu0
        %v2724 = vadd.f32 0.0, %v2723
        %v2725 = vpop.f32.mrf.mxu0
        %2726 = vmatprep.mubr.bf16.mxu0 0
        %2727 = vmatmul.mubr.bf16.gmra.mxu0 %v2613
        %v2728 = vpop.f32.mrf.mxu0
        %v2729 = vadd.f32 0.0, %v2728
        %v2730 = vpop.f32.mrf.mxu0
        %v2731 = vpop.f32.mrf.mxu0
        %v2732 = vadd.f32 0.0, %v2731
        %v2733 = vpop.f32.mrf.mxu0
        %2734 = vdwg.mxu0
        %s2735 = scalar_lea.vmem %s391, 384 [#allocation7]
        %v2736 = vld [vmem:[%s2735] sm:$0xff]
        %v2737 = vld [vmem:[%s2735 + $0x8] sm:$0xff]
        %v2738 = vld [vmem:[%s2735 + $0x10] sm:$0xff]
        %v2739 = vld [vmem:[%s2735 + $0x18] sm:$0xff]
        %v2740 = vld [vmem:[%s2735 + $0x20] sm:$0xff]
        %v2741 = vld [vmem:[%s2735 + $0x28] sm:$0xff]
        %v2742 = vld [vmem:[%s2735 + $0x30] sm:$0xff]
        %v2743 = vld [vmem:[%s2735 + $0x38] sm:$0xff]
        %v2744 = vld [vmem:[%s2735 + $0x40] sm:$0xff]
        %v2745 = vld [vmem:[%s2735 + $0x48] sm:$0xff]
        %v2746 = vld [vmem:[%s2735 + $0x50] sm:$0xff]
        %v2747 = vld [vmem:[%s2735 + $0x58] sm:$0xff]
        %v2748 = vld [vmem:[%s2735 + $0x60] sm:$0xff]
        %v2749 = vld [vmem:[%s2735 + $0x68] sm:$0xff]
        %v2750 = vld [vmem:[%s2735 + $0x70] sm:$0xff]
        %v2751 = vld [vmem:[%s2735 + $0x78] sm:$0xff]
        %2752 = vrot.lane.b32.xlu0 %v1310, 32
        %v2753 = vpop.permute.xlu0 %2752
        %2754 = vrot.lane.b32.xlu0 %v1311, 32
        %v2755 = vpop.permute.xlu0 %2754
        %2756 = vrot.lane.b32.xlu0 %v1312, 32
        %v2757 = vpop.permute.xlu0 %2756
        %2758 = vrot.lane.b32.xlu0 %v1313, 32
        %v2759 = vpop.permute.xlu0 %2758
        %2760 = vrot.lane.b32.xlu0 %v1314, 32
        %v2761 = vpop.permute.xlu0 %2760
        %2762 = vrot.lane.b32.xlu0 %v1315, 32
        %v2763 = vpop.permute.xlu0 %2762
        %2764 = vrot.lane.b32.xlu0 %v1316, 32
        %v2765 = vpop.permute.xlu0 %2764
        %2766 = vrot.lane.b32.xlu0 %v1317, 32
        %v2767 = vpop.permute.xlu0 %2766
        %2768 = vrot.lane.b32.xlu0 %v1350, 32
        %v2769 = vpop.permute.xlu0 %2768
        %2770 = vrot.lane.b32.xlu0 %v1351, 32
        %v2771 = vpop.permute.xlu0 %2770
        %2772 = vrot.lane.b32.xlu0 %v1352, 32
        %v2773 = vpop.permute.xlu0 %2772
        %2774 = vrot.lane.b32.xlu0 %v1353, 32
        %v2775 = vpop.permute.xlu0 %2774
        %2776 = vrot.lane.b32.xlu0 %v1354, 32
        %v2777 = vpop.permute.xlu0 %2776
        %2778 = vrot.lane.b32.xlu0 %v1355, 32
        %v2779 = vpop.permute.xlu0 %2778
        %2780 = vrot.lane.b32.xlu0 %v1356, 32
        %v2781 = vpop.permute.xlu0 %2780
        %2782 = vrot.lane.b32.xlu0 %v1357, 32
        %v2783 = vpop.permute.xlu0 %2782
        %v2785 = vsel %vm1358, %v2753, 0
        %v2788 = vsel %vm1358, %v2755, 0
        %v2791 = vsel %vm1358, %v2757, 0
        %v2794 = vsel %vm1358, %v2759, 0
        %v2797 = vsel %vm1358, %v2761, 0
        %v2800 = vsel %vm1358, %v2763, 0
        %v2803 = vsel %vm1358, %v2765, 0
        %v2806 = vsel %vm1358, %v2767, 0
        %v2809 = vsel %vm1358, %v2769, 0
        %v2812 = vsel %vm1358, %v2771, 0
        %v2815 = vsel %vm1358, %v2773, 0
        %v2818 = vsel %vm1358, %v2775, 0
        %v2821 = vsel %vm1358, %v2777, 0
        %v2824 = vsel %vm1358, %v2779, 0
        %v2827 = vsel %vm1358, %v2781, 0
        %v2830 = vsel %vm1358, %v2783, 0
        %2832 = vmatprep.subr.bf16.mxu0 0
        %2833 = vmatpush1.bf16.xpose.msra.mxu0 %v2830
        %2834 = vmatprep.subr.bf16.mxu0 0
        %2835 = vmatpush1.bf16.xpose.msra.mxu0 %v2827
        %2836 = vmatprep.subr.bf16.mxu0 0
        %2837 = vmatpush1.bf16.xpose.msra.mxu0 %v2824
        %2838 = vmatprep.subr.bf16.mxu0 0
        %2839 = vmatpush1.bf16.xpose.msra.mxu0 %v2821
        %2840 = vmatprep.subr.bf16.mxu0 0
        %2841 = vmatpush1.bf16.xpose.msra.mxu0 %v2818
        %2842 = vmatprep.subr.bf16.mxu0 0
        %2843 = vmatpush1.bf16.xpose.msra.mxu0 %v2815
        %2844 = vmatprep.subr.bf16.mxu0 0
        %2845 = vmatpush1.bf16.xpose.msra.mxu0 %v2812
        %2846 = vmatprep.subr.bf16.mxu0 0
        %2847 = vmatpush1.bf16.xpose.msra.mxu0 %v2809
        %2848 = vmatprep.subr.bf16.mxu0 0
        %2849 = vmatpush2.bf16.xpose.msra.mxu0 0
        %2850 = vmatprep.subr.bf16.mxu0 0
        %2851 = vmatpush2.bf16.xpose.msra.mxu0 0
        %2852 = vmatprep.subr.bf16.mxu0 0
        %2853 = vmatpush2.bf16.xpose.msra.mxu0 0
        %2854 = vmatprep.subr.bf16.mxu0 0
        %2855 = vmatpush2.bf16.xpose.msra.mxu0 0
        %2856 = vmatprep.subr.bf16.mxu0 0
        %2857 = vmatpush2.bf16.xpose.msra.mxu0 0
        %2858 = vmatprep.subr.bf16.mxu0 0
        %2859 = vmatpush2.bf16.xpose.msra.mxu0 0
        %2860 = vmatprep.subr.bf16.mxu0 0
        %2861 = vmatpush2.bf16.xpose.msra.mxu0 0
        %2862 = vmatprep.subr.bf16.mxu0 0
        %2863 = vmatpush2.bf16.xpose.msra.mxu0 0
        %2864 = vmatprep.mubr.bf16.mxu0 0
        %2865 = vmatmul.mubr.bf16.gmra.mxu0 %v2785
        %v2866 = vpop.f32.mrf.mxu0
        %v2867 = vadd.f32 %v2736, %v2866
        %v2868 = vpop.f32.mrf.mxu0
        %v2869 = vpop.f32.mrf.mxu0
        %v2870 = vadd.f32 %v2737, %v2869
        %v2871 = vpop.f32.mrf.mxu0
        %2872 = vmatprep.mubr.bf16.mxu0 0
        %2873 = vmatmul.mubr.bf16.gmra.mxu0 %v2788
        %v2874 = vpop.f32.mrf.mxu0
        %v2875 = vadd.f32 %v2738, %v2874
        %v2876 = vpop.f32.mrf.mxu0
        %v2877 = vpop.f32.mrf.mxu0
        %v2878 = vadd.f32 %v2739, %v2877
        %v2879 = vpop.f32.mrf.mxu0
        %2880 = vmatprep.mubr.bf16.mxu0 0
        %2881 = vmatmul.mubr.bf16.gmra.mxu0 %v2791
        %v2882 = vpop.f32.mrf.mxu0
        %v2883 = vadd.f32 %v2740, %v2882
        %v2884 = vpop.f32.mrf.mxu0
        %v2885 = vpop.f32.mrf.mxu0
        %v2886 = vadd.f32 %v2741, %v2885
        %v2887 = vpop.f32.mrf.mxu0
        %2888 = vmatprep.mubr.bf16.mxu0 0
        %2889 = vmatmul.mubr.bf16.gmra.mxu0 %v2794
        %v2890 = vpop.f32.mrf.mxu0
        %v2891 = vadd.f32 %v2742, %v2890
        %v2892 = vpop.f32.mrf.mxu0
        %v2893 = vpop.f32.mrf.mxu0
        %v2894 = vadd.f32 %v2743, %v2893
        %v2895 = vpop.f32.mrf.mxu0
        %2896 = vmatprep.mubr.bf16.mxu0 0
        %2897 = vmatmul.mubr.bf16.gmra.mxu0 %v2797
        %v2898 = vpop.f32.mrf.mxu0
        %v2899 = vadd.f32 %v2744, %v2898
        %v2900 = vpop.f32.mrf.mxu0
        %v2901 = vpop.f32.mrf.mxu0
        %v2902 = vadd.f32 %v2745, %v2901
        %v2903 = vpop.f32.mrf.mxu0
        %2904 = vmatprep.mubr.bf16.mxu0 0
        %2905 = vmatmul.mubr.bf16.gmra.mxu0 %v2800
        %v2906 = vpop.f32.mrf.mxu0
        %v2907 = vadd.f32 %v2746, %v2906
        %v2908 = vpop.f32.mrf.mxu0
        %v2909 = vpop.f32.mrf.mxu0
        %v2910 = vadd.f32 %v2747, %v2909
        %v2911 = vpop.f32.mrf.mxu0
        %2912 = vmatprep.mubr.bf16.mxu0 0
        %2913 = vmatmul.mubr.bf16.gmra.mxu0 %v2803
        %v2914 = vpop.f32.mrf.mxu0
        %v2915 = vadd.f32 %v2748, %v2914
        %v2916 = vpop.f32.mrf.mxu0
        %v2917 = vpop.f32.mrf.mxu0
        %v2918 = vadd.f32 %v2749, %v2917
        %v2919 = vpop.f32.mrf.mxu0
        %2920 = vmatprep.mubr.bf16.mxu0 0
        %2921 = vmatmul.mubr.bf16.gmra.mxu0 %v2806
        %v2922 = vpop.f32.mrf.mxu0
        %v2923 = vadd.f32 %v2750, %v2922
        %v2924 = vpop.f32.mrf.mxu0
        %v2925 = vpop.f32.mrf.mxu0
        %v2926 = vadd.f32 %v2751, %v2925
        %v2927 = vpop.f32.mrf.mxu0
        %2928 = vdwg.mxu0
        %2929 = vmax.xlane.f32.xlu0 %v2867
        %v2930 = vpop.xlane.xlu0 %2929
        %2931 = vmax.xlane.f32.xlu0 %v2870
        %v2932 = vpop.xlane.xlu0 %2931
        %2933 = vmax.xlane.f32.xlu0 %v2875
        %v2934 = vpop.xlane.xlu0 %2933
        %2935 = vmax.xlane.f32.xlu0 %v2878
        %v2936 = vpop.xlane.xlu0 %2935
        %2937 = vmax.xlane.f32.xlu0 %v2883
        %v2938 = vpop.xlane.xlu0 %2937
        %2939 = vmax.xlane.f32.xlu0 %v2886
        %v2940 = vpop.xlane.xlu0 %2939
        %2941 = vmax.xlane.f32.xlu0 %v2891
        %v2942 = vpop.xlane.xlu0 %2941
        %2943 = vmax.xlane.f32.xlu0 %v2894
        %v2944 = vpop.xlane.xlu0 %2943
        %2945 = vmax.xlane.f32.xlu0 %v2899
        %v2946 = vpop.xlane.xlu0 %2945
        %2947 = vmax.xlane.f32.xlu0 %v2902
        %v2948 = vpop.xlane.xlu0 %2947
        %2949 = vmax.xlane.f32.xlu0 %v2907
        %v2950 = vpop.xlane.xlu0 %2949
        %2951 = vmax.xlane.f32.xlu0 %v2910
        %v2952 = vpop.xlane.xlu0 %2951
        %2953 = vmax.xlane.f32.xlu0 %v2915
        %v2954 = vpop.xlane.xlu0 %2953
        %2955 = vmax.xlane.f32.xlu0 %v2918
        %v2956 = vpop.xlane.xlu0 %2955
        %2957 = vmax.xlane.f32.xlu0 %v2923
        %v2958 = vpop.xlane.xlu0 %2957
        %2959 = vmax.xlane.f32.xlu0 %v2926
        %v2960 = vpop.xlane.xlu0 %2959
        %v2961 = vsub.f32 %v2867, %v2930
        %v2962 = vsub.f32 %v2870, %v2932
        %v2963 = vsub.f32 %v2875, %v2934
        %v2964 = vsub.f32 %v2878, %v2936
        %v2965 = vsub.f32 %v2883, %v2938
        %v2966 = vsub.f32 %v2886, %v2940
        %v2967 = vsub.f32 %v2891, %v2942
        %v2968 = vsub.f32 %v2894, %v2944
        %v2969 = vsub.f32 %v2899, %v2946
        %v2970 = vsub.f32 %v2902, %v2948
        %v2971 = vsub.f32 %v2907, %v2950
        %v2972 = vsub.f32 %v2910, %v2952
        %v2973 = vsub.f32 %v2915, %v2954
        %v2974 = vsub.f32 %v2918, %v2956
        %v2975 = vsub.f32 %v2923, %v2958
        %v2976 = vsub.f32 %v2926, %v2960
        %v2977 = vmul.f32 %v2961, 1.442695
        %v2978 = vpow.pop %v2977
        %v2979 = vmul.f32 %v2962, 1.442695
        %v2980 = vpow.pop %v2979
        %v2981 = vmul.f32 %v2963, 1.442695
        %v2982 = vpow.pop %v2981
        %v2983 = vmul.f32 %v2964, 1.442695
        %v2984 = vpow.pop %v2983
        %v2985 = vmul.f32 %v2965, 1.442695
        %v2986 = vpow.pop %v2985
        %v2987 = vmul.f32 %v2966, 1.442695
        %v2988 = vpow.pop %v2987
        %v2989 = vmul.f32 %v2967, 1.442695
        %v2990 = vpow.pop %v2989
        %v2991 = vmul.f32 %v2968, 1.442695
        %v2992 = vpow.pop %v2991
        %v2993 = vmul.f32 %v2969, 1.442695
        %v2994 = vpow.pop %v2993
        %v2995 = vmul.f32 %v2970, 1.442695
        %v2996 = vpow.pop %v2995
        %v2997 = vmul.f32 %v2971, 1.442695
        %v2998 = vpow.pop %v2997
        %v2999 = vmul.f32 %v2972, 1.442695
        %v3000 = vpow.pop %v2999
        %v3001 = vmul.f32 %v2973, 1.442695
        %v3002 = vpow.pop %v3001
        %v3003 = vmul.f32 %v2974, 1.442695
        %v3004 = vpow.pop %v3003
        %v3005 = vmul.f32 %v2975, 1.442695
        %v3006 = vpow.pop %v3005
        %v3007 = vmul.f32 %v2976, 1.442695
        %v3008 = vpow.pop %v3007
        %3009 = vadd.xlane.f32.xlu0 %v2978
        %v3010 = vpop.xlane.xlu0 %3009
        %3011 = vadd.xlane.f32.xlu0 %v2980
        %v3012 = vpop.xlane.xlu0 %3011
        %3013 = vadd.xlane.f32.xlu0 %v2982
        %v3014 = vpop.xlane.xlu0 %3013
        %3015 = vadd.xlane.f32.xlu0 %v2984
        %v3016 = vpop.xlane.xlu0 %3015
        %3017 = vadd.xlane.f32.xlu0 %v2986
        %v3018 = vpop.xlane.xlu0 %3017
        %3019 = vadd.xlane.f32.xlu0 %v2988
        %v3020 = vpop.xlane.xlu0 %3019
        %3021 = vadd.xlane.f32.xlu0 %v2990
        %v3022 = vpop.xlane.xlu0 %3021
        %3023 = vadd.xlane.f32.xlu0 %v2992
        %v3024 = vpop.xlane.xlu0 %3023
        %3025 = vadd.xlane.f32.xlu0 %v2994
        %v3026 = vpop.xlane.xlu0 %3025
        %3027 = vadd.xlane.f32.xlu0 %v2996
        %v3028 = vpop.xlane.xlu0 %3027
        %3029 = vadd.xlane.f32.xlu0 %v2998
        %v3030 = vpop.xlane.xlu0 %3029
        %3031 = vadd.xlane.f32.xlu0 %v3000
        %v3032 = vpop.xlane.xlu0 %3031
        %3033 = vadd.xlane.f32.xlu0 %v3002
        %v3034 = vpop.xlane.xlu0 %3033
        %3035 = vadd.xlane.f32.xlu0 %v3004
        %v3036 = vpop.xlane.xlu0 %3035
        %3037 = vadd.xlane.f32.xlu0 %v3006
        %v3038 = vpop.xlane.xlu0 %3037
        %3039 = vadd.xlane.f32.xlu0 %v3008
        %v3040 = vpop.xlane.xlu0 %3039
        %v3041 = vrcp.pop %v3010
        %v3042 = vrcp.pop %v3012
        %v3043 = vrcp.pop %v3014
        %v3044 = vrcp.pop %v3016
        %v3045 = vrcp.pop %v3018
        %v3046 = vrcp.pop %v3020
        %v3047 = vrcp.pop %v3022
        %v3048 = vrcp.pop %v3024
        %v3049 = vrcp.pop %v3026
        %v3050 = vrcp.pop %v3028
        %v3051 = vrcp.pop %v3030
        %v3052 = vrcp.pop %v3032
        %v3053 = vrcp.pop %v3034
        %v3054 = vrcp.pop %v3036
        %v3055 = vrcp.pop %v3038
        %v3056 = vrcp.pop %v3040
        %v3057 = vmul.f32 %v2978, %v3041
        %v3058 = vmul.f32 %v2980, %v3042
        %v3059 = vmul.f32 %v2982, %v3043
        %v3060 = vmul.f32 %v2984, %v3044
        %v3061 = vmul.f32 %v2986, %v3045
        %v3062 = vmul.f32 %v2988, %v3046
        %v3063 = vmul.f32 %v2990, %v3047
        %v3064 = vmul.f32 %v2992, %v3048
        %v3065 = vmul.f32 %v2994, %v3049
        %v3066 = vmul.f32 %v2996, %v3050
        %v3067 = vmul.f32 %v2998, %v3051
        %v3068 = vmul.f32 %v3000, %v3052
        %v3069 = vmul.f32 %v3002, %v3053
        %v3070 = vmul.f32 %v3004, %v3054
        %v3071 = vmul.f32 %v3006, %v3055
        %v3072 = vmul.f32 %v3008, %v3056
        %v3073 = vpack.c.bf16 %v3058, %v3057
        %v3074 = vpack.c.bf16 %v3060, %v3059
        %v3075 = vpack.c.bf16 %v3062, %v3061
        %v3076 = vpack.c.bf16 %v3064, %v3063
        %v3077 = vpack.c.bf16 %v3066, %v3065
        %v3078 = vpack.c.bf16 %v3068, %v3067
        %v3079 = vpack.c.bf16 %v3070, %v3069
        %v3080 = vpack.c.bf16 %v3072, %v3071
        %3081 = vrot.lane.b32.xlu0 %v1688, 32
        %v3082 = vpop.permute.xlu0 %3081
        %3083 = vrot.lane.b32.xlu0 %v1689, 32
        %v3084 = vpop.permute.xlu0 %3083
        %3085 = vrot.lane.b32.xlu0 %v1690, 32
        %v3086 = vpop.permute.xlu0 %3085
        %3087 = vrot.lane.b32.xlu0 %v1691, 32
        %v3088 = vpop.permute.xlu0 %3087
        %3089 = vrot.lane.b32.xlu0 %v1692, 32
        %v3090 = vpop.permute.xlu0 %3089
        %3091 = vrot.lane.b32.xlu0 %v1693, 32
        %v3092 = vpop.permute.xlu0 %3091
        %3093 = vrot.lane.b32.xlu0 %v1694, 32
        %v3094 = vpop.permute.xlu0 %3093
        %3095 = vrot.lane.b32.xlu0 %v1695, 32
        %v3096 = vpop.permute.xlu0 %3095
        %3105 = vmatprep.subr.bf16.mxu0 0
        %3106 = vmatpush1.bf16.msra.mxu0 %v3096
        %3107 = vmatprep.subr.bf16.mxu0 0
        %3108 = vmatpush1.bf16.msra.mxu0 %v3094
        %3109 = vmatprep.subr.bf16.mxu0 0
        %3110 = vmatpush1.bf16.msra.mxu0 %v3092
        %3111 = vmatprep.subr.bf16.mxu0 0
        %3112 = vmatpush1.bf16.msra.mxu0 %v3090
        %3113 = vmatprep.subr.bf16.mxu0 0
        %3114 = vmatpush1.bf16.msra.mxu0 %v3088
        %3115 = vmatprep.subr.bf16.mxu0 0
        %3116 = vmatpush1.bf16.msra.mxu0 %v3086
        %3117 = vmatprep.subr.bf16.mxu0 0
        %3118 = vmatpush1.bf16.msra.mxu0 %v3084
        %3119 = vmatprep.subr.bf16.mxu0 0
        %3120 = vmatpush1.bf16.msra.mxu0 %v3082
        %3121 = vmatprep.subr.bf16.mxu0 0
        %3122 = vmatpush2.bf16.msra.mxu0 0
        %3123 = vmatprep.subr.bf16.mxu0 0
        %3124 = vmatpush2.bf16.msra.mxu0 0
        %3125 = vmatprep.subr.bf16.mxu0 0
        %3126 = vmatpush2.bf16.msra.mxu0 0
        %3127 = vmatprep.subr.bf16.mxu0 0
        %3128 = vmatpush2.bf16.msra.mxu0 0
        %3129 = vmatprep.subr.bf16.mxu0 0
        %3130 = vmatpush2.bf16.msra.mxu0 0
        %3131 = vmatprep.subr.bf16.mxu0 0
        %3132 = vmatpush2.bf16.msra.mxu0 0
        %3133 = vmatprep.subr.bf16.mxu0 0
        %3134 = vmatpush2.bf16.msra.mxu0 0
        %3135 = vmatprep.subr.bf16.mxu0 0
        %3136 = vmatpush2.bf16.msra.mxu0 0
        %3137 = vmatprep.mubr.bf16.mxu0 0
        %3138 = vmatmul.mubr.bf16.gmra.mxu0 %v3073
        %v3139 = vpop.f32.mrf.mxu0
        %v3140 = vadd.f32 0.0, %v3139
        %v3141 = vpop.f32.mrf.mxu0
        %v3142 = vpop.f32.mrf.mxu0
        %v3143 = vadd.f32 0.0, %v3142
        %v3144 = vpop.f32.mrf.mxu0
        %3145 = vmatprep.mubr.bf16.mxu0 0
        %3146 = vmatmul.mubr.bf16.gmra.mxu0 %v3074
        %v3147 = vpop.f32.mrf.mxu0
        %v3148 = vadd.f32 0.0, %v3147
        %v3149 = vpop.f32.mrf.mxu0
        %v3150 = vpop.f32.mrf.mxu0
        %v3151 = vadd.f32 0.0, %v3150
        %v3152 = vpop.f32.mrf.mxu0
        %3153 = vmatprep.mubr.bf16.mxu0 0
        %3154 = vmatmul.mubr.bf16.gmra.mxu0 %v3075
        %v3155 = vpop.f32.mrf.mxu0
        %v3156 = vadd.f32 0.0, %v3155
        %v3157 = vpop.f32.mrf.mxu0
        %v3158 = vpop.f32.mrf.mxu0
        %v3159 = vadd.f32 0.0, %v3158
        %v3160 = vpop.f32.mrf.mxu0
        %3161 = vmatprep.mubr.bf16.mxu0 0
        %3162 = vmatmul.mubr.bf16.gmra.mxu0 %v3076
        %v3163 = vpop.f32.mrf.mxu0
        %v3164 = vadd.f32 0.0, %v3163
        %v3165 = vpop.f32.mrf.mxu0
        %v3166 = vpop.f32.mrf.mxu0
        %v3167 = vadd.f32 0.0, %v3166
        %v3168 = vpop.f32.mrf.mxu0
        %3169 = vmatprep.mubr.bf16.mxu0 0
        %3170 = vmatmul.mubr.bf16.gmra.mxu0 %v3077
        %v3171 = vpop.f32.mrf.mxu0
        %v3172 = vadd.f32 0.0, %v3171
        %v3173 = vpop.f32.mrf.mxu0
        %v3174 = vpop.f32.mrf.mxu0
        %v3175 = vadd.f32 0.0, %v3174
        %v3176 = vpop.f32.mrf.mxu0
        %3177 = vmatprep.mubr.bf16.mxu0 0
        %3178 = vmatmul.mubr.bf16.gmra.mxu0 %v3078
        %v3179 = vpop.f32.mrf.mxu0
        %v3180 = vadd.f32 0.0, %v3179
        %v3181 = vpop.f32.mrf.mxu0
        %v3182 = vpop.f32.mrf.mxu0
        %v3183 = vadd.f32 0.0, %v3182
        %v3184 = vpop.f32.mrf.mxu0
        %3185 = vmatprep.mubr.bf16.mxu0 0
        %3186 = vmatmul.mubr.bf16.gmra.mxu0 %v3079
        %v3187 = vpop.f32.mrf.mxu0
        %v3188 = vadd.f32 0.0, %v3187
        %v3189 = vpop.f32.mrf.mxu0
        %v3190 = vpop.f32.mrf.mxu0
        %v3191 = vadd.f32 0.0, %v3190
        %v3192 = vpop.f32.mrf.mxu0
        %3193 = vmatprep.mubr.bf16.mxu0 0
        %3194 = vmatmul.mubr.bf16.gmra.mxu0 %v3080
        %v3195 = vpop.f32.mrf.mxu0
        %v3196 = vadd.f32 0.0, %v3195
        %v3197 = vpop.f32.mrf.mxu0
        %v3198 = vpop.f32.mrf.mxu0
        %v3199 = vadd.f32 0.0, %v3198
        %v3200 = vpop.f32.mrf.mxu0
        %3201 = vdwg.mxu0
        %3218 = vrot.lane.b32.xlu0 %v2206, 32
        %v3219 = vpop.permute.xlu0 %3218
        %3220 = vrot.lane.b32.xlu0 %v2209, 32
        %v3221 = vpop.permute.xlu0 %3220
        %3222 = vrot.lane.b32.xlu0 %v2214, 32
        %v3223 = vpop.permute.xlu0 %3222
        %3224 = vrot.lane.b32.xlu0 %v2217, 32
        %v3225 = vpop.permute.xlu0 %3224
        %3226 = vrot.lane.b32.xlu0 %v2222, 32
        %v3227 = vpop.permute.xlu0 %3226
        %3228 = vrot.lane.b32.xlu0 %v2225, 32
        %v3229 = vpop.permute.xlu0 %3228
        %3230 = vrot.lane.b32.xlu0 %v2230, 32
        %v3231 = vpop.permute.xlu0 %3230
        %3232 = vrot.lane.b32.xlu0 %v2233, 32
        %v3233 = vpop.permute.xlu0 %3232
        %3234 = vrot.lane.b32.xlu0 %v2238, 32
        %v3235 = vpop.permute.xlu0 %3234
        %3236 = vrot.lane.b32.xlu0 %v2241, 32
        %v3237 = vpop.permute.xlu0 %3236
        %3238 = vrot.lane.b32.xlu0 %v2246, 32
        %v3239 = vpop.permute.xlu0 %3238
        %3240 = vrot.lane.b32.xlu0 %v2249, 32
        %v3241 = vpop.permute.xlu0 %3240
        %3242 = vrot.lane.b32.xlu0 %v2254, 32
        %v3243 = vpop.permute.xlu0 %3242
        %3244 = vrot.lane.b32.xlu0 %v2257, 32
        %v3245 = vpop.permute.xlu0 %3244
        %3246 = vrot.lane.b32.xlu0 %v2262, 32
        %v3247 = vpop.permute.xlu0 %3246
        %3248 = vrot.lane.b32.xlu0 %v2265, 32
        %v3249 = vpop.permute.xlu0 %3248
        %3282 = vrot.lane.b32.xlu0 %v2673, 64
        %v3283 = vpop.permute.xlu0 %3282
        %3284 = vrot.lane.b32.xlu0 %v2676, 64
        %v3285 = vpop.permute.xlu0 %3284
        %3286 = vrot.lane.b32.xlu0 %v2681, 64
        %v3287 = vpop.permute.xlu0 %3286
        %3288 = vrot.lane.b32.xlu0 %v2684, 64
        %v3289 = vpop.permute.xlu0 %3288
        %3290 = vrot.lane.b32.xlu0 %v2689, 64
        %v3291 = vpop.permute.xlu0 %3290
        %3292 = vrot.lane.b32.xlu0 %v2692, 64
        %v3293 = vpop.permute.xlu0 %3292
        %3294 = vrot.lane.b32.xlu0 %v2697, 64
        %v3295 = vpop.permute.xlu0 %3294
        %3296 = vrot.lane.b32.xlu0 %v2700, 64
        %v3297 = vpop.permute.xlu0 %3296
        %3298 = vrot.lane.b32.xlu0 %v2705, 64
        %v3299 = vpop.permute.xlu0 %3298
        %3300 = vrot.lane.b32.xlu0 %v2708, 64
        %v3301 = vpop.permute.xlu0 %3300
        %3302 = vrot.lane.b32.xlu0 %v2713, 64
        %v3303 = vpop.permute.xlu0 %3302
        %3304 = vrot.lane.b32.xlu0 %v2716, 64
        %v3305 = vpop.permute.xlu0 %3304
        %3306 = vrot.lane.b32.xlu0 %v2721, 64
        %v3307 = vpop.permute.xlu0 %3306
        %3308 = vrot.lane.b32.xlu0 %v2724, 64
        %v3309 = vpop.permute.xlu0 %3308
        %3310 = vrot.lane.b32.xlu0 %v2729, 64
        %v3311 = vpop.permute.xlu0 %3310
        %3312 = vrot.lane.b32.xlu0 %v2732, 64
        %v3313 = vpop.permute.xlu0 %3312
        %3346 = vrot.lane.b32.xlu0 %v3140, 96
        %v3347 = vpop.permute.xlu0 %3346
        %3348 = vrot.lane.b32.xlu0 %v3143, 96
        %v3349 = vpop.permute.xlu0 %3348
        %3350 = vrot.lane.b32.xlu0 %v3148, 96
        %v3351 = vpop.permute.xlu0 %3350
        %3352 = vrot.lane.b32.xlu0 %v3151, 96
        %v3353 = vpop.permute.xlu0 %3352
        %3354 = vrot.lane.b32.xlu0 %v3156, 96
        %v3355 = vpop.permute.xlu0 %3354
        %3356 = vrot.lane.b32.xlu0 %v3159, 96
        %v3357 = vpop.permute.xlu0 %3356
        %3358 = vrot.lane.b32.xlu0 %v3164, 96
        %v3359 = vpop.permute.xlu0 %3358
        %3360 = vrot.lane.b32.xlu0 %v3167, 96
        %v3361 = vpop.permute.xlu0 %3360
        %3362 = vrot.lane.b32.xlu0 %v3172, 96
        %v3363 = vpop.permute.xlu0 %3362
        %3364 = vrot.lane.b32.xlu0 %v3175, 96
        %v3365 = vpop.permute.xlu0 %3364
        %3366 = vrot.lane.b32.xlu0 %v3180, 96
        %v3367 = vpop.permute.xlu0 %3366
        %3368 = vrot.lane.b32.xlu0 %v3183, 96
        %v3369 = vpop.permute.xlu0 %3368
        %3370 = vrot.lane.b32.xlu0 %v3188, 96
        %v3371 = vpop.permute.xlu0 %3370
        %3372 = vrot.lane.b32.xlu0 %v3191, 96
        %v3373 = vpop.permute.xlu0 %3372
        %3374 = vrot.lane.b32.xlu0 %v3196, 96
        %v3375 = vpop.permute.xlu0 %3374
        %3376 = vrot.lane.b32.xlu0 %v3199, 96
        %v3377 = vpop.permute.xlu0 %3376
        %v3394 = vsel %vm1358, %v1739, %v3219
        %v3395 = vsel %vm1358, %v1742, %v3221
        %v3396 = vsel %vm1358, %v1747, %v3223
        %v3397 = vsel %vm1358, %v1750, %v3225
        %v3398 = vsel %vm1358, %v1755, %v3227
        %v3399 = vsel %vm1358, %v1758, %v3229
        %v3400 = vsel %vm1358, %v1763, %v3231
        %v3401 = vsel %vm1358, %v1766, %v3233
        %v3402 = vsel %vm1358, %v1771, %v3235
        %v3403 = vsel %vm1358, %v1774, %v3237
        %v3404 = vsel %vm1358, %v1779, %v3239
        %v3405 = vsel %vm1358, %v1782, %v3241
        %v3406 = vsel %vm1358, %v1787, %v3243
        %v3407 = vsel %vm1358, %v1790, %v3245
        %v3408 = vsel %vm1358, %v1795, %v3247
        %v3409 = vsel %vm1358, %v1798, %v3249
        %vm3410 = vcmask 523264
        %v3411 = vsel %vm3410, %v3394, %v3283
        %v3412 = vsel %vm3410, %v3395, %v3285
        %v3413 = vsel %vm3410, %v3396, %v3287
        %v3414 = vsel %vm3410, %v3397, %v3289
        %v3415 = vsel %vm3410, %v3398, %v3291
        %v3416 = vsel %vm3410, %v3399, %v3293
        %v3417 = vsel %vm3410, %v3400, %v3295
        %v3418 = vsel %vm3410, %v3401, %v3297
        %v3419 = vsel %vm3410, %v3402, %v3299
        %v3420 = vsel %vm3410, %v3403, %v3301
        %v3421 = vsel %vm3410, %v3404, %v3303
        %v3422 = vsel %vm3410, %v3405, %v3305
        %v3423 = vsel %vm3410, %v3406, %v3307
        %v3424 = vsel %vm3410, %v3407, %v3309
        %v3425 = vsel %vm3410, %v3408, %v3311
        %v3426 = vsel %vm3410, %v3409, %v3313
        %vm3427 = vcmask 785408
        %v3428 = vsel %vm3427, %v3411, %v3347
        %v3429 = vsel %vm3427, %v3412, %v3349
        %v3430 = vsel %vm3427, %v3413, %v3351
        %v3431 = vsel %vm3427, %v3414, %v3353
        %v3432 = vsel %vm3427, %v3415, %v3355
        %v3433 = vsel %vm3427, %v3416, %v3357
        %v3434 = vsel %vm3427, %v3417, %v3359
        %v3435 = vsel %vm3427, %v3418, %v3361
        %v3436 = vsel %vm3427, %v3419, %v3363
        %v3437 = vsel %vm3427, %v3420, %v3365
        %v3438 = vsel %vm3427, %v3421, %v3367
        %v3439 = vsel %vm3427, %v3422, %v3369
        %v3440 = vsel %vm3427, %v3423, %v3371
        %v3441 = vsel %vm3427, %v3424, %v3373
        %v3442 = vsel %vm3427, %v3425, %v3375
        %v3443 = vsel %vm3427, %v3426, %v3377
        %v3444 = vpack.c.bf16 %v3429, %v3428
        %v3445 = vpack.c.bf16 %v3431, %v3430
        %v3446 = vpack.c.bf16 %v3433, %v3432
        %v3447 = vpack.c.bf16 %v3435, %v3434
        %v3448 = vpack.c.bf16 %v3437, %v3436
        %v3449 = vpack.c.bf16 %v3439, %v3438
        %v3450 = vpack.c.bf16 %v3441, %v3440
        %v3451 = vpack.c.bf16 %v3443, %v3442
        %s3452 = smul.u32 %s35, 16
        %s3453 = smul.addr %s3452, 4
        %s3454 = scalar_lea.vmem [#allocation12], %s3453
        %v3455 = vld [vmem:[%s3454] sm:$0xf]
        %v3456 = vld [vmem:[%s3454 + $0x4] sm:$0xf]
        %v3457 = vld [vmem:[%s3454 + $0x8] sm:$0xf]
        %v3458 = vld [vmem:[%s3454 + $0xc] sm:$0xf]
        %v3459 = vld [vmem:[%s3454 + $0x10] sm:$0xf]
        %v3460 = vld [vmem:[%s3454 + $0x14] sm:$0xf]
        %v3461 = vld [vmem:[%s3454 + $0x18] sm:$0xf]
        %v3462 = vld [vmem:[%s3454 + $0x1c] sm:$0xf]
        %v3463 = vld [vmem:[%s3454 + $0x20] sm:$0xf]
        %v3464 = vld [vmem:[%s3454 + $0x24] sm:$0xf]
        %v3465 = vld [vmem:[%s3454 + $0x28] sm:$0xf]
        %v3466 = vld [vmem:[%s3454 + $0x2c] sm:$0xf]
        %v3467 = vld [vmem:[%s3454 + $0x30] sm:$0xf]
        %v3468 = vld [vmem:[%s3454 + $0x34] sm:$0xf]
        %v3469 = vld [vmem:[%s3454 + $0x38] sm:$0xf]
        %v3470 = vld [vmem:[%s3454 + $0x3c] sm:$0xf]
        %v3487 = vunpack.c.l.b16 %v3455
        %v3488 = vunpack.c.l.b16 %v3456
        %v3489 = vunpack.c.l.b16 %v3457
        %v3490 = vunpack.c.l.b16 %v3458
        %v3491 = vunpack.c.l.b16 %v3459
        %v3492 = vunpack.c.l.b16 %v3460
        %v3493 = vunpack.c.l.b16 %v3461
        %v3494 = vunpack.c.l.b16 %v3462
        %v3495 = vunpack.c.l.b16 %v3463
        %v3496 = vunpack.c.l.b16 %v3464
        %v3497 = vunpack.c.l.b16 %v3465
        %v3498 = vunpack.c.l.b16 %v3466
        %v3499 = vunpack.c.l.b16 %v3467
        %v3500 = vunpack.c.l.b16 %v3468
        %v3501 = vunpack.c.l.b16 %v3469
        %v3502 = vunpack.c.l.b16 %v3470
        %v3503 = vpack.c.b16 %v3488, %v3487
        %v3504 = vpack.c.b16 %v3490, %v3489
        %v3505 = vpack.c.b16 %v3492, %v3491
        %v3506 = vpack.c.b16 %v3494, %v3493
        %v3507 = vpack.c.b16 %v3496, %v3495
        %v3508 = vpack.c.b16 %v3498, %v3497
        %v3509 = vpack.c.b16 %v3500, %v3499
        %v3510 = vpack.c.b16 %v3502, %v3501
        %3519 = vmatprep.subr.bf16.mxu0 0
        %3520 = vmatpush1.bf16.msra.mxu0 %v3510
        %3521 = vmatprep.subr.bf16.mxu0 0
        %3522 = vmatpush1.bf16.msra.mxu0 %v3509
        %3523 = vmatprep.subr.bf16.mxu0 0
        %3524 = vmatpush1.bf16.msra.mxu0 %v3508
        %3525 = vmatprep.subr.bf16.mxu0 0
        %3526 = vmatpush1.bf16.msra.mxu0 %v3507
        %3527 = vmatprep.subr.bf16.mxu0 0
        %3528 = vmatpush1.bf16.msra.mxu0 %v3506
        %3529 = vmatprep.subr.bf16.mxu0 0
        %3530 = vmatpush1.bf16.msra.mxu0 %v3505
        %3531 = vmatprep.subr.bf16.mxu0 0
        %3532 = vmatpush1.bf16.msra.mxu0 %v3504
        %3533 = vmatprep.subr.bf16.mxu0 0
        %3534 = vmatpush1.bf16.msra.mxu0 %v3503
        %3535 = vmatprep.subr.bf16.mxu0 0
        %3536 = vmatpush2.bf16.msra.mxu0 0
        %3537 = vmatprep.subr.bf16.mxu0 0
        %3538 = vmatpush2.bf16.msra.mxu0 0
        %3539 = vmatprep.subr.bf16.mxu0 0
        %3540 = vmatpush2.bf16.msra.mxu0 0
        %3541 = vmatprep.subr.bf16.mxu0 0
        %3542 = vmatpush2.bf16.msra.mxu0 0
        %3543 = vmatprep.subr.bf16.mxu0 0
        %3544 = vmatpush2.bf16.msra.mxu0 0
        %3545 = vmatprep.subr.bf16.mxu0 0
        %3546 = vmatpush2.bf16.msra.mxu0 0
        %3547 = vmatprep.subr.bf16.mxu0 0
        %3548 = vmatpush2.bf16.msra.mxu0 0
        %3549 = vmatprep.subr.bf16.mxu0 0
        %3550 = vmatpush2.bf16.msra.mxu0 0
        %3551 = vmatprep.mubr.bf16.mxu0 0
        %3552 = vmatmul.mubr.bf16.gmra.mxu0 %v3444
        %v3553 = vpop.f32.mrf.mxu0
        %v3554 = vadd.f32 0.0, %v3553
        %v3555 = vpop.f32.mrf.mxu0
        %v3556 = vpop.f32.mrf.mxu0
        %v3557 = vadd.f32 0.0, %v3556
        %v3558 = vpop.f32.mrf.mxu0
        %3559 = vmatprep.mubr.bf16.mxu0 0
        %3560 = vmatmul.mubr.bf16.gmra.mxu0 %v3445
        %v3561 = vpop.f32.mrf.mxu0
        %v3562 = vadd.f32 0.0, %v3561
        %v3563 = vpop.f32.mrf.mxu0
        %v3564 = vpop.f32.mrf.mxu0
        %v3565 = vadd.f32 0.0, %v3564
        %v3566 = vpop.f32.mrf.mxu0
        %3567 = vmatprep.mubr.bf16.mxu0 0
        %3568 = vmatmul.mubr.bf16.gmra.mxu0 %v3446
        %v3569 = vpop.f32.mrf.mxu0
        %v3570 = vadd.f32 0.0, %v3569
        %v3571 = vpop.f32.mrf.mxu0
        %v3572 = vpop.f32.mrf.mxu0
        %v3573 = vadd.f32 0.0, %v3572
        %v3574 = vpop.f32.mrf.mxu0
        %3575 = vmatprep.mubr.bf16.mxu0 0
        %3576 = vmatmul.mubr.bf16.gmra.mxu0 %v3447
        %v3577 = vpop.f32.mrf.mxu0
        %v3578 = vadd.f32 0.0, %v3577
        %v3579 = vpop.f32.mrf.mxu0
        %v3580 = vpop.f32.mrf.mxu0
        %v3581 = vadd.f32 0.0, %v3580
        %v3582 = vpop.f32.mrf.mxu0
        %3583 = vmatprep.mubr.bf16.mxu0 0
        %3584 = vmatmul.mubr.bf16.gmra.mxu0 %v3448
        %v3585 = vpop.f32.mrf.mxu0
        %v3586 = vadd.f32 0.0, %v3585
        %v3587 = vpop.f32.mrf.mxu0
        %v3588 = vpop.f32.mrf.mxu0
        %v3589 = vadd.f32 0.0, %v3588
        %v3590 = vpop.f32.mrf.mxu0
        %3591 = vmatprep.mubr.bf16.mxu0 0
        %3592 = vmatmul.mubr.bf16.gmra.mxu0 %v3449
        %v3593 = vpop.f32.mrf.mxu0
        %v3594 = vadd.f32 0.0, %v3593
        %v3595 = vpop.f32.mrf.mxu0
        %v3596 = vpop.f32.mrf.mxu0
        %v3597 = vadd.f32 0.0, %v3596
        %v3598 = vpop.f32.mrf.mxu0
        %3599 = vmatprep.mubr.bf16.mxu0 0
        %3600 = vmatmul.mubr.bf16.gmra.mxu0 %v3450
        %v3601 = vpop.f32.mrf.mxu0
        %v3602 = vadd.f32 0.0, %v3601
        %v3603 = vpop.f32.mrf.mxu0
        %v3604 = vpop.f32.mrf.mxu0
        %v3605 = vadd.f32 0.0, %v3604
        %v3606 = vpop.f32.mrf.mxu0
        %3607 = vmatprep.mubr.bf16.mxu0 0
        %3608 = vmatmul.mubr.bf16.gmra.mxu0 %v3451
        %v3609 = vpop.f32.mrf.mxu0
        %v3610 = vadd.f32 0.0, %v3609
        %v3611 = vpop.f32.mrf.mxu0
        %v3612 = vpop.f32.mrf.mxu0
        %v3613 = vadd.f32 0.0, %v3612
        %v3614 = vpop.f32.mrf.mxu0
        %3615 = vdwg.mxu0
        %v3616 = vadd.f32 %v489, %v3554
        %v3617 = vadd.f32 %v490, %v3557
        %v3618 = vadd.f32 %v491, %v3562
        %v3619 = vadd.f32 %v492, %v3565
        %v3620 = vadd.f32 %v493, %v3570
        %v3621 = vadd.f32 %v494, %v3573
        %v3622 = vadd.f32 %v495, %v3578
        %v3623 = vadd.f32 %v496, %v3581
        %v3624 = vadd.f32 %v497, %v3586
        %v3625 = vadd.f32 %v498, %v3589
        %v3626 = vadd.f32 %v499, %v3594
        %v3627 = vadd.f32 %v500, %v3597
        %v3628 = vadd.f32 %v501, %v3602
        %v3629 = vadd.f32 %v502, %v3605
        %v3630 = vadd.f32 %v503, %v3610
        %v3631 = vadd.f32 %v504, %v3613
        %v3632 = vmul.f32 %v3616, %v3616
        %v3633 = vmul.f32 %v3617, %v3617
        %v3634 = vmul.f32 %v3618, %v3618
        %v3635 = vmul.f32 %v3619, %v3619
        %v3636 = vmul.f32 %v3620, %v3620
        %v3637 = vmul.f32 %v3621, %v3621
        %v3638 = vmul.f32 %v3622, %v3622
        %v3639 = vmul.f32 %v3623, %v3623
        %v3640 = vmul.f32 %v3624, %v3624
        %v3641 = vmul.f32 %v3625, %v3625
        %v3642 = vmul.f32 %v3626, %v3626
        %v3643 = vmul.f32 %v3627, %v3627
        %v3644 = vmul.f32 %v3628, %v3628
        %v3645 = vmul.f32 %v3629, %v3629
        %v3646 = vmul.f32 %v3630, %v3630
        %v3647 = vmul.f32 %v3631, %v3631
        %3648 = vadd.xlane.f32.xlu0 %v3632
        %v3649 = vpop.xlane.xlu0 %3648
        %3650 = vadd.xlane.f32.xlu0 %v3633
        %v3651 = vpop.xlane.xlu0 %3650
        %3652 = vadd.xlane.f32.xlu0 %v3634
        %v3653 = vpop.xlane.xlu0 %3652
        %3654 = vadd.xlane.f32.xlu0 %v3635
        %v3655 = vpop.xlane.xlu0 %3654
        %3656 = vadd.xlane.f32.xlu0 %v3636
        %v3657 = vpop.xlane.xlu0 %3656
        %3658 = vadd.xlane.f32.xlu0 %v3637
        %v3659 = vpop.xlane.xlu0 %3658
        %3660 = vadd.xlane.f32.xlu0 %v3638
        %v3661 = vpop.xlane.xlu0 %3660
        %3662 = vadd.xlane.f32.xlu0 %v3639
        %v3663 = vpop.xlane.xlu0 %3662
        %3664 = vadd.xlane.f32.xlu0 %v3640
        %v3665 = vpop.xlane.xlu0 %3664
        %3666 = vadd.xlane.f32.xlu0 %v3641
        %v3667 = vpop.xlane.xlu0 %3666
        %3668 = vadd.xlane.f32.xlu0 %v3642
        %v3669 = vpop.xlane.xlu0 %3668
        %3670 = vadd.xlane.f32.xlu0 %v3643
        %v3671 = vpop.xlane.xlu0 %3670
        %3672 = vadd.xlane.f32.xlu0 %v3644
        %v3673 = vpop.xlane.xlu0 %3672
        %3674 = vadd.xlane.f32.xlu0 %v3645
        %v3675 = vpop.xlane.xlu0 %3674
        %3676 = vadd.xlane.f32.xlu0 %v3646
        %v3677 = vpop.xlane.xlu0 %3676
        %3678 = vadd.xlane.f32.xlu0 %v3647
        %v3679 = vpop.xlane.xlu0 %3678
        %v3680 = vmul.f32 %v3649, %v556
        %v3681 = vmul.f32 %v3651, %v556
        %v3682 = vmul.f32 %v3653, %v556
        %v3683 = vmul.f32 %v3655, %v556
        %v3684 = vmul.f32 %v3657, %v556
        %v3685 = vmul.f32 %v3659, %v556
        %v3686 = vmul.f32 %v3661, %v556
        %v3687 = vmul.f32 %v3663, %v556
        %v3688 = vmul.f32 %v3665, %v556
        %v3689 = vmul.f32 %v3667, %v556
        %v3690 = vmul.f32 %v3669, %v556
        %v3691 = vmul.f32 %v3671, %v556
        %v3692 = vmul.f32 %v3673, %v556
        %v3693 = vmul.f32 %v3675, %v556
        %v3694 = vmul.f32 %v3677, %v556
        %v3695 = vmul.f32 %v3679, %v556
        %v3696 = vadd.f32 %v3680, 1e-06
        %v3697 = vadd.f32 %v3681, 1e-06
        %v3698 = vadd.f32 %v3682, 1e-06
        %v3699 = vadd.f32 %v3683, 1e-06
        %v3700 = vadd.f32 %v3684, 1e-06
        %v3701 = vadd.f32 %v3685, 1e-06
        %v3702 = vadd.f32 %v3686, 1e-06
        %v3703 = vadd.f32 %v3687, 1e-06
        %v3704 = vadd.f32 %v3688, 1e-06
        %v3705 = vadd.f32 %v3689, 1e-06
        %v3706 = vadd.f32 %v3690, 1e-06
        %v3707 = vadd.f32 %v3691, 1e-06
        %v3708 = vadd.f32 %v3692, 1e-06
        %v3709 = vadd.f32 %v3693, 1e-06
        %v3710 = vadd.f32 %v3694, 1e-06
        %v3711 = vadd.f32 %v3695, 1e-06
        %v3712 = vrsqrt.pop %v3696
        %v3713 = vrsqrt.pop %v3697
        %v3714 = vrsqrt.pop %v3698
        %v3715 = vrsqrt.pop %v3699
        %v3716 = vrsqrt.pop %v3700
        %v3717 = vrsqrt.pop %v3701
        %v3718 = vrsqrt.pop %v3702
        %v3719 = vrsqrt.pop %v3703
        %v3720 = vrsqrt.pop %v3704
        %v3721 = vrsqrt.pop %v3705
        %v3722 = vrsqrt.pop %v3706
        %v3723 = vrsqrt.pop %v3707
        %v3724 = vrsqrt.pop %v3708
        %v3725 = vrsqrt.pop %v3709
        %v3726 = vrsqrt.pop %v3710
        %v3727 = vrsqrt.pop %v3711
        %v3728 = vmul.f32 %v3616, %v3712
        %v3729 = vmul.f32 %v3617, %v3713
        %v3730 = vmul.f32 %v3618, %v3714
        %v3731 = vmul.f32 %v3619, %v3715
        %v3732 = vmul.f32 %v3620, %v3716
        %v3733 = vmul.f32 %v3621, %v3717
        %v3734 = vmul.f32 %v3622, %v3718
        %v3735 = vmul.f32 %v3623, %v3719
        %v3736 = vmul.f32 %v3624, %v3720
        %v3737 = vmul.f32 %v3625, %v3721
        %v3738 = vmul.f32 %v3626, %v3722
        %v3739 = vmul.f32 %v3627, %v3723
        %v3740 = vmul.f32 %v3628, %v3724
        %v3741 = vmul.f32 %v3629, %v3725
        %v3742 = vmul.f32 %v3630, %v3726
        %v3743 = vmul.f32 %v3631, %v3727
        %v3744 = vlaneseq
        %v3745 = vshrl.u32 %v3744, 7
        %v3746 = vsub.s32 1, %v3745
        %v3747 = vrot.slane %v507, %v3746
        %v3748 = vmul.f32 %v3728, %v3747
        %v3749 = vmul.f32 %v3729, %v3747
        %v3750 = vmul.f32 %v3730, %v3747
        %v3751 = vmul.f32 %v3731, %v3747
        %v3752 = vmul.f32 %v3732, %v3747
        %v3753 = vmul.f32 %v3733, %v3747
        %v3754 = vmul.f32 %v3734, %v3747
        %v3755 = vmul.f32 %v3735, %v3747
        %v3756 = vmul.f32 %v3736, %v3747
        %v3757 = vmul.f32 %v3737, %v3747
        %v3758 = vmul.f32 %v3738, %v3747
        %v3759 = vmul.f32 %v3739, %v3747
        %v3760 = vmul.f32 %v3740, %v3747
        %v3761 = vmul.f32 %v3741, %v3747
        %v3762 = vmul.f32 %v3742, %v3747
        %v3763 = vmul.f32 %v3743, %v3747
        %v3764 = vpack.c.bf16 %v3749, %v3748
        %v3765 = vpack.c.bf16 %v3751, %v3750
        %v3766 = vpack.c.bf16 %v3753, %v3752
        %v3767 = vpack.c.bf16 %v3755, %v3754
        %v3768 = vpack.c.bf16 %v3757, %v3756
        %v3769 = vpack.c.bf16 %v3759, %v3758
        %v3770 = vpack.c.bf16 %v3761, %v3760
        %v3771 = vpack.c.bf16 %v3763, %v3762
        %s3772 = smul.u32 %s35, 64
        %s3773 = smul.addr %s3772, 4
        %s3774 = scalar_lea.vmem [#allocation13], %s3773
        %v3775 = vld [vmem:[%s3774] sm:$0xff]
        %v3776 = vld [vmem:[%s3774 + $0x8] sm:$0xff]
        %v3777 = vld [vmem:[%s3774 + $0x10] sm:$0xff]
        %v3778 = vld [vmem:[%s3774 + $0x18] sm:$0xff]
        %v3779 = vld [vmem:[%s3774 + $0x20] sm:$0xff]
        %v3780 = vld [vmem:[%s3774 + $0x28] sm:$0xff]
        %v3781 = vld [vmem:[%s3774 + $0x30] sm:$0xff]
        %v3782 = vld [vmem:[%s3774 + $0x38] sm:$0xff]
        %v3783 = vld [vmem:[%s3774 + $0x40] sm:$0xff]
        %v3784 = vld [vmem:[%s3774 + $0x48] sm:$0xff]
        %v3785 = vld [vmem:[%s3774 + $0x50] sm:$0xff]
        %v3786 = vld [vmem:[%s3774 + $0x58] sm:$0xff]
        %v3787 = vld [vmem:[%s3774 + $0x60] sm:$0xff]
        %v3788 = vld [vmem:[%s3774 + $0x68] sm:$0xff]
        %v3789 = vld [vmem:[%s3774 + $0x70] sm:$0xff]
        %v3790 = vld [vmem:[%s3774 + $0x78] sm:$0xff]
        %v3791 = vld [vmem:[%s3774 + $0x80] sm:$0xff]
        %v3792 = vld [vmem:[%s3774 + $0x88] sm:$0xff]
        %v3793 = vld [vmem:[%s3774 + $0x90] sm:$0xff]
        %v3794 = vld [vmem:[%s3774 + $0x98] sm:$0xff]
        %v3795 = vld [vmem:[%s3774 + $0xa0] sm:$0xff]
        %v3796 = vld [vmem:[%s3774 + $0xa8] sm:$0xff]
        %v3797 = vld [vmem:[%s3774 + $0xb0] sm:$0xff]
        %v3798 = vld [vmem:[%s3774 + $0xb8] sm:$0xff]
        %v3799 = vld [vmem:[%s3774 + $0xc0] sm:$0xff]
        %v3800 = vld [vmem:[%s3774 + $0xc8] sm:$0xff]
        %v3801 = vld [vmem:[%s3774 + $0xd0] sm:$0xff]
        %v3802 = vld [vmem:[%s3774 + $0xd8] sm:$0xff]
        %v3803 = vld [vmem:[%s3774 + $0xe0] sm:$0xff]
        %v3804 = vld [vmem:[%s3774 + $0xe8] sm:$0xff]
        %v3805 = vld [vmem:[%s3774 + $0xf0] sm:$0xff]
        %v3806 = vld [vmem:[%s3774 + $0xf8] sm:$0xff]
        %v3839 = vunpack.c.l.b16 %v3775
        %v3840 = vunpack.c.h.b16 %v3775
        %v3841 = vunpack.c.l.b16 %v3776
        %v3842 = vunpack.c.h.b16 %v3776
        %v3843 = vunpack.c.l.b16 %v3777
        %v3844 = vunpack.c.h.b16 %v3777
        %v3845 = vunpack.c.l.b16 %v3778
        %v3846 = vunpack.c.h.b16 %v3778
        %v3847 = vunpack.c.l.b16 %v3779
        %v3848 = vunpack.c.h.b16 %v3779
        %v3849 = vunpack.c.l.b16 %v3780
        %v3850 = vunpack.c.h.b16 %v3780
        %v3851 = vunpack.c.l.b16 %v3781
        %v3852 = vunpack.c.h.b16 %v3781
        %v3853 = vunpack.c.l.b16 %v3782
        %v3854 = vunpack.c.h.b16 %v3782
        %v3855 = vunpack.c.l.b16 %v3783
        %v3856 = vunpack.c.h.b16 %v3783
        %v3857 = vunpack.c.l.b16 %v3784
        %v3858 = vunpack.c.h.b16 %v3784
        %v3859 = vunpack.c.l.b16 %v3785
        %v3860 = vunpack.c.h.b16 %v3785
        %v3861 = vunpack.c.l.b16 %v3786
        %v3862 = vunpack.c.h.b16 %v3786
        %v3863 = vunpack.c.l.b16 %v3787
        %v3864 = vunpack.c.h.b16 %v3787
        %v3865 = vunpack.c.l.b16 %v3788
        %v3866 = vunpack.c.h.b16 %v3788
        %v3867 = vunpack.c.l.b16 %v3789
        %v3868 = vunpack.c.h.b16 %v3789
        %v3869 = vunpack.c.l.b16 %v3790
        %v3870 = vunpack.c.h.b16 %v3790
        %v3871 = vunpack.c.l.b16 %v3791
        %v3872 = vunpack.c.h.b16 %v3791
        %v3873 = vunpack.c.l.b16 %v3792
        %v3874 = vunpack.c.h.b16 %v3792
        %v3875 = vunpack.c.l.b16 %v3793
        %v3876 = vunpack.c.h.b16 %v3793
        %v3877 = vunpack.c.l.b16 %v3794
        %v3878 = vunpack.c.h.b16 %v3794
        %v3879 = vunpack.c.l.b16 %v3795
        %v3880 = vunpack.c.h.b16 %v3795
        %v3881 = vunpack.c.l.b16 %v3796
        %v3882 = vunpack.c.h.b16 %v3796
        %v3883 = vunpack.c.l.b16 %v3797
        %v3884 = vunpack.c.h.b16 %v3797
        %v3885 = vunpack.c.l.b16 %v3798
        %v3886 = vunpack.c.h.b16 %v3798
        %v3887 = vunpack.c.l.b16 %v3799
        %v3888 = vunpack.c.h.b16 %v3799
        %v3889 = vunpack.c.l.b16 %v3800
        %v3890 = vunpack.c.h.b16 %v3800
        %v3891 = vunpack.c.l.b16 %v3801
        %v3892 = vunpack.c.h.b16 %v3801
        %v3893 = vunpack.c.l.b16 %v3802
        %v3894 = vunpack.c.h.b16 %v3802
        %v3895 = vunpack.c.l.b16 %v3803
        %v3896 = vunpack.c.h.b16 %v3803
        %v3897 = vunpack.c.l.b16 %v3804
        %v3898 = vunpack.c.h.b16 %v3804
        %v3899 = vunpack.c.l.b16 %v3805
        %v3900 = vunpack.c.h.b16 %v3805
        %v3901 = vunpack.c.l.b16 %v3806
        %v3902 = vunpack.c.h.b16 %v3806
        %v3903 = vpack.c.b16 %v3843, %v3839
        %v3904 = vpack.c.b16 %v3844, %v3840
        %v3905 = vpack.c.b16 %v3845, %v3841
        %v3906 = vpack.c.b16 %v3846, %v3842
        %v3907 = vpack.c.b16 %v3851, %v3847
        %v3908 = vpack.c.b16 %v3852, %v3848
        %v3909 = vpack.c.b16 %v3853, %v3849
        %v3910 = vpack.c.b16 %v3854, %v3850
        %v3911 = vpack.c.b16 %v3859, %v3855
        %v3912 = vpack.c.b16 %v3860, %v3856
        %v3913 = vpack.c.b16 %v3861, %v3857
        %v3914 = vpack.c.b16 %v3862, %v3858
        %v3915 = vpack.c.b16 %v3867, %v3863
        %v3916 = vpack.c.b16 %v3868, %v3864
        %v3917 = vpack.c.b16 %v3869, %v3865
        %v3918 = vpack.c.b16 %v3870, %v3866
        %v3919 = vpack.c.b16 %v3875, %v3871
        %v3920 = vpack.c.b16 %v3876, %v3872
        %v3921 = vpack.c.b16 %v3877, %v3873
        %v3922 = vpack.c.b16 %v3878, %v3874
        %v3923 = vpack.c.b16 %v3883, %v3879
        %v3924 = vpack.c.b16 %v3884, %v3880
        %v3925 = vpack.c.b16 %v3885, %v3881
        %v3926 = vpack.c.b16 %v3886, %v3882
        %v3927 = vpack.c.b16 %v3891, %v3887
        %v3928 = vpack.c.b16 %v3892, %v3888
        %v3929 = vpack.c.b16 %v3893, %v3889
        %v3930 = vpack.c.b16 %v3894, %v3890
        %v3931 = vpack.c.b16 %v3899, %v3895
        %v3932 = vpack.c.b16 %v3900, %v3896
        %v3933 = vpack.c.b16 %v3901, %v3897
        %v3934 = vpack.c.b16 %v3902, %v3898
        %3967 = vmatprep.subr.bf16.mxu0 %v3932
        %3968 = vmatpush1.bf16.msra.mxu0 %v3931
        %3969 = vmatprep.subr.bf16.mxu0 %v3928
        %3970 = vmatpush1.bf16.msra.mxu0 %v3927
        %3971 = vmatprep.subr.bf16.mxu0 %v3924
        %3972 = vmatpush1.bf16.msra.mxu0 %v3923
        %3973 = vmatprep.subr.bf16.mxu0 %v3920
        %3974 = vmatpush1.bf16.msra.mxu0 %v3919
        %3975 = vmatprep.subr.bf16.mxu0 %v3916
        %3976 = vmatpush1.bf16.msra.mxu0 %v3915
        %3977 = vmatprep.subr.bf16.mxu0 %v3912
        %3978 = vmatpush1.bf16.msra.mxu0 %v3911
        %3979 = vmatprep.subr.bf16.mxu0 %v3908
        %3980 = vmatpush1.bf16.msra.mxu0 %v3907
        %3981 = vmatprep.subr.bf16.mxu0 %v3904
        %3982 = vmatpush1.bf16.msra.mxu0 %v3903
        %3983 = vmatprep.subr.bf16.mxu0 0
        %3984 = vmatpush2.bf16.msra.mxu0 0
        %3985 = vmatprep.subr.bf16.mxu0 0
        %3986 = vmatpush2.bf16.msra.mxu0 0
        %3987 = vmatprep.subr.bf16.mxu0 0
        %3988 = vmatpush2.bf16.msra.mxu0 0
        %3989 = vmatprep.subr.bf16.mxu0 0
        %3990 = vmatpush2.bf16.msra.mxu0 0
        %3991 = vmatprep.subr.bf16.mxu0 0
        %3992 = vmatpush2.bf16.msra.mxu0 0
        %3993 = vmatprep.subr.bf16.mxu0 0
        %3994 = vmatpush2.bf16.msra.mxu0 0
        %3995 = vmatprep.subr.bf16.mxu0 0
        %3996 = vmatpush2.bf16.msra.mxu0 0
        %3997 = vmatprep.subr.bf16.mxu0 0
        %3998 = vmatpush2.bf16.msra.mxu0 0
        %3999 = vmatprep.mubr.bf16.mxu0 0
        %4000 = vmatmul.mubr.bf16.gmra.mxu0 %v3764
        %v4001 = vpop.f32.mrf.mxu0
        %v4002 = vadd.f32 0.0, %v4001
        %v4003 = vpop.f32.mrf.mxu0
        %v4004 = vadd.f32 0.0, %v4003
        %v4005 = vpop.f32.mrf.mxu0
        %v4006 = vadd.f32 0.0, %v4005
        %v4007 = vpop.f32.mrf.mxu0
        %v4008 = vadd.f32 0.0, %v4007
        %4009 = vmatprep.mubr.bf16.mxu0 0
        %4010 = vmatmul.mubr.bf16.gmra.mxu0 %v3765
        %v4011 = vpop.f32.mrf.mxu0
        %v4012 = vadd.f32 0.0, %v4011
        %v4013 = vpop.f32.mrf.mxu0
        %v4014 = vadd.f32 0.0, %v4013
        %v4015 = vpop.f32.mrf.mxu0
        %v4016 = vadd.f32 0.0, %v4015
        %v4017 = vpop.f32.mrf.mxu0
        %v4018 = vadd.f32 0.0, %v4017
        %4019 = vmatprep.mubr.bf16.mxu0 0
        %4020 = vmatmul.mubr.bf16.gmra.mxu0 %v3766
        %v4021 = vpop.f32.mrf.mxu0
        %v4022 = vadd.f32 0.0, %v4021
        %v4023 = vpop.f32.mrf.mxu0
        %v4024 = vadd.f32 0.0, %v4023
        %v4025 = vpop.f32.mrf.mxu0
        %v4026 = vadd.f32 0.0, %v4025
        %v4027 = vpop.f32.mrf.mxu0
        %v4028 = vadd.f32 0.0, %v4027
        %4029 = vmatprep.mubr.bf16.mxu0 0
        %4030 = vmatmul.mubr.bf16.gmra.mxu0 %v3767
        %v4031 = vpop.f32.mrf.mxu0
        %v4032 = vadd.f32 0.0, %v4031
        %v4033 = vpop.f32.mrf.mxu0
        %v4034 = vadd.f32 0.0, %v4033
        %v4035 = vpop.f32.mrf.mxu0
        %v4036 = vadd.f32 0.0, %v4035
        %v4037 = vpop.f32.mrf.mxu0
        %v4038 = vadd.f32 0.0, %v4037
        %4039 = vmatprep.mubr.bf16.mxu0 0
        %4040 = vmatmul.mubr.bf16.gmra.mxu0 %v3768
        %v4041 = vpop.f32.mrf.mxu0
        %v4042 = vadd.f32 0.0, %v4041
        %v4043 = vpop.f32.mrf.mxu0
        %v4044 = vadd.f32 0.0, %v4043
        %v4045 = vpop.f32.mrf.mxu0
        %v4046 = vadd.f32 0.0, %v4045
        %v4047 = vpop.f32.mrf.mxu0
        %v4048 = vadd.f32 0.0, %v4047
        %4049 = vmatprep.mubr.bf16.mxu0 0
        %4050 = vmatmul.mubr.bf16.gmra.mxu0 %v3769
        %v4051 = vpop.f32.mrf.mxu0
        %v4052 = vadd.f32 0.0, %v4051
        %v4053 = vpop.f32.mrf.mxu0
        %v4054 = vadd.f32 0.0, %v4053
        %v4055 = vpop.f32.mrf.mxu0
        %v4056 = vadd.f32 0.0, %v4055
        %v4057 = vpop.f32.mrf.mxu0
        %v4058 = vadd.f32 0.0, %v4057
        %4059 = vmatprep.mubr.bf16.mxu0 0
        %4060 = vmatmul.mubr.bf16.gmra.mxu0 %v3770
        %v4061 = vpop.f32.mrf.mxu0
        %v4062 = vadd.f32 0.0, %v4061
        %v4063 = vpop.f32.mrf.mxu0
        %v4064 = vadd.f32 0.0, %v4063
        %v4065 = vpop.f32.mrf.mxu0
        %v4066 = vadd.f32 0.0, %v4065
        %v4067 = vpop.f32.mrf.mxu0
        %v4068 = vadd.f32 0.0, %v4067
        %4069 = vmatprep.mubr.bf16.mxu0 0
        %4070 = vmatmul.mubr.bf16.gmra.mxu0 %v3771
        %v4071 = vpop.f32.mrf.mxu0
        %v4072 = vadd.f32 0.0, %v4071
        %v4073 = vpop.f32.mrf.mxu0
        %v4074 = vadd.f32 0.0, %v4073
        %v4075 = vpop.f32.mrf.mxu0
        %v4076 = vadd.f32 0.0, %v4075
        %v4077 = vpop.f32.mrf.mxu0
        %v4078 = vadd.f32 0.0, %v4077
        %4079 = vdwg.mxu0
        %4080 = vmatprep.subr.bf16.mxu0 %v3934
        %4081 = vmatpush1.bf16.msra.mxu0 %v3933
        %4082 = vmatprep.subr.bf16.mxu0 %v3930
        %4083 = vmatpush1.bf16.msra.mxu0 %v3929
        %4084 = vmatprep.subr.bf16.mxu0 %v3926
        %4085 = vmatpush1.bf16.msra.mxu0 %v3925
        %4086 = vmatprep.subr.bf16.mxu0 %v3922
        %4087 = vmatpush1.bf16.msra.mxu0 %v3921
        %4088 = vmatprep.subr.bf16.mxu0 %v3918
        %4089 = vmatpush1.bf16.msra.mxu0 %v3917
        %4090 = vmatprep.subr.bf16.mxu0 %v3914
        %4091 = vmatpush1.bf16.msra.mxu0 %v3913
        %4092 = vmatprep.subr.bf16.mxu0 %v3910
        %4093 = vmatpush1.bf16.msra.mxu0 %v3909
        %4094 = vmatprep.subr.bf16.mxu0 %v3906
        %4095 = vmatpush1.bf16.msra.mxu0 %v3905
        %4096 = vmatprep.subr.bf16.mxu0 0
        %4097 = vmatpush2.bf16.msra.mxu0 0
        %4098 = vmatprep.subr.bf16.mxu0 0
        %4099 = vmatpush2.bf16.msra.mxu0 0
        %4100 = vmatprep.subr.bf16.mxu0 0
        %4101 = vmatpush2.bf16.msra.mxu0 0
        %4102 = vmatprep.subr.bf16.mxu0 0
        %4103 = vmatpush2.bf16.msra.mxu0 0
        %4104 = vmatprep.subr.bf16.mxu0 0
        %4105 = vmatpush2.bf16.msra.mxu0 0
        %4106 = vmatprep.subr.bf16.mxu0 0
        %4107 = vmatpush2.bf16.msra.mxu0 0
        %4108 = vmatprep.subr.bf16.mxu0 0
        %4109 = vmatpush2.bf16.msra.mxu0 0
        %4110 = vmatprep.subr.bf16.mxu0 0
        %4111 = vmatpush2.bf16.msra.mxu0 0
        %4112 = vmatprep.mubr.bf16.mxu0 0
        %4113 = vmatmul.mubr.bf16.gmra.mxu0 %v3764
        %v4114 = vpop.f32.mrf.mxu0
        %v4115 = vadd.f32 0.0, %v4114
        %v4116 = vpop.f32.mrf.mxu0
        %v4117 = vadd.f32 0.0, %v4116
        %v4118 = vpop.f32.mrf.mxu0
        %v4119 = vadd.f32 0.0, %v4118
        %v4120 = vpop.f32.mrf.mxu0
        %v4121 = vadd.f32 0.0, %v4120
        %4122 = vmatprep.mubr.bf16.mxu0 0
        %4123 = vmatmul.mubr.bf16.gmra.mxu0 %v3765
        %v4124 = vpop.f32.mrf.mxu0
        %v4125 = vadd.f32 0.0, %v4124
        %v4126 = vpop.f32.mrf.mxu0
        %v4127 = vadd.f32 0.0, %v4126
        %v4128 = vpop.f32.mrf.mxu0
        %v4129 = vadd.f32 0.0, %v4128
        %v4130 = vpop.f32.mrf.mxu0
        %v4131 = vadd.f32 0.0, %v4130
        %4132 = vmatprep.mubr.bf16.mxu0 0
        %4133 = vmatmul.mubr.bf16.gmra.mxu0 %v3766
        %v4134 = vpop.f32.mrf.mxu0
        %v4135 = vadd.f32 0.0, %v4134
        %v4136 = vpop.f32.mrf.mxu0
        %v4137 = vadd.f32 0.0, %v4136
        %v4138 = vpop.f32.mrf.mxu0
        %v4139 = vadd.f32 0.0, %v4138
        %v4140 = vpop.f32.mrf.mxu0
        %v4141 = vadd.f32 0.0, %v4140
        %4142 = vmatprep.mubr.bf16.mxu0 0
        %4143 = vmatmul.mubr.bf16.gmra.mxu0 %v3767
        %v4144 = vpop.f32.mrf.mxu0
        %v4145 = vadd.f32 0.0, %v4144
        %v4146 = vpop.f32.mrf.mxu0
        %v4147 = vadd.f32 0.0, %v4146
        %v4148 = vpop.f32.mrf.mxu0
        %v4149 = vadd.f32 0.0, %v4148
        %v4150 = vpop.f32.mrf.mxu0
        %v4151 = vadd.f32 0.0, %v4150
        %4152 = vmatprep.mubr.bf16.mxu0 0
        %4153 = vmatmul.mubr.bf16.gmra.mxu0 %v3768
        %v4154 = vpop.f32.mrf.mxu0
        %v4155 = vadd.f32 0.0, %v4154
        %v4156 = vpop.f32.mrf.mxu0
        %v4157 = vadd.f32 0.0, %v4156
        %v4158 = vpop.f32.mrf.mxu0
        %v4159 = vadd.f32 0.0, %v4158
        %v4160 = vpop.f32.mrf.mxu0
        %v4161 = vadd.f32 0.0, %v4160
        %4162 = vmatprep.mubr.bf16.mxu0 0
        %4163 = vmatmul.mubr.bf16.gmra.mxu0 %v3769
        %v4164 = vpop.f32.mrf.mxu0
        %v4165 = vadd.f32 0.0, %v4164
        %v4166 = vpop.f32.mrf.mxu0
        %v4167 = vadd.f32 0.0, %v4166
        %v4168 = vpop.f32.mrf.mxu0
        %v4169 = vadd.f32 0.0, %v4168
        %v4170 = vpop.f32.mrf.mxu0
        %v4171 = vadd.f32 0.0, %v4170
        %4172 = vmatprep.mubr.bf16.mxu0 0
        %4173 = vmatmul.mubr.bf16.gmra.mxu0 %v3770
        %v4174 = vpop.f32.mrf.mxu0
        %v4175 = vadd.f32 0.0, %v4174
        %v4176 = vpop.f32.mrf.mxu0
        %v4177 = vadd.f32 0.0, %v4176
        %v4178 = vpop.f32.mrf.mxu0
        %v4179 = vadd.f32 0.0, %v4178
        %v4180 = vpop.f32.mrf.mxu0
        %v4181 = vadd.f32 0.0, %v4180
        %4182 = vmatprep.mubr.bf16.mxu0 0
        %4183 = vmatmul.mubr.bf16.gmra.mxu0 %v3771
        %v4184 = vpop.f32.mrf.mxu0
        %v4185 = vadd.f32 0.0, %v4184
        %v4186 = vpop.f32.mrf.mxu0
        %v4187 = vadd.f32 0.0, %v4186
        %v4188 = vpop.f32.mrf.mxu0
        %v4189 = vadd.f32 0.0, %v4188
        %v4190 = vpop.f32.mrf.mxu0
        %v4191 = vadd.f32 0.0, %v4190
        %4192 = vdwg.mxu0
        %v4193 = vmul.f32 %v4002, 0.5
        %v4194 = vmul.f32 %v4004, 0.5
        %v4195 = vmul.f32 %v4006, 0.5
        %v4196 = vmul.f32 %v4008, 0.5
        %v4197 = vmul.f32 %v4012, 0.5
        %v4198 = vmul.f32 %v4014, 0.5
        %v4199 = vmul.f32 %v4016, 0.5
        %v4200 = vmul.f32 %v4018, 0.5
        %v4201 = vmul.f32 %v4022, 0.5
        %v4202 = vmul.f32 %v4024, 0.5
        %v4203 = vmul.f32 %v4026, 0.5
        %v4204 = vmul.f32 %v4028, 0.5
        %v4205 = vmul.f32 %v4032, 0.5
        %v4206 = vmul.f32 %v4034, 0.5
        %v4207 = vmul.f32 %v4036, 0.5
        %v4208 = vmul.f32 %v4038, 0.5
        %v4209 = vmul.f32 %v4042, 0.5
        %v4210 = vmul.f32 %v4044, 0.5
        %v4211 = vmul.f32 %v4046, 0.5
        %v4212 = vmul.f32 %v4048, 0.5
        %v4213 = vmul.f32 %v4052, 0.5
        %v4214 = vmul.f32 %v4054, 0.5
        %v4215 = vmul.f32 %v4056, 0.5
        %v4216 = vmul.f32 %v4058, 0.5
        %v4217 = vmul.f32 %v4062, 0.5
        %v4218 = vmul.f32 %v4064, 0.5
        %v4219 = vmul.f32 %v4066, 0.5
        %v4220 = vmul.f32 %v4068, 0.5
        %v4221 = vmul.f32 %v4072, 0.5
        %v4222 = vmul.f32 %v4074, 0.5
        %v4223 = vmul.f32 %v4076, 0.5
        %v4224 = vmul.f32 %v4078, 0.5
        %v4225 = vmul.f32 %v4002, 0.044715
        %v4226 = vmul.f32 %v4004, 0.044715
        %v4227 = vmul.f32 %v4006, 0.044715
        %v4228 = vmul.f32 %v4008, 0.044715
        %v4229 = vmul.f32 %v4012, 0.044715
        %v4230 = vmul.f32 %v4014, 0.044715
        %v4231 = vmul.f32 %v4016, 0.044715
        %v4232 = vmul.f32 %v4018, 0.044715
        %v4233 = vmul.f32 %v4022, 0.044715
        %v4234 = vmul.f32 %v4024, 0.044715
        %v4235 = vmul.f32 %v4026, 0.044715
        %v4236 = vmul.f32 %v4028, 0.044715
        %v4237 = vmul.f32 %v4032, 0.044715
        %v4238 = vmul.f32 %v4034, 0.044715
        %v4239 = vmul.f32 %v4036, 0.044715
        %v4240 = vmul.f32 %v4038, 0.044715
        %v4241 = vmul.f32 %v4042, 0.044715
        %v4242 = vmul.f32 %v4044, 0.044715
        %v4243 = vmul.f32 %v4046, 0.044715
        %v4244 = vmul.f32 %v4048, 0.044715
        %v4245 = vmul.f32 %v4052, 0.044715
        %v4246 = vmul.f32 %v4054, 0.044715
        %v4247 = vmul.f32 %v4056, 0.044715
        %v4248 = vmul.f32 %v4058, 0.044715
        %v4249 = vmul.f32 %v4062, 0.044715
        %v4250 = vmul.f32 %v4064, 0.044715
        %v4251 = vmul.f32 %v4066, 0.044715
        %v4252 = vmul.f32 %v4068, 0.044715
        %v4253 = vmul.f32 %v4072, 0.044715
        %v4254 = vmul.f32 %v4074, 0.044715
        %v4255 = vmul.f32 %v4076, 0.044715
        %v4256 = vmul.f32 %v4078, 0.044715
        %v4257 = vmul.f32 %v4225, %v4002
        %v4258 = vmul.f32 %v4226, %v4004
        %v4259 = vmul.f32 %v4227, %v4006
        %v4260 = vmul.f32 %v4228, %v4008
        %v4261 = vmul.f32 %v4229, %v4012
        %v4262 = vmul.f32 %v4230, %v4014
        %v4263 = vmul.f32 %v4231, %v4016
        %v4264 = vmul.f32 %v4232, %v4018
        %v4265 = vmul.f32 %v4233, %v4022
        %v4266 = vmul.f32 %v4234, %v4024
        %v4267 = vmul.f32 %v4235, %v4026
        %v4268 = vmul.f32 %v4236, %v4028
        %v4269 = vmul.f32 %v4237, %v4032
        %v4270 = vmul.f32 %v4238, %v4034
        %v4271 = vmul.f32 %v4239, %v4036
        %v4272 = vmul.f32 %v4240, %v4038
        %v4273 = vmul.f32 %v4241, %v4042
        %v4274 = vmul.f32 %v4242, %v4044
        %v4275 = vmul.f32 %v4243, %v4046
        %v4276 = vmul.f32 %v4244, %v4048
        %v4277 = vmul.f32 %v4245, %v4052
        %v4278 = vmul.f32 %v4246, %v4054
        %v4279 = vmul.f32 %v4247, %v4056
        %v4280 = vmul.f32 %v4248, %v4058
        %v4281 = vmul.f32 %v4249, %v4062
        %v4282 = vmul.f32 %v4250, %v4064
        %v4283 = vmul.f32 %v4251, %v4066
        %v4284 = vmul.f32 %v4252, %v4068
        %v4285 = vmul.f32 %v4253, %v4072
        %v4286 = vmul.f32 %v4254, %v4074
        %v4287 = vmul.f32 %v4255, %v4076
        %v4288 = vmul.f32 %v4256, %v4078
        %v4289 = vmul.f32 %v4257, %v4002
        %v4290 = vmul.f32 %v4258, %v4004
        %v4291 = vmul.f32 %v4259, %v4006
        %v4292 = vmul.f32 %v4260, %v4008
        %v4293 = vmul.f32 %v4261, %v4012
        %v4294 = vmul.f32 %v4262, %v4014
        %v4295 = vmul.f32 %v4263, %v4016
        %v4296 = vmul.f32 %v4264, %v4018
        %v4297 = vmul.f32 %v4265, %v4022
        %v4298 = vmul.f32 %v4266, %v4024
        %v4299 = vmul.f32 %v4267, %v4026
        %v4300 = vmul.f32 %v4268, %v4028
        %v4301 = vmul.f32 %v4269, %v4032
        %v4302 = vmul.f32 %v4270, %v4034
        %v4303 = vmul.f32 %v4271, %v4036
        %v4304 = vmul.f32 %v4272, %v4038
        %v4305 = vmul.f32 %v4273, %v4042
        %v4306 = vmul.f32 %v4274, %v4044
        %v4307 = vmul.f32 %v4275, %v4046
        %v4308 = vmul.f32 %v4276, %v4048
        %v4309 = vmul.f32 %v4277, %v4052
        %v4310 = vmul.f32 %v4278, %v4054
        %v4311 = vmul.f32 %v4279, %v4056
        %v4312 = vmul.f32 %v4280, %v4058
        %v4313 = vmul.f32 %v4281, %v4062
        %v4314 = vmul.f32 %v4282, %v4064
        %v4315 = vmul.f32 %v4283, %v4066
        %v4316 = vmul.f32 %v4284, %v4068
        %v4317 = vmul.f32 %v4285, %v4072
        %v4318 = vmul.f32 %v4286, %v4074
        %v4319 = vmul.f32 %v4287, %v4076
        %v4320 = vmul.f32 %v4288, %v4078
        %v4321 = vadd.f32 %v4002, %v4289
        %v4322 = vadd.f32 %v4004, %v4290
        %v4323 = vadd.f32 %v4006, %v4291
        %v4324 = vadd.f32 %v4008, %v4292
        %v4325 = vadd.f32 %v4012, %v4293
        %v4326 = vadd.f32 %v4014, %v4294
        %v4327 = vadd.f32 %v4016, %v4295
        %v4328 = vadd.f32 %v4018, %v4296
        %v4329 = vadd.f32 %v4022, %v4297
        %v4330 = vadd.f32 %v4024, %v4298
        %v4331 = vadd.f32 %v4026, %v4299
        %v4332 = vadd.f32 %v4028, %v4300
        %v4333 = vadd.f32 %v4032, %v4301
        %v4334 = vadd.f32 %v4034, %v4302
        %v4335 = vadd.f32 %v4036, %v4303
        %v4336 = vadd.f32 %v4038, %v4304
        %v4337 = vadd.f32 %v4042, %v4305
        %v4338 = vadd.f32 %v4044, %v4306
        %v4339 = vadd.f32 %v4046, %v4307
        %v4340 = vadd.f32 %v4048, %v4308
        %v4341 = vadd.f32 %v4052, %v4309
        %v4342 = vadd.f32 %v4054, %v4310
        %v4343 = vadd.f32 %v4056, %v4311
        %v4344 = vadd.f32 %v4058, %v4312
        %v4345 = vadd.f32 %v4062, %v4313
        %v4346 = vadd.f32 %v4064, %v4314
        %v4347 = vadd.f32 %v4066, %v4315
        %v4348 = vadd.f32 %v4068, %v4316
        %v4349 = vadd.f32 %v4072, %v4317
        %v4350 = vadd.f32 %v4074, %v4318
        %v4351 = vadd.f32 %v4076, %v4319
        %v4352 = vadd.f32 %v4078, %v4320
        %v4353 = vmul.f32 %v4321, 0.7978846
        %v4354 = vmul.f32 %v4322, 0.7978846
        %v4355 = vmul.f32 %v4323, 0.7978846
        %v4356 = vmul.f32 %v4324, 0.7978846
        %v4357 = vmul.f32 %v4325, 0.7978846
        %v4358 = vmul.f32 %v4326, 0.7978846
        %v4359 = vmul.f32 %v4327, 0.7978846
        %v4360 = vmul.f32 %v4328, 0.7978846
        %v4361 = vmul.f32 %v4329, 0.7978846
        %v4362 = vmul.f32 %v4330, 0.7978846
        %v4363 = vmul.f32 %v4331, 0.7978846
        %v4364 = vmul.f32 %v4332, 0.7978846
        %v4365 = vmul.f32 %v4333, 0.7978846
        %v4366 = vmul.f32 %v4334, 0.7978846
        %v4367 = vmul.f32 %v4335, 0.7978846
        %v4368 = vmul.f32 %v4336, 0.7978846
        %v4369 = vmul.f32 %v4337, 0.7978846
        %v4370 = vmul.f32 %v4338, 0.7978846
        %v4371 = vmul.f32 %v4339, 0.7978846
        %v4372 = vmul.f32 %v4340, 0.7978846
        %v4373 = vmul.f32 %v4341, 0.7978846
        %v4374 = vmul.f32 %v4342, 0.7978846
        %v4375 = vmul.f32 %v4343, 0.7978846
        %v4376 = vmul.f32 %v4344, 0.7978846
        %v4377 = vmul.f32 %v4345, 0.7978846
        %v4378 = vmul.f32 %v4346, 0.7978846
        %v4379 = vmul.f32 %v4347, 0.7978846
        %v4380 = vmul.f32 %v4348, 0.7978846
        %v4381 = vmul.f32 %v4349, 0.7978846
        %v4382 = vmul.f32 %v4350, 0.7978846
        %v4383 = vmul.f32 %v4351, 0.7978846
        %v4384 = vmul.f32 %v4352, 0.7978846
        %v4385 = vtanh.pop %v4353
        %v4386 = vtanh.pop %v4354
        %v4387 = vtanh.pop %v4355
        %v4388 = vtanh.pop %v4356
        %v4389 = vtanh.pop %v4357
        %v4390 = vtanh.pop %v4358
        %v4391 = vtanh.pop %v4359
        %v4392 = vtanh.pop %v4360
        %v4393 = vtanh.pop %v4361
        %v4394 = vtanh.pop %v4362
        %v4395 = vtanh.pop %v4363
        %v4396 = vtanh.pop %v4364
        %v4397 = vtanh.pop %v4365
        %v4398 = vtanh.pop %v4366
        %v4399 = vtanh.pop %v4367
        %v4400 = vtanh.pop %v4368
        %v4401 = vtanh.pop %v4369
        %v4402 = vtanh.pop %v4370
        %v4403 = vtanh.pop %v4371
        %v4404 = vtanh.pop %v4372
        %v4405 = vtanh.pop %v4373
        %v4406 = vtanh.pop %v4374
        %v4407 = vtanh.pop %v4375
        %v4408 = vtanh.pop %v4376
        %v4409 = vtanh.pop %v4377
        %v4410 = vtanh.pop %v4378
        %v4411 = vtanh.pop %v4379
        %v4412 = vtanh.pop %v4380
        %v4413 = vtanh.pop %v4381
        %v4414 = vtanh.pop %v4382
        %v4415 = vtanh.pop %v4383
        %v4416 = vtanh.pop %v4384
        %v4417 = vadd.f32 %v4385, 1.0
        %v4418 = vadd.f32 %v4386, 1.0
        %v4419 = vadd.f32 %v4387, 1.0
        %v4420 = vadd.f32 %v4388, 1.0
        %v4421 = vadd.f32 %v4389, 1.0
        %v4422 = vadd.f32 %v4390, 1.0
        %v4423 = vadd.f32 %v4391, 1.0
        %v4424 = vadd.f32 %v4392, 1.0
        %v4425 = vadd.f32 %v4393, 1.0
        %v4426 = vadd.f32 %v4394, 1.0
        %v4427 = vadd.f32 %v4395, 1.0
        %v4428 = vadd.f32 %v4396, 1.0
        %v4429 = vadd.f32 %v4397, 1.0
        %v4430 = vadd.f32 %v4398, 1.0
        %v4431 = vadd.f32 %v4399, 1.0
        %v4432 = vadd.f32 %v4400, 1.0
        %v4433 = vadd.f32 %v4401, 1.0
        %v4434 = vadd.f32 %v4402, 1.0
        %v4435 = vadd.f32 %v4403, 1.0
        %v4436 = vadd.f32 %v4404, 1.0
        %v4437 = vadd.f32 %v4405, 1.0
        %v4438 = vadd.f32 %v4406, 1.0
        %v4439 = vadd.f32 %v4407, 1.0
        %v4440 = vadd.f32 %v4408, 1.0
        %v4441 = vadd.f32 %v4409, 1.0
        %v4442 = vadd.f32 %v4410, 1.0
        %v4443 = vadd.f32 %v4411, 1.0
        %v4444 = vadd.f32 %v4412, 1.0
        %v4445 = vadd.f32 %v4413, 1.0
        %v4446 = vadd.f32 %v4414, 1.0
        %v4447 = vadd.f32 %v4415, 1.0
        %v4448 = vadd.f32 %v4416, 1.0
        %v4449 = vmul.f32 %v4193, %v4417
        %v4450 = vmul.f32 %v4194, %v4418
        %v4451 = vmul.f32 %v4195, %v4419
        %v4452 = vmul.f32 %v4196, %v4420
        %v4453 = vmul.f32 %v4197, %v4421
        %v4454 = vmul.f32 %v4198, %v4422
        %v4455 = vmul.f32 %v4199, %v4423
        %v4456 = vmul.f32 %v4200, %v4424
        %v4457 = vmul.f32 %v4201, %v4425
        %v4458 = vmul.f32 %v4202, %v4426
        %v4459 = vmul.f32 %v4203, %v4427
        %v4460 = vmul.f32 %v4204, %v4428
        %v4461 = vmul.f32 %v4205, %v4429
        %v4462 = vmul.f32 %v4206, %v4430
        %v4463 = vmul.f32 %v4207, %v4431
        %v4464 = vmul.f32 %v4208, %v4432
        %v4465 = vmul.f32 %v4209, %v4433
        %v4466 = vmul.f32 %v4210, %v4434
        %v4467 = vmul.f32 %v4211, %v4435
        %v4468 = vmul.f32 %v4212, %v4436
        %v4469 = vmul.f32 %v4213, %v4437
        %v4470 = vmul.f32 %v4214, %v4438
        %v4471 = vmul.f32 %v4215, %v4439
        %v4472 = vmul.f32 %v4216, %v4440
        %v4473 = vmul.f32 %v4217, %v4441
        %v4474 = vmul.f32 %v4218, %v4442
        %v4475 = vmul.f32 %v4219, %v4443
        %v4476 = vmul.f32 %v4220, %v4444
        %v4477 = vmul.f32 %v4221, %v4445
        %v4478 = vmul.f32 %v4222, %v4446
        %v4479 = vmul.f32 %v4223, %v4447
        %v4480 = vmul.f32 %v4224, %v4448
        %v4481 = vmul.f32 %v4449, %v4115
        %v4482 = vmul.f32 %v4450, %v4117
        %v4483 = vmul.f32 %v4451, %v4119
        %v4484 = vmul.f32 %v4452, %v4121
        %v4485 = vmul.f32 %v4453, %v4125
        %v4486 = vmul.f32 %v4454, %v4127
        %v4487 = vmul.f32 %v4455, %v4129
        %v4488 = vmul.f32 %v4456, %v4131
        %v4489 = vmul.f32 %v4457, %v4135
        %v4490 = vmul.f32 %v4458, %v4137
        %v4491 = vmul.f32 %v4459, %v4139
        %v4492 = vmul.f32 %v4460, %v4141
        %v4493 = vmul.f32 %v4461, %v4145
        %v4494 = vmul.f32 %v4462, %v4147
        %v4495 = vmul.f32 %v4463, %v4149
        %v4496 = vmul.f32 %v4464, %v4151
        %v4497 = vmul.f32 %v4465, %v4155
        %v4498 = vmul.f32 %v4466, %v4157
        %v4499 = vmul.f32 %v4467, %v4159
        %v4500 = vmul.f32 %v4468, %v4161
        %v4501 = vmul.f32 %v4469, %v4165
        %v4502 = vmul.f32 %v4470, %v4167
        %v4503 = vmul.f32 %v4471, %v4169
        %v4504 = vmul.f32 %v4472, %v4171
        %v4505 = vmul.f32 %v4473, %v4175
        %v4506 = vmul.f32 %v4474, %v4177
        %v4507 = vmul.f32 %v4475, %v4179
        %v4508 = vmul.f32 %v4476, %v4181
        %v4509 = vmul.f32 %v4477, %v4185
        %v4510 = vmul.f32 %v4478, %v4187
        %v4511 = vmul.f32 %v4479, %v4189
        %v4512 = vmul.f32 %v4480, %v4191
        %v4513 = vpack.c.bf16 %v4483, %v4481
        %v4514 = vpack.c.bf16 %v4484, %v4482
        %v4515 = vpack.c.bf16 %v4487, %v4485
        %v4516 = vpack.c.bf16 %v4488, %v4486
        %v4517 = vpack.c.bf16 %v4491, %v4489
        %v4518 = vpack.c.bf16 %v4492, %v4490
        %v4519 = vpack.c.bf16 %v4495, %v4493
        %v4520 = vpack.c.bf16 %v4496, %v4494
        %v4521 = vpack.c.bf16 %v4499, %v4497
        %v4522 = vpack.c.bf16 %v4500, %v4498
        %v4523 = vpack.c.bf16 %v4503, %v4501
        %v4524 = vpack.c.bf16 %v4504, %v4502
        %v4525 = vpack.c.bf16 %v4507, %v4505
        %v4526 = vpack.c.bf16 %v4508, %v4506
        %v4527 = vpack.c.bf16 %v4511, %v4509
        %v4528 = vpack.c.bf16 %v4512, %v4510
        %s4529 = smul.u32 %s35, 32
        %s4530 = smul.addr %s4529, 4
        %s4531 = scalar_lea.vmem [#allocation15], %s4530
        %v4532 = vld [vmem:[%s4531] sm:$0xf]
        %v4533 = vld [vmem:[%s4531 + $0x4] sm:$0xf]
        %v4534 = vld [vmem:[%s4531 + $0x8] sm:$0xf]
        %v4535 = vld [vmem:[%s4531 + $0xc] sm:$0xf]
        %v4536 = vld [vmem:[%s4531 + $0x10] sm:$0xf]
        %v4537 = vld [vmem:[%s4531 + $0x14] sm:$0xf]
        %v4538 = vld [vmem:[%s4531 + $0x18] sm:$0xf]
        %v4539 = vld [vmem:[%s4531 + $0x1c] sm:$0xf]
        %v4540 = vld [vmem:[%s4531 + $0x20] sm:$0xf]
        %v4541 = vld [vmem:[%s4531 + $0x24] sm:$0xf]
        %v4542 = vld [vmem:[%s4531 + $0x28] sm:$0xf]
        %v4543 = vld [vmem:[%s4531 + $0x2c] sm:$0xf]
        %v4544 = vld [vmem:[%s4531 + $0x30] sm:$0xf]
        %v4545 = vld [vmem:[%s4531 + $0x34] sm:$0xf]
        %v4546 = vld [vmem:[%s4531 + $0x38] sm:$0xf]
        %v4547 = vld [vmem:[%s4531 + $0x3c] sm:$0xf]
        %v4548 = vld [vmem:[%s4531 + $0x40] sm:$0xf]
        %v4549 = vld [vmem:[%s4531 + $0x44] sm:$0xf]
        %v4550 = vld [vmem:[%s4531 + $0x48] sm:$0xf]
        %v4551 = vld [vmem:[%s4531 + $0x4c] sm:$0xf]
        %v4552 = vld [vmem:[%s4531 + $0x50] sm:$0xf]
        %v4553 = vld [vmem:[%s4531 + $0x54] sm:$0xf]
        %v4554 = vld [vmem:[%s4531 + $0x58] sm:$0xf]
        %v4555 = vld [vmem:[%s4531 + $0x5c] sm:$0xf]
        %v4556 = vld [vmem:[%s4531 + $0x60] sm:$0xf]
        %v4557 = vld [vmem:[%s4531 + $0x64] sm:$0xf]
        %v4558 = vld [vmem:[%s4531 + $0x68] sm:$0xf]
        %v4559 = vld [vmem:[%s4531 + $0x6c] sm:$0xf]
        %v4560 = vld [vmem:[%s4531 + $0x70] sm:$0xf]
        %v4561 = vld [vmem:[%s4531 + $0x74] sm:$0xf]
        %v4562 = vld [vmem:[%s4531 + $0x78] sm:$0xf]
        %v4563 = vld [vmem:[%s4531 + $0x7c] sm:$0xf]
        %v4596 = vunpack.c.l.b16 %v4532
        %v4597 = vunpack.c.l.b16 %v4533
        %v4598 = vunpack.c.l.b16 %v4534
        %v4599 = vunpack.c.l.b16 %v4535
        %v4600 = vunpack.c.l.b16 %v4536
        %v4601 = vunpack.c.l.b16 %v4537
        %v4602 = vunpack.c.l.b16 %v4538
        %v4603 = vunpack.c.l.b16 %v4539
        %v4604 = vunpack.c.l.b16 %v4540
        %v4605 = vunpack.c.l.b16 %v4541
        %v4606 = vunpack.c.l.b16 %v4542
        %v4607 = vunpack.c.l.b16 %v4543
        %v4608 = vunpack.c.l.b16 %v4544
        %v4609 = vunpack.c.l.b16 %v4545
        %v4610 = vunpack.c.l.b16 %v4546
        %v4611 = vunpack.c.l.b16 %v4547
        %v4612 = vunpack.c.l.b16 %v4548
        %v4613 = vunpack.c.l.b16 %v4549
        %v4614 = vunpack.c.l.b16 %v4550
        %v4615 = vunpack.c.l.b16 %v4551
        %v4616 = vunpack.c.l.b16 %v4552
        %v4617 = vunpack.c.l.b16 %v4553
        %v4618 = vunpack.c.l.b16 %v4554
        %v4619 = vunpack.c.l.b16 %v4555
        %v4620 = vunpack.c.l.b16 %v4556
        %v4621 = vunpack.c.l.b16 %v4557
        %v4622 = vunpack.c.l.b16 %v4558
        %v4623 = vunpack.c.l.b16 %v4559
        %v4624 = vunpack.c.l.b16 %v4560
        %v4625 = vunpack.c.l.b16 %v4561
        %v4626 = vunpack.c.l.b16 %v4562
        %v4627 = vunpack.c.l.b16 %v4563
        %v4628 = vpack.c.b16 %v4597, %v4596
        %v4629 = vpack.c.b16 %v4599, %v4598
        %v4630 = vpack.c.b16 %v4601, %v4600
        %v4631 = vpack.c.b16 %v4603, %v4602
        %v4632 = vpack.c.b16 %v4605, %v4604
        %v4633 = vpack.c.b16 %v4607, %v4606
        %v4634 = vpack.c.b16 %v4609, %v4608
        %v4635 = vpack.c.b16 %v4611, %v4610
        %v4636 = vpack.c.b16 %v4613, %v4612
        %v4637 = vpack.c.b16 %v4615, %v4614
        %v4638 = vpack.c.b16 %v4617, %v4616
        %v4639 = vpack.c.b16 %v4619, %v4618
        %v4640 = vpack.c.b16 %v4621, %v4620
        %v4641 = vpack.c.b16 %v4623, %v4622
        %v4642 = vpack.c.b16 %v4625, %v4624
        %v4643 = vpack.c.b16 %v4627, %v4626
        %4660 = vmatprep.subr.bf16.mxu0 0
        %4661 = vmatpush1.bf16.msra.mxu0 %v4635
        %4662 = vmatprep.subr.bf16.mxu0 0
        %4663 = vmatpush1.bf16.msra.mxu0 %v4634
        %4664 = vmatprep.subr.bf16.mxu0 0
        %4665 = vmatpush1.bf16.msra.mxu0 %v4633
        %4666 = vmatprep.subr.bf16.mxu0 0
        %4667 = vmatpush1.bf16.msra.mxu0 %v4632
        %4668 = vmatprep.subr.bf16.mxu0 0
        %4669 = vmatpush1.bf16.msra.mxu0 %v4631
        %4670 = vmatprep.subr.bf16.mxu0 0
        %4671 = vmatpush1.bf16.msra.mxu0 %v4630
        %4672 = vmatprep.subr.bf16.mxu0 0
        %4673 = vmatpush1.bf16.msra.mxu0 %v4629
        %4674 = vmatprep.subr.bf16.mxu0 0
        %4675 = vmatpush1.bf16.msra.mxu0 %v4628
        %4676 = vmatprep.subr.bf16.mxu0 0
        %4677 = vmatpush2.bf16.msra.mxu0 %v4643
        %4678 = vmatprep.subr.bf16.mxu0 0
        %4679 = vmatpush2.bf16.msra.mxu0 %v4642
        %4680 = vmatprep.subr.bf16.mxu0 0
        %4681 = vmatpush2.bf16.msra.mxu0 %v4641
        %4682 = vmatprep.subr.bf16.mxu0 0
        %4683 = vmatpush2.bf16.msra.mxu0 %v4640
        %4684 = vmatprep.subr.bf16.mxu0 0
        %4685 = vmatpush2.bf16.msra.mxu0 %v4639
        %4686 = vmatprep.subr.bf16.mxu0 0
        %4687 = vmatpush2.bf16.msra.mxu0 %v4638
        %4688 = vmatprep.subr.bf16.mxu0 0
        %4689 = vmatpush2.bf16.msra.mxu0 %v4637
        %4690 = vmatprep.subr.bf16.mxu0 0
        %4691 = vmatpush2.bf16.msra.mxu0 %v4636
        %4692 = vmatprep.mubr.bf16.mxu0 %v4514
        %4693 = vmatmul.mubr.bf16.gmra.mxu0 %v4513
        %v4694 = vpop.f32.mrf.mxu0
        %v4695 = vadd.f32 0.0, %v4694
        %v4696 = vpop.f32.mrf.mxu0
        %v4697 = vpop.f32.mrf.mxu0
        %v4698 = vadd.f32 0.0, %v4697
        %v4699 = vpop.f32.mrf.mxu0
        %4700 = vmatprep.mubr.bf16.mxu0 %v4516
        %4701 = vmatmul.mubr.bf16.gmra.mxu0 %v4515
        %v4702 = vpop.f32.mrf.mxu0
        %v4703 = vadd.f32 0.0, %v4702
        %v4704 = vpop.f32.mrf.mxu0
        %v4705 = vpop.f32.mrf.mxu0
        %v4706 = vadd.f32 0.0, %v4705
        %v4707 = vpop.f32.mrf.mxu0
        %4708 = vmatprep.mubr.bf16.mxu0 %v4518
        %4709 = vmatmul.mubr.bf16.gmra.mxu0 %v4517
        %v4710 = vpop.f32.mrf.mxu0
        %v4711 = vadd.f32 0.0, %v4710
        %v4712 = vpop.f32.mrf.mxu0
        %v4713 = vpop.f32.mrf.mxu0
        %v4714 = vadd.f32 0.0, %v4713
        %v4715 = vpop.f32.mrf.mxu0
        %4716 = vmatprep.mubr.bf16.mxu0 %v4520
        %4717 = vmatmul.mubr.bf16.gmra.mxu0 %v4519
        %v4718 = vpop.f32.mrf.mxu0
        %v4719 = vadd.f32 0.0, %v4718
        %v4720 = vpop.f32.mrf.mxu0
        %v4721 = vpop.f32.mrf.mxu0
        %v4722 = vadd.f32 0.0, %v4721
        %v4723 = vpop.f32.mrf.mxu0
        %4724 = vmatprep.mubr.bf16.mxu0 %v4522
        %4725 = vmatmul.mubr.bf16.gmra.mxu0 %v4521
        %v4726 = vpop.f32.mrf.mxu0
        %v4727 = vadd.f32 0.0, %v4726
        %v4728 = vpop.f32.mrf.mxu0
        %v4729 = vpop.f32.mrf.mxu0
        %v4730 = vadd.f32 0.0, %v4729
        %v4731 = vpop.f32.mrf.mxu0
        %4732 = vmatprep.mubr.bf16.mxu0 %v4524
        %4733 = vmatmul.mubr.bf16.gmra.mxu0 %v4523
        %v4734 = vpop.f32.mrf.mxu0
        %v4735 = vadd.f32 0.0, %v4734
        %v4736 = vpop.f32.mrf.mxu0
        %v4737 = vpop.f32.mrf.mxu0
        %v4738 = vadd.f32 0.0, %v4737
        %v4739 = vpop.f32.mrf.mxu0
        %4740 = vmatprep.mubr.bf16.mxu0 %v4526
        %4741 = vmatmul.mubr.bf16.gmra.mxu0 %v4525
        %v4742 = vpop.f32.mrf.mxu0
        %v4743 = vadd.f32 0.0, %v4742
        %v4744 = vpop.f32.mrf.mxu0
        %v4745 = vpop.f32.mrf.mxu0
        %v4746 = vadd.f32 0.0, %v4745
        %v4747 = vpop.f32.mrf.mxu0
        %4748 = vmatprep.mubr.bf16.mxu0 %v4528
        %4749 = vmatmul.mubr.bf16.gmra.mxu0 %v4527
        %v4750 = vpop.f32.mrf.mxu0
        %v4751 = vadd.f32 0.0, %v4750
        %v4752 = vpop.f32.mrf.mxu0
        %v4753 = vpop.f32.mrf.mxu0
        %v4754 = vadd.f32 0.0, %v4753
        %v4755 = vpop.f32.mrf.mxu0
        %4756 = vdwg.mxu0
        %v4757 = vadd.f32 %v3616, %v4695
        %v4758 = vadd.f32 %v3617, %v4698
        %v4759 = vadd.f32 %v3618, %v4703
        %v4760 = vadd.f32 %v3619, %v4706
        %v4761 = vadd.f32 %v3620, %v4711
        %v4762 = vadd.f32 %v3621, %v4714
        %v4763 = vadd.f32 %v3622, %v4719
        %v4764 = vadd.f32 %v3623, %v4722
        %v4765 = vadd.f32 %v3624, %v4727
        %v4766 = vadd.f32 %v3625, %v4730
        %v4767 = vadd.f32 %v3626, %v4735
        %v4768 = vadd.f32 %v3627, %v4738
        %v4769 = vadd.f32 %v3628, %v4743
        %v4770 = vadd.f32 %v3629, %v4746
        %v4771 = vadd.f32 %v3630, %v4751
        %v4772 = vadd.f32 %v3631, %v4754
        %4773 = vst [vmem:[#allocation2] sm:$0xff] %v4757
        %4774 = vst [vmem:[#allocation2 + $0x8] sm:$0xff] %v4758
        %4775 = vst [vmem:[#allocation2 + $0x10] sm:$0xff] %v4759
        %4776 = vst [vmem:[#allocation2 + $0x18] sm:$0xff] %v4760
        %4777 = vst [vmem:[#allocation2 + $0x20] sm:$0xff] %v4761
        %4778 = vst [vmem:[#allocation2 + $0x28] sm:$0xff] %v4762
        %4779 = vst [vmem:[#allocation2 + $0x30] sm:$0xff] %v4763
        %4780 = vst [vmem:[#allocation2 + $0x38] sm:$0xff] %v4764
        %4781 = vst [vmem:[#allocation2 + $0x40] sm:$0xff] %v4765
        %4782 = vst [vmem:[#allocation2 + $0x48] sm:$0xff] %v4766
        %4783 = vst [vmem:[#allocation2 + $0x50] sm:$0xff] %v4767
        %4784 = vst [vmem:[#allocation2 + $0x58] sm:$0xff] %v4768
        %4785 = vst [vmem:[#allocation2 + $0x60] sm:$0xff] %v4769
        %4786 = vst [vmem:[#allocation2 + $0x68] sm:$0xff] %v4770
        %4787 = vst [vmem:[#allocation2 + $0x70] sm:$0xff] %v4771
        %4788 = vst [vmem:[#allocation2 + $0x78] sm:$0xff] %v4772
        %p4789 = scmp.eq.s32.totalorder %s35, 1
        // Predicated region
        $region85: #{tpu_custom_call.1} parent=51 // pred_check
          %p4790 = pneg %p4789
        $region86: #{tpu_custom_call.1} parent=51 // pred_check_branch
          %4792 = sbr.rel (%p4790) target = $region88
        $region87: #{tpu_custom_call.1} parent=51 // pred_region
          %v4793 = vld [vmem:[%s7] sm:$0x1]
          %v4794 = vmul.f32 %v4757, %v4757
          %v4795 = vmul.f32 %v4758, %v4758
          %v4796 = vmul.f32 %v4759, %v4759
          %v4797 = vmul.f32 %v4760, %v4760
          %v4798 = vmul.f32 %v4761, %v4761
          %v4799 = vmul.f32 %v4762, %v4762
          %v4800 = vmul.f32 %v4763, %v4763
          %v4801 = vmul.f32 %v4764, %v4764
          %v4802 = vmul.f32 %v4765, %v4765
          %v4803 = vmul.f32 %v4766, %v4766
          %v4804 = vmul.f32 %v4767, %v4767
          %v4805 = vmul.f32 %v4768, %v4768
          %v4806 = vmul.f32 %v4769, %v4769
          %v4807 = vmul.f32 %v4770, %v4770
          %v4808 = vmul.f32 %v4771, %v4771
          %v4809 = vmul.f32 %v4772, %v4772
          %4810 = vadd.xlane.f32.xlu0 %v4794
          %v4811 = vpop.xlane.xlu0 %4810
          %4812 = vadd.xlane.f32.xlu0 %v4795
          %v4813 = vpop.xlane.xlu0 %4812
          %4814 = vadd.xlane.f32.xlu0 %v4796
          %v4815 = vpop.xlane.xlu0 %4814
          %4816 = vadd.xlane.f32.xlu0 %v4797
          %v4817 = vpop.xlane.xlu0 %4816
          %4818 = vadd.xlane.f32.xlu0 %v4798
          %v4819 = vpop.xlane.xlu0 %4818
          %4820 = vadd.xlane.f32.xlu0 %v4799
          %v4821 = vpop.xlane.xlu0 %4820
          %4822 = vadd.xlane.f32.xlu0 %v4800
          %v4823 = vpop.xlane.xlu0 %4822
          %4824 = vadd.xlane.f32.xlu0 %v4801
          %v4825 = vpop.xlane.xlu0 %4824
          %4826 = vadd.xlane.f32.xlu0 %v4802
          %v4827 = vpop.xlane.xlu0 %4826
          %4828 = vadd.xlane.f32.xlu0 %v4803
          %v4829 = vpop.xlane.xlu0 %4828
          %4830 = vadd.xlane.f32.xlu0 %v4804
          %v4831 = vpop.xlane.xlu0 %4830
          %4832 = vadd.xlane.f32.xlu0 %v4805
          %v4833 = vpop.xlane.xlu0 %4832
          %4834 = vadd.xlane.f32.xlu0 %v4806
          %v4835 = vpop.xlane.xlu0 %4834
          %4836 = vadd.xlane.f32.xlu0 %v4807
          %v4837 = vpop.xlane.xlu0 %4836
          %4838 = vadd.xlane.f32.xlu0 %v4808
          %v4839 = vpop.xlane.xlu0 %4838
          %4840 = vadd.xlane.f32.xlu0 %v4809
          %v4841 = vpop.xlane.xlu0 %4840
          %v4842 = vmul.f32 %v4811, %v556
          %v4843 = vmul.f32 %v4813, %v556
          %v4844 = vmul.f32 %v4815, %v556
          %v4845 = vmul.f32 %v4817, %v556
          %v4846 = vmul.f32 %v4819, %v556
          %v4847 = vmul.f32 %v4821, %v556
          %v4848 = vmul.f32 %v4823, %v556
          %v4849 = vmul.f32 %v4825, %v556
          %v4850 = vmul.f32 %v4827, %v556
          %v4851 = vmul.f32 %v4829, %v556
          %v4852 = vmul.f32 %v4831, %v556
          %v4853 = vmul.f32 %v4833, %v556
          %v4854 = vmul.f32 %v4835, %v556
          %v4855 = vmul.f32 %v4837, %v556
          %v4856 = vmul.f32 %v4839, %v556
          %v4857 = vmul.f32 %v4841, %v556
          %v4858 = vadd.f32 %v4842, 1e-06
          %v4859 = vadd.f32 %v4843, 1e-06
          %v4860 = vadd.f32 %v4844, 1e-06
          %v4861 = vadd.f32 %v4845, 1e-06
          %v4862 = vadd.f32 %v4846, 1e-06
          %v4863 = vadd.f32 %v4847, 1e-06
          %v4864 = vadd.f32 %v4848, 1e-06
          %v4865 = vadd.f32 %v4849, 1e-06
          %v4866 = vadd.f32 %v4850, 1e-06
          %v4867 = vadd.f32 %v4851, 1e-06
          %v4868 = vadd.f32 %v4852, 1e-06
          %v4869 = vadd.f32 %v4853, 1e-06
          %v4870 = vadd.f32 %v4854, 1e-06
          %v4871 = vadd.f32 %v4855, 1e-06
          %v4872 = vadd.f32 %v4856, 1e-06
          %v4873 = vadd.f32 %v4857, 1e-06
          %v4874 = vrsqrt.pop %v4858
          %v4875 = vrsqrt.pop %v4859
          %v4876 = vrsqrt.pop %v4860
          %v4877 = vrsqrt.pop %v4861
          %v4878 = vrsqrt.pop %v4862
          %v4879 = vrsqrt.pop %v4863
          %v4880 = vrsqrt.pop %v4864
          %v4881 = vrsqrt.pop %v4865
          %v4882 = vrsqrt.pop %v4866
          %v4883 = vrsqrt.pop %v4867
          %v4884 = vrsqrt.pop %v4868
          %v4885 = vrsqrt.pop %v4869
          %v4886 = vrsqrt.pop %v4870
          %v4887 = vrsqrt.pop %v4871
          %v4888 = vrsqrt.pop %v4872
          %v4889 = vrsqrt.pop %v4873
          %v4890 = vmul.f32 %v4757, %v4874
          %v4891 = vmul.f32 %v4758, %v4875
          %v4892 = vmul.f32 %v4759, %v4876
          %v4893 = vmul.f32 %v4760, %v4877
          %v4894 = vmul.f32 %v4761, %v4878
          %v4895 = vmul.f32 %v4762, %v4879
          %v4896 = vmul.f32 %v4763, %v4880
          %v4897 = vmul.f32 %v4764, %v4881
          %v4898 = vmul.f32 %v4765, %v4882
          %v4899 = vmul.f32 %v4766, %v4883
          %v4900 = vmul.f32 %v4767, %v4884
          %v4901 = vmul.f32 %v4768, %v4885
          %v4902 = vmul.f32 %v4769, %v4886
          %v4903 = vmul.f32 %v4770, %v4887
          %v4904 = vmul.f32 %v4771, %v4888
          %v4905 = vmul.f32 %v4772, %v4889
          %v4907 = vlaneseq
          %v4908 = vshrl.u32 %v4907, 7
          %v4909 = vsub.s32 0, %v4908
          %v4910 = vrot.slane %v4793, %v4909
          %v4912 = vmul.f32 %v4890, %v4910
          %v4913 = vmul.f32 %v4891, %v4910
          %v4914 = vmul.f32 %v4892, %v4910
          %v4915 = vmul.f32 %v4893, %v4910
          %v4916 = vmul.f32 %v4894, %v4910
          %v4917 = vmul.f32 %v4895, %v4910
          %v4918 = vmul.f32 %v4896, %v4910
          %v4919 = vmul.f32 %v4897, %v4910
          %v4920 = vmul.f32 %v4898, %v4910
          %v4921 = vmul.f32 %v4899, %v4910
          %v4922 = vmul.f32 %v4900, %v4910
          %v4923 = vmul.f32 %v4901, %v4910
          %v4924 = vmul.f32 %v4902, %v4910
          %v4925 = vmul.f32 %v4903, %v4910
          %v4926 = vmul.f32 %v4904, %v4910
          %v4927 = vmul.f32 %v4905, %v4910
          %4928 = vst [vmem:[%s448] sm:$0xff] %v4912
          %4929 = vst [vmem:[%s448 + $0x8] sm:$0xff] %v4913
          %4930 = vst [vmem:[%s448 + $0x10] sm:$0xff] %v4914
          %4931 = vst [vmem:[%s448 + $0x18] sm:$0xff] %v4915
          %4932 = vst [vmem:[%s448 + $0x20] sm:$0xff] %v4916
          %4933 = vst [vmem:[%s448 + $0x28] sm:$0xff] %v4917
          %4934 = vst [vmem:[%s448 + $0x30] sm:$0xff] %v4918
          %4935 = vst [vmem:[%s448 + $0x38] sm:$0xff] %v4919
          %4936 = vst [vmem:[%s448 + $0x40] sm:$0xff] %v4920
          %4937 = vst [vmem:[%s448 + $0x48] sm:$0xff] %v4921
          %4938 = vst [vmem:[%s448 + $0x50] sm:$0xff] %v4922
          %4939 = vst [vmem:[%s448 + $0x58] sm:$0xff] %v4923
          %4940 = vst [vmem:[%s448 + $0x60] sm:$0xff] %v4924
          %4941 = vst [vmem:[%s448 + $0x68] sm:$0xff] %v4925
          %4942 = vst [vmem:[%s448 + $0x70] sm:$0xff] %v4926
          %4943 = vst [vmem:[%s448 + $0x78] sm:$0xff] %v4927
        $region88: #{tpu_custom_call.1} parent=51 // pred_fallthru
          _
        %s4944 = sand.u32 %s228, 1
        %s4945 = scalar_lea.sflag [#allocation6], %s4944
        %s4946 = sand.u32 %s228, 1
        %s4947 = smul.addr %s4946, 128
        %s4948 = scalar_lea.vmem [#allocation16], %s4947
        // Predicated region
        $region89: #{tpu_custom_call.1} parent=51 // pred_check
          %p4949 = pneg %p238
        $region90: #{tpu_custom_call.1} parent=51 // pred_check_branch
          %4951 = sbr.rel (%p4949) target = $region92
        $region91: #{tpu_custom_call.1} parent=51 // pred_region
          %s4952 = smul.u32 16, %s34
          %s4954 = ssub.s32 2048, 2048
          %4955 = vsyncadd %s4945, %s4954
          %s4956 = smul.addr %s4952, 128
          %s4957 = scalar_lea.hbm %s8, %s4956
          %s4958 = sshll.u32 %s4948, 4
          %s4959 = int_to_ptr.vmem [resolvable:$true] %s4958
          %4964 = dma.vmem_to_hbm [thread:$0]  %s4959, 2048, %s4957, %s4945, 128, 128, 8
        $region92: #{tpu_custom_call.1} parent=51 // pred_fallthru
          _
      $region52: #{tpu_custom_call.1} parent=5 // pred_fallthru
        _
      %p4965 = scmp.le.s32.totalorder 2, %s25
      // Predicated region
      $region93: #{tpu_custom_call.1} parent=5 // pred_check
        %p4966 = pneg %p4965
      $region94: #{tpu_custom_call.1} parent=5 // pred_check_branch
        %4968 = sbr.rel (%p4966) target = $region96
      $region95: #{tpu_custom_call.1} parent=5 // pred_region
        %s4969 = ssub.s32 %s25, 2
        // Predicated region
        $region97: #{tpu_custom_call.1} parent=95 // pred_check
          %p4970 = pneg %p244
        $region98: #{tpu_custom_call.1} parent=95 // pred_check_branch
          %4972 = sbr.rel (%p4970) target = $region100
        $region99: #{tpu_custom_call.1} parent=95 // pred_region
          %s4973 = sand.u32 %s229, 1
          %s4974 = scalar_lea.sflag [#allocation6], %s4973
          %s4975 = sand.u32 %s229, 1
          %s4976 = smul.addr %s4975, 128
          %s4977 = scalar_lea.vmem [#allocation16], %s4976
          %4978 = dma.done %s4974, 2048
        $region100: #{tpu_custom_call.1} parent=95 // pred_fallthru
          _
      $region96: #{tpu_custom_call.1} parent=5 // pred_fallthru
        _
    $region6: #{tpu_custom_call.1} parent=1 // loop_footer
      %s29 = sadd.s32 1, %s25
    $region7: #{tpu_custom_call.1} parent=1 // loop_footer_branch
      %24 = sbr.rel target = $region3
    $region8: #{tpu_custom_call.1} parent=1 // loop_exit
      _
    %4979 = vsyncpa [#allocation5], 1
    %s4980 = scalar_lea.sflag [#allocation5], 1
    %4981 = vsyncpa %s4980, 1
    %4982 = vsyncpa [#allocation8], 1
    %s4983 = scalar_lea.sflag [#allocation8], 1
    %4984 = vsyncpa %s4983, 1
    %4985 = vsyncpa [#allocation11], 1
    %4986 = vsyncpa [#allocation14], 1
    %4987 = vsyncpa [#allocation6], 1
    %s4988 = scalar_lea.sflag [#allocation6], 1
    %4989 = vsyncpa %s4988, 1

</llo_original>
